<compile_context>
chip_gen: v7x
topology: tpu7x:2x2x1
jax: 0.10.0
libtpu: 0.0.40
codegen_flags: <defaults>
</compile_context>

<pallas_src>
import math
from functools import partial

import jax
import jax.numpy as jnp
import numpy as np
from jax.experimental import pallas as pl
from jax.experimental.pallas import tpu as pltpu


def _layernorm(v, g, b, eps=1e-5):
    mu = jnp.mean(v, axis=-1, keepdims=True)
    var = jnp.mean((v - mu) ** 2, axis=-1, keepdims=True)
    return (v - mu) * jax.lax.rsqrt(var + eps) * g + b


def _erf(x):
    # Abramowitz & Stegun 7.1.26 rational approximation (abs err < 1.5e-7 ~ f32
    # precision), built only from exp / abs / where / polynomials.
    a1, a2, a3, a4, a5 = 0.254829592, -0.284496736, 1.421413741, -1.453152027, 1.061405429
    p = 0.3275911
    s = jnp.where(x >= 0, 1.0, -1.0)
    ax = jnp.abs(x)
    t = 1.0 / (1.0 + p * ax)
    poly = ((((a5 * t + a4) * t + a3) * t + a2) * t + a1) * t
    return s * (1.0 - poly * jnp.exp(-ax * ax))


def _gelu_exact(x):
    # nn.GELU() default = exact (erf-based) GELU.
    return 0.5 * x * (1.0 + _erf(x * (1.0 / math.sqrt(2.0))))


def block_dec_kernel(
    x_ref, q_ref,
    ln1g_ref, ln1b_ref, wq_ref, wk_ref, wv_ref, wproj_ref, bproj_ref,
    ln2g_ref, ln2b_ref, wfc1_ref, bfc1_ref, dww_ref, dwb_ref, wfc2_ref, bfc2_ref,
    hmask_ref, gmat_ref,
    o_ref,
    *, num_heads,
):
    f32, bf16 = jnp.float32, jnp.bfloat16
    x = x_ref[0]          # (N, D)
    tq = q_ref[0]         # (N, D)
    N, D = x.shape
    hd = D // num_heads
    scale = float(hd) ** -0.5

    # ---------- attention branch: x + proj(attn(norm1(x), q)) --------------------
    xn = _layernorm(x, ln1g_ref[0], ln1b_ref[0])
    qh = jnp.dot(tq.astype(bf16), wq_ref[...], preferred_element_type=f32)   # (N, D)  qkv_bias=False
    k = jnp.dot(xn.astype(bf16), wk_ref[...], preferred_element_type=f32)    # (N, D)
    v = jnp.dot(xn.astype(bf16), wv_ref[...], preferred_element_type=f32)    # (N, D)

    hm = hmask_ref[...]                     # (num_heads, D) 0/1 head-channel masks
    qs = qh * (-scale)                      # fold the score scale and the "0 - attn" negation
    # Head-stacked masked q: row h*N+i holds q_i with only head-h channels kept, so a
    # single full-D contraction per row yields that head's scores.
    qm = jnp.concatenate([qs * hm[h] for h in range(num_heads)], axis=0)     # (heads*N, D)
    s = jax.lax.dot_general(qm.astype(bf16), k.astype(bf16),
                            (((1,), (1,)), ((), ())),
                            preferred_element_type=f32)                      # (heads*N, N)
    s = s - jnp.max(s, axis=-1, keepdims=True)
    e = jnp.exp(s)
    p = e * pl.reciprocal(jnp.sum(e, axis=-1, keepdims=True), approx=True)
    avall = jnp.dot(p.astype(bf16), v.astype(bf16),
                    preferred_element_type=f32)                              # (heads*N, D)
    av = jnp.zeros((N, D), f32)
    for h in range(num_heads):              # keep head-h columns of head-h block (aligned slices)
        av = av + avall[h * N:(h + 1) * N, :] * hm[h]
    proj = jnp.dot(av.astype(bf16), wproj_ref[...],
                   preferred_element_type=f32) + bproj_ref[0]
    x1 = x + proj

    # ---------- MLP branch: x1 + fc2(gelu(dwconv3d(fc1(norm2(x1))))) -------------
    xn2 = _layernorm(x1, ln2g_ref[0], ln2b_ref[0])
    hfc = jnp.dot(xn2.astype(bf16), wfc1_ref[...],
                  preferred_element_type=f32) + bfc1_ref[0]                  # (N, hidden)

    # Depthwise 3x3x3 conv as one matmul:  y = G @ [hfc * w_0; ...; hfc * w_26],
    # where G (N, 27N) is a host-built 0/1 shift+validity (zero-padding) matrix.
    dww = dww_ref[...]                      # (27, hidden)
    n_taps = dww.shape[0]
    hw = jnp.concatenate([hfc * dww[t] for t in range(n_taps)], axis=0)      # (27N, hidden)
    y = jnp.dot(gmat_ref[...], hw, preferred_element_type=f32) + dwb_ref[0]  # (N, hidden)
    y = _gelu_exact(y)
    out2 = jnp.dot(y.astype(bf16), wfc2_ref[...],
                   preferred_element_type=f32) + bfc2_ref[0]

    # drop_path / dropouts are identity at the default p=0 rates.
    o_ref[0] = (x1 + out2).astype(o_ref.dtype)


def _conv_gather_matrix(H, W, Cs):
    """(N, 27*N) 0/1 matrix: row n, column t*N+m is 1 iff token m is the in-volume
    neighbor of token n for kernel tap t (t = (kh*3+kw)*3+kc, zero padding outside)."""
    N = H * W * Cs
    g = np.zeros((N, 27 * N), np.float32)
    for hh in range(H):
        for ww in range(W):
            for cc in range(Cs):
                n = (hh * W + ww) * Cs + cc
                for kh in range(3):
                    for kw in range(3):
                        for kc in range(3):
                            t = (kh * 3 + kw) * 3 + kc
                            h2, w2, c2 = hh + kh - 1, ww + kw - 1, cc + kc - 1
                            if 0 <= h2 < H and 0 <= w2 < W and 0 <= c2 < Cs:
                                m = (h2 * W + w2) * Cs + c2
                                g[n, t * N + m] = 1.0
    return g


def block_dec_forward(x, q, params, *, num_heads, H, W, Cs):
    B, N, D = x.shape
    assert N == H * W * Cs, "sequence length must equal H*W*C for the DWConv"
    assert D % num_heads == 0
    bf16 = jnp.bfloat16

    # split kv weight so the kernel avoids sub-lane channel slicing of the kv output
    wkv = params["wkv"]
    wk, wv = wkv[:, :D], wkv[:, D:]

    head_id = np.arange(D) // (D // num_heads)
    hmask = jnp.asarray((head_id[None, :] == np.arange(num_heads)[:, None]).astype(np.float32))
    gmat = jnp.asarray(_conv_gather_matrix(H, W, Cs))

    param_list = [
        params["ln1g"], params["ln1b"],
        params["wq"].astype(bf16), wk.astype(bf16), wv.astype(bf16),
        params["wproj"].astype(bf16), params["bproj"],
        params["ln2g"], params["ln2b"],
        params["wfc1"].astype(bf16), params["bfc1"],
        params["dww"], params["dwb"],
        params["wfc2"].astype(bf16), params["bfc2"],
        hmask, gmat,
    ]

    kernel = partial(block_dec_kernel, num_heads=num_heads)

    tok_spec = pl.BlockSpec((1, N, D), lambda b: (b, 0, 0))
    par_specs = [pl.BlockSpec(p.shape, lambda b: (0, 0)) for p in param_list]

    grid_spec = pltpu.PrefetchScalarGridSpec(
        num_scalar_prefetch=0,
        grid=(B,),
        in_specs=[tok_spec, tok_spec] + par_specs,
        out_specs=pl.BlockSpec((1, N, D), lambda b: (b, 0, 0)),
    )
    return pl.pallas_call(
        kernel,
        out_shape=jax.ShapeDtypeStruct((B, N, D), x.dtype),
        grid_spec=grid_spec,
        # batch steps are independent -> legal "parallel"; shards across v7x's 2 TCs.
        compiler_params=pltpu.CompilerParams(dimension_semantics=("parallel",)),
    )(x, q, *param_list)


def reference_forward(x, q, P, *, num_heads, H, W, Cs):
    # Pure-JAX reference mirroring the PyTorch forward (f32 weights).
    def ln(v, g, b):
        mu = v.mean(-1, keepdims=True)
        var = ((v - mu) ** 2).mean(-1, keepdims=True)
        return (v - mu) / jnp.sqrt(var + 1e-5) * g + b

    B, N, D = x.shape
    hd = D // num_heads
    scale = hd ** -0.5

    xn = ln(x, P["ln1g"][0], P["ln1b"][0])
    qh = q @ P["wq"]
    kv = xn @ P["wkv"]
    k, v = kv[..., :D], kv[..., D:]
    qh = qh.reshape(B, N, num_heads, hd).transpose(0, 2, 1, 3)
    k = k.reshape(B, N, num_heads, hd).transpose(0, 2, 1, 3)
    v = v.reshape(B, N, num_heads, hd).transpose(0, 2, 1, 3)
    attn = -(qh @ k.transpose(0, 1, 3, 2) * scale)
    attn = jax.nn.softmax(attn, axis=-1)
    av = (attn @ v).transpose(0, 2, 1, 3).reshape(B, N, D)
    x1 = x + av @ P["wproj"] + P["bproj"][0]

    xn2 = ln(x1, P["ln2g"][0], P["ln2b"][0])
    h = xn2 @ P["wfc1"] + P["bfc1"][0]
    hidden = h.shape[-1]
    himg = h.transpose(0, 2, 1).reshape(B, hidden, H, W, Cs)
    w3 = P["dww"].reshape(3, 3, 3, hidden).transpose(3, 0, 1, 2)[:, None]  # (hidden,1,3,3,3)
    conv = jax.lax.conv_general_dilated(
        himg, w3, window_strides=(1, 1, 1), padding=[(1, 1)] * 3,
        dimension_numbers=("NCXYZ", "OIXYZ", "NCXYZ"),
        feature_group_count=hidden)
    conv = conv + P["dwb"][0][None, :, None, None, None]
    h2 = conv.reshape(B, hidden, N).transpose(0, 2, 1)
    h2 = jax.nn.gelu(h2, approximate=False)
    return x1 + h2 @ P["wfc2"] + P["bfc2"][0]


if __name__ == "__main__":
    dim, num_heads, mlp_ratio = 32, 8, 4.0
    H, W, Cs = 4, 4, 2          # 3-D spatial volume used by DWConv
    N = H * W * Cs              # 32 tokens
    B = 2
    hidden = int(dim * mlp_ratio)

    key = jax.random.PRNGKey(0)
    ks = jax.random.split(key, 8)

    def tn(k, shape, std=0.02):   # trunc_normal_(std=0.02)-style init
        return (std * jax.random.truncated_normal(k, -2.0, 2.0, shape)).astype(jnp.float32)

    dw_w3d = (0.1 * jax.random.normal(ks[4], (hidden, 3, 3, 3))).astype(jnp.float32)

    params = dict(
        ln1g=jnp.ones((1, dim), jnp.float32), ln1b=jnp.zeros((1, dim), jnp.float32),
        wq=tn(ks[0], (dim, dim)),
        wkv=tn(ks[1], (dim, 2 * dim)),
        wproj=tn(ks[2], (dim, dim)), bproj=jnp.zeros((1, dim), jnp.float32),
        ln2g=jnp.ones((1, dim), jnp.float32), ln2b=jnp.zeros((1, dim), jnp.float32),
        wfc1=tn(ks[3], (dim, hidden)), bfc1=jnp.zeros((1, hidden), jnp.float32),
        dww=dw_w3d.transpose(1, 2, 3, 0).reshape(27, hidden),   # [(kh*3+kw)*3+kc, channel]
        dwb=(0.05 * jax.random.normal(ks[5], (1, hidden))).astype(jnp.float32),
        wfc2=tn(ks[6], (hidden, dim)), bfc2=jnp.zeros((1, dim), jnp.float32),
    )

    kx, kq = jax.random.split(ks[7])
    x = jax.random.normal(kx, (B, N, dim), jnp.float32)
    q = jax.random.normal(kq, (B, N, dim), jnp.float32)

    out = block_dec_forward(x, q, params, num_heads=num_heads, H=H, W=W, Cs=Cs)
    out = jax.block_until_ready(out)

    ref = reference_forward(x, q, params, num_heads=num_heads, H=H, W=W, Cs=Cs)
    np.testing.assert_allclose(np.asarray(out), np.asarray(ref), rtol=2e-2, atol=2e-2)

    print("KERNEL_OK")
</pallas_src>

<mosaic_0001>
module attributes {stable_mosaic.version = 11 : i64} {
  func.func @block_dec_kernel(%arg0: i32, %arg1: memref<1x32x32xf32, #tpu.memory_space<vmem>>, %arg2: memref<1x32x32xf32, #tpu.memory_space<vmem>>, %arg3: memref<1x32xf32, #tpu.memory_space<vmem>>, %arg4: memref<1x32xf32, #tpu.memory_space<vmem>>, %arg5: memref<32x32xbf16, #tpu.memory_space<vmem>>, %arg6: memref<32x32xbf16, #tpu.memory_space<vmem>>, %arg7: memref<32x32xbf16, #tpu.memory_space<vmem>>, %arg8: memref<32x32xbf16, #tpu.memory_space<vmem>>, %arg9: memref<1x32xf32, #tpu.memory_space<vmem>>, %arg10: memref<1x32xf32, #tpu.memory_space<vmem>>, %arg11: memref<1x32xf32, #tpu.memory_space<vmem>>, %arg12: memref<32x128xbf16, #tpu.memory_space<vmem>>, %arg13: memref<1x128xf32, #tpu.memory_space<vmem>>, %arg14: memref<27x128xf32, #tpu.memory_space<vmem>>, %arg15: memref<1x128xf32, #tpu.memory_space<vmem>>, %arg16: memref<128x32xbf16, #tpu.memory_space<vmem>>, %arg17: memref<1x32xf32, #tpu.memory_space<vmem>>, %arg18: memref<8x32xf32, #tpu.memory_space<vmem>>, %arg19: memref<32x864xf32, #tpu.memory_space<vmem>>, %arg20: memref<1x32x32xf32, #tpu.memory_space<vmem>>) attributes {dimension_semantics = [#tpu.dimension_semantics<parallel>], iteration_bounds = array<i64: 2>, scalar_prefetch = 0 : i64, scratch_operands = 0 : i64, tpu.core_type = #tpu.core_type<tc>, window_params = [{transform_indices = @transform_0, window_bounds = array<i64: 1, 32, 32>}, {transform_indices = @transform_1, window_bounds = array<i64: 1, 32, 32>}, {pipeline_mode = #tpu.pipeline_mode<synchronous>, transform_indices = @transform_2, window_bounds = array<i64: 1, 32>}, {pipeline_mode = #tpu.pipeline_mode<synchronous>, transform_indices = @transform_3, window_bounds = array<i64: 1, 32>}, {pipeline_mode = #tpu.pipeline_mode<synchronous>, transform_indices = @transform_4, window_bounds = array<i64: 32, 32>}, {pipeline_mode = #tpu.pipeline_mode<synchronous>, transform_indices = @transform_5, window_bounds = array<i64: 32, 32>}, {pipeline_mode = #tpu.pipeline_mode<synchronous>, transform_indices = @transform_6, window_bounds = array<i64: 32, 32>}, {pipeline_mode = #tpu.pipeline_mode<synchronous>, transform_indices = @transform_7, window_bounds = array<i64: 32, 32>}, {pipeline_mode = #tpu.pipeline_mode<synchronous>, transform_indices = @transform_8, window_bounds = array<i64: 1, 32>}, {pipeline_mode = #tpu.pipeline_mode<synchronous>, transform_indices = @transform_9, window_bounds = array<i64: 1, 32>}, {pipeline_mode = #tpu.pipeline_mode<synchronous>, transform_indices = @transform_10, window_bounds = array<i64: 1, 32>}, {pipeline_mode = #tpu.pipeline_mode<synchronous>, transform_indices = @transform_11, window_bounds = array<i64: 32, 128>}, {pipeline_mode = #tpu.pipeline_mode<synchronous>, transform_indices = @transform_12, window_bounds = array<i64: 1, 128>}, {pipeline_mode = #tpu.pipeline_mode<synchronous>, transform_indices = @transform_13, window_bounds = array<i64: 27, 128>}, {pipeline_mode = #tpu.pipeline_mode<synchronous>, transform_indices = @transform_14, window_bounds = array<i64: 1, 128>}, {pipeline_mode = #tpu.pipeline_mode<synchronous>, transform_indices = @transform_15, window_bounds = array<i64: 128, 32>}, {pipeline_mode = #tpu.pipeline_mode<synchronous>, transform_indices = @transform_16, window_bounds = array<i64: 1, 32>}, {pipeline_mode = #tpu.pipeline_mode<synchronous>, transform_indices = @transform_17, window_bounds = array<i64: 8, 32>}, {pipeline_mode = #tpu.pipeline_mode<synchronous>, transform_indices = @transform_18, window_bounds = array<i64: 32, 864>}, {transform_indices = @transform_19, window_bounds = array<i64: 1, 32, 32>}]} {
    %c0 = arith.constant 0 : index
    %c0_0 = arith.constant 0 : index
    %c0_1 = arith.constant 0 : index
    %0 = vector.load %arg1[%c0, %c0_0, %c0_1] : memref<1x32x32xf32, #tpu.memory_space<vmem>>, vector<1x32x32xf32>
    %1 = vector.shape_cast %0 : vector<1x32x32xf32> to vector<32x32xf32>
    %c0_2 = arith.constant 0 : index
    %c0_3 = arith.constant 0 : index
    %c0_4 = arith.constant 0 : index
    %2 = vector.load %arg2[%c0_2, %c0_3, %c0_4] : memref<1x32x32xf32, #tpu.memory_space<vmem>>, vector<1x32x32xf32>
    %3 = vector.shape_cast %2 : vector<1x32x32xf32> to vector<32x32xf32>
    %c0_5 = arith.constant 0 : index
    %c0_6 = arith.constant 0 : index
    %4 = vector.load %arg3[%c0_5, %c0_6] : memref<1x32xf32, #tpu.memory_space<vmem>>, vector<1x32xf32>
    %5 = vector.shape_cast %4 : vector<1x32xf32> to vector<32xf32>
    %c0_7 = arith.constant 0 : index
    %c0_8 = arith.constant 0 : index
    %6 = vector.load %arg4[%c0_7, %c0_8] : memref<1x32xf32, #tpu.memory_space<vmem>>, vector<1x32xf32>
    %7 = vector.shape_cast %6 : vector<1x32xf32> to vector<32xf32>
    %cst = arith.constant dense<0.000000e+00> : vector<32xf32>
    %8 = vector.multi_reduction <add>, %1, %cst [1] : vector<32x32xf32> to vector<32xf32>
    %9 = vector.shape_cast %8 : vector<32xf32> to vector<32x1xf32>
    %cst_9 = arith.constant 3.200000e+01 : f32
    %10 = vector.broadcast %cst_9 : f32 to vector<32x1xf32>
    %11 = arith.divf %9, %10 : vector<32x1xf32>
    %12 = vector.broadcast %11 : vector<32x1xf32> to vector<32x32xf32>
    %13 = arith.subf %1, %12 : vector<32x32xf32>
    %14 = arith.mulf %13, %13 : vector<32x32xf32>
    %cst_10 = arith.constant dense<0.000000e+00> : vector<32xf32>
    %15 = vector.multi_reduction <add>, %14, %cst_10 [1] : vector<32x32xf32> to vector<32xf32>
    %16 = vector.shape_cast %15 : vector<32xf32> to vector<32x1xf32>
    %cst_11 = arith.constant 3.200000e+01 : f32
    %17 = vector.broadcast %cst_11 : f32 to vector<32x1xf32>
    %18 = arith.divf %16, %17 : vector<32x1xf32>
    %19 = vector.broadcast %11 : vector<32x1xf32> to vector<32x32xf32>
    %20 = arith.subf %1, %19 : vector<32x32xf32>
    %cst_12 = arith.constant 9.99999974E-6 : f32
    %21 = vector.broadcast %cst_12 : f32 to vector<32x1xf32>
    %22 = arith.addf %18, %21 : vector<32x1xf32>
    %23 = math.rsqrt %22 : vector<32x1xf32>
    %24 = vector.broadcast %23 : vector<32x1xf32> to vector<32x32xf32>
    %25 = arith.mulf %20, %24 : vector<32x32xf32>
    %26 = vector.shape_cast %5 : vector<32xf32> to vector<1x32xf32>
    %27 = vector.broadcast %26 : vector<1x32xf32> to vector<32x32xf32>
    %28 = arith.mulf %25, %27 : vector<32x32xf32>
    %29 = vector.shape_cast %7 : vector<32xf32> to vector<1x32xf32>
    %30 = vector.broadcast %29 : vector<1x32xf32> to vector<32x32xf32>
    %31 = arith.addf %28, %30 : vector<32x32xf32>
    %32 = arith.truncf %3 : vector<32x32xf32> to vector<32x32xbf16>
    %c0_13 = arith.constant 0 : index
    %c0_14 = arith.constant 0 : index
    %33 = vector.load %arg5[%c0_13, %c0_14] : memref<32x32xbf16, #tpu.memory_space<vmem>>, vector<32x32xbf16>
    %cst_15 = arith.constant dense<0.000000e+00> : vector<32x32xf32>
    %34 = tpu.matmul %32, %33, %cst_15 {dimension_numbers = #tpu.dot_dimension_numbers<[1], [0], [0], [1], [0, 0, 1, 1], [], []>} : vector<32x32xbf16>, vector<32x32xbf16>, vector<32x32xf32> -> vector<32x32xf32>
    %35 = arith.truncf %31 : vector<32x32xf32> to vector<32x32xbf16>
    %c0_16 = arith.constant 0 : index
    %c0_17 = arith.constant 0 : index
    %36 = vector.load %arg6[%c0_16, %c0_17] : memref<32x32xbf16, #tpu.memory_space<vmem>>, vector<32x32xbf16>
    %cst_18 = arith.constant dense<0.000000e+00> : vector<32x32xf32>
    %37 = tpu.matmul %35, %36, %cst_18 {dimension_numbers = #tpu.dot_dimension_numbers<[1], [0], [0], [1], [0, 0, 1, 1], [], []>} : vector<32x32xbf16>, vector<32x32xbf16>, vector<32x32xf32> -> vector<32x32xf32>
    %38 = arith.truncf %31 : vector<32x32xf32> to vector<32x32xbf16>
    %c0_19 = arith.constant 0 : index
    %c0_20 = arith.constant 0 : index
    %39 = vector.load %arg7[%c0_19, %c0_20] : memref<32x32xbf16, #tpu.memory_space<vmem>>, vector<32x32xbf16>
    %cst_21 = arith.constant dense<0.000000e+00> : vector<32x32xf32>
    %40 = tpu.matmul %38, %39, %cst_21 {dimension_numbers = #tpu.dot_dimension_numbers<[1], [0], [0], [1], [0, 0, 1, 1], [], []>} : vector<32x32xbf16>, vector<32x32xbf16>, vector<32x32xf32> -> vector<32x32xf32>
    %c0_22 = arith.constant 0 : index
    %c0_23 = arith.constant 0 : index
    %41 = vector.load %arg18[%c0_22, %c0_23] : memref<8x32xf32, #tpu.memory_space<vmem>>, vector<8x32xf32>
    %cst_24 = arith.constant -5.000000e-01 : f32
    %42 = vector.broadcast %cst_24 : f32 to vector<32x32xf32>
    %43 = arith.mulf %34, %42 : vector<32x32xf32>
    %44 = vector.extract_strided_slice %41 {offsets = [0, 0], sizes = [1, 32], strides = [1, 1]} : vector<8x32xf32> to vector<1x32xf32>
    %45 = vector.shape_cast %44 : vector<1x32xf32> to vector<32xf32>
    %46 = vector.shape_cast %45 : vector<32xf32> to vector<1x32xf32>
    %47 = vector.broadcast %46 : vector<1x32xf32> to vector<32x32xf32>
    %48 = arith.mulf %43, %47 : vector<32x32xf32>
    %49 = vector.extract_strided_slice %41 {offsets = [1, 0], sizes = [1, 32], strides = [1, 1]} : vector<8x32xf32> to vector<1x32xf32>
    %50 = vector.shape_cast %49 : vector<1x32xf32> to vector<32xf32>
    %51 = vector.shape_cast %50 : vector<32xf32> to vector<1x32xf32>
    %52 = vector.broadcast %51 : vector<1x32xf32> to vector<32x32xf32>
    %53 = arith.mulf %43, %52 : vector<32x32xf32>
    %54 = vector.extract_strided_slice %41 {offsets = [2, 0], sizes = [1, 32], strides = [1, 1]} : vector<8x32xf32> to vector<1x32xf32>
    %55 = vector.shape_cast %54 : vector<1x32xf32> to vector<32xf32>
    %56 = vector.shape_cast %55 : vector<32xf32> to vector<1x32xf32>
    %57 = vector.broadcast %56 : vector<1x32xf32> to vector<32x32xf32>
    %58 = arith.mulf %43, %57 : vector<32x32xf32>
    %59 = vector.extract_strided_slice %41 {offsets = [3, 0], sizes = [1, 32], strides = [1, 1]} : vector<8x32xf32> to vector<1x32xf32>
    %60 = vector.shape_cast %59 : vector<1x32xf32> to vector<32xf32>
    %61 = vector.shape_cast %60 : vector<32xf32> to vector<1x32xf32>
    %62 = vector.broadcast %61 : vector<1x32xf32> to vector<32x32xf32>
    %63 = arith.mulf %43, %62 : vector<32x32xf32>
    %64 = vector.extract_strided_slice %41 {offsets = [4, 0], sizes = [1, 32], strides = [1, 1]} : vector<8x32xf32> to vector<1x32xf32>
    %65 = vector.shape_cast %64 : vector<1x32xf32> to vector<32xf32>
    %66 = vector.shape_cast %65 : vector<32xf32> to vector<1x32xf32>
    %67 = vector.broadcast %66 : vector<1x32xf32> to vector<32x32xf32>
    %68 = arith.mulf %43, %67 : vector<32x32xf32>
    %69 = vector.extract_strided_slice %41 {offsets = [5, 0], sizes = [1, 32], strides = [1, 1]} : vector<8x32xf32> to vector<1x32xf32>
    %70 = vector.shape_cast %69 : vector<1x32xf32> to vector<32xf32>
    %71 = vector.shape_cast %70 : vector<32xf32> to vector<1x32xf32>
    %72 = vector.broadcast %71 : vector<1x32xf32> to vector<32x32xf32>
    %73 = arith.mulf %43, %72 : vector<32x32xf32>
    %74 = vector.extract_strided_slice %41 {offsets = [6, 0], sizes = [1, 32], strides = [1, 1]} : vector<8x32xf32> to vector<1x32xf32>
    %75 = vector.shape_cast %74 : vector<1x32xf32> to vector<32xf32>
    %76 = vector.shape_cast %75 : vector<32xf32> to vector<1x32xf32>
    %77 = vector.broadcast %76 : vector<1x32xf32> to vector<32x32xf32>
    %78 = arith.mulf %43, %77 : vector<32x32xf32>
    %79 = vector.extract_strided_slice %41 {offsets = [7, 0], sizes = [1, 32], strides = [1, 1]} : vector<8x32xf32> to vector<1x32xf32>
    %80 = vector.shape_cast %79 : vector<1x32xf32> to vector<32xf32>
    %81 = vector.shape_cast %80 : vector<32xf32> to vector<1x32xf32>
    %82 = vector.broadcast %81 : vector<1x32xf32> to vector<32x32xf32>
    %83 = arith.mulf %43, %82 : vector<32x32xf32>
    %84 = tpu.concatenate %48, %53, %58, %63, %68, %73, %78, %83 in 0 : vector<32x32xf32>, vector<32x32xf32>, vector<32x32xf32>, vector<32x32xf32>, vector<32x32xf32>, vector<32x32xf32>, vector<32x32xf32>, vector<32x32xf32> -> vector<256x32xf32>
    %85 = arith.truncf %84 : vector<256x32xf32> to vector<256x32xbf16>
    %86 = arith.truncf %37 : vector<32x32xf32> to vector<32x32xbf16>
    %cst_25 = arith.constant dense<0.000000e+00> : vector<256x32xf32>
    %87 = tpu.matmul %85, %86, %cst_25 {dimension_numbers = #tpu.dot_dimension_numbers<[1], [1], [0], [0], [0, 0, 1, 0], [], []>} : vector<256x32xbf16>, vector<32x32xbf16>, vector<256x32xf32> -> vector<256x32xf32>
    %cst_26 = arith.constant dense<0xFF800000> : vector<256xf32>
    %88 = vector.multi_reduction <maximumf>, %87, %cst_26 [1] : vector<256x32xf32> to vector<256xf32>
    %89 = vector.shape_cast %88 : vector<256xf32> to vector<256x1xf32>
    %90 = vector.broadcast %89 : vector<256x1xf32> to vector<256x32xf32>
    %91 = arith.subf %87, %90 : vector<256x32xf32>
    %92 = math.exp %91 : vector<256x32xf32>
    %cst_27 = arith.constant dense<0.000000e+00> : vector<256xf32>
    %93 = vector.multi_reduction <add>, %92, %cst_27 [1] : vector<256x32xf32> to vector<256xf32>
    %94 = vector.shape_cast %93 : vector<256xf32> to vector<256x1xf32>
    %95 = tpu.reciprocal %94 {approx = true} : vector<256x1xf32> -> vector<256x1xf32>
    %96 = vector.broadcast %95 : vector<256x1xf32> to vector<256x32xf32>
    %97 = arith.mulf %92, %96 : vector<256x32xf32>
    %98 = arith.truncf %97 : vector<256x32xf32> to vector<256x32xbf16>
    %99 = arith.truncf %40 : vector<32x32xf32> to vector<32x32xbf16>
    %cst_28 = arith.constant dense<0.000000e+00> : vector<256x32xf32>
    %100 = tpu.matmul %98, %99, %cst_28 {dimension_numbers = #tpu.dot_dimension_numbers<[1], [0], [0], [1], [0, 0, 1, 1], [], []>} : vector<256x32xbf16>, vector<32x32xbf16>, vector<256x32xf32> -> vector<256x32xf32>
    %cst_29 = arith.constant 0.000000e+00 : f32
    %101 = vector.broadcast %cst_29 : f32 to vector<32x32xf32>
    %102 = vector.extract_strided_slice %100 {offsets = [0, 0], sizes = [32, 32], strides = [1, 1]} : vector<256x32xf32> to vector<32x32xf32>
    %103 = vector.extract_strided_slice %41 {offsets = [0, 0], sizes = [1, 32], strides = [1, 1]} : vector<8x32xf32> to vector<1x32xf32>
    %104 = vector.shape_cast %103 : vector<1x32xf32> to vector<32xf32>
    %105 = vector.shape_cast %104 : vector<32xf32> to vector<1x32xf32>
    %106 = vector.broadcast %105 : vector<1x32xf32> to vector<32x32xf32>
    %107 = arith.mulf %102, %106 : vector<32x32xf32>
    %108 = arith.addf %101, %107 : vector<32x32xf32>
    %109 = vector.extract_strided_slice %100 {offsets = [32, 0], sizes = [32, 32], strides = [1, 1]} : vector<256x32xf32> to vector<32x32xf32>
    %110 = vector.extract_strided_slice %41 {offsets = [1, 0], sizes = [1, 32], strides = [1, 1]} : vector<8x32xf32> to vector<1x32xf32>
    %111 = vector.shape_cast %110 : vector<1x32xf32> to vector<32xf32>
    %112 = vector.shape_cast %111 : vector<32xf32> to vector<1x32xf32>
    %113 = vector.broadcast %112 : vector<1x32xf32> to vector<32x32xf32>
    %114 = arith.mulf %109, %113 : vector<32x32xf32>
    %115 = arith.addf %108, %114 : vector<32x32xf32>
    %116 = vector.extract_strided_slice %100 {offsets = [64, 0], sizes = [32, 32], strides = [1, 1]} : vector<256x32xf32> to vector<32x32xf32>
    %117 = vector.extract_strided_slice %41 {offsets = [2, 0], sizes = [1, 32], strides = [1, 1]} : vector<8x32xf32> to vector<1x32xf32>
    %118 = vector.shape_cast %117 : vector<1x32xf32> to vector<32xf32>
    %119 = vector.shape_cast %118 : vector<32xf32> to vector<1x32xf32>
    %120 = vector.broadcast %119 : vector<1x32xf32> to vector<32x32xf32>
    %121 = arith.mulf %116, %120 : vector<32x32xf32>
    %122 = arith.addf %115, %121 : vector<32x32xf32>
    %123 = vector.extract_strided_slice %100 {offsets = [96, 0], sizes = [32, 32], strides = [1, 1]} : vector<256x32xf32> to vector<32x32xf32>
    %124 = vector.extract_strided_slice %41 {offsets = [3, 0], sizes = [1, 32], strides = [1, 1]} : vector<8x32xf32> to vector<1x32xf32>
    %125 = vector.shape_cast %124 : vector<1x32xf32> to vector<32xf32>
    %126 = vector.shape_cast %125 : vector<32xf32> to vector<1x32xf32>
    %127 = vector.broadcast %126 : vector<1x32xf32> to vector<32x32xf32>
    %128 = arith.mulf %123, %127 : vector<32x32xf32>
    %129 = arith.addf %122, %128 : vector<32x32xf32>
    %130 = vector.extract_strided_slice %100 {offsets = [128, 0], sizes = [32, 32], strides = [1, 1]} : vector<256x32xf32> to vector<32x32xf32>
    %131 = vector.extract_strided_slice %41 {offsets = [4, 0], sizes = [1, 32], strides = [1, 1]} : vector<8x32xf32> to vector<1x32xf32>
    %132 = vector.shape_cast %131 : vector<1x32xf32> to vector<32xf32>
    %133 = vector.shape_cast %132 : vector<32xf32> to vector<1x32xf32>
    %134 = vector.broadcast %133 : vector<1x32xf32> to vector<32x32xf32>
    %135 = arith.mulf %130, %134 : vector<32x32xf32>
    %136 = arith.addf %129, %135 : vector<32x32xf32>
    %137 = vector.extract_strided_slice %100 {offsets = [160, 0], sizes = [32, 32], strides = [1, 1]} : vector<256x32xf32> to vector<32x32xf32>
    %138 = vector.extract_strided_slice %41 {offsets = [5, 0], sizes = [1, 32], strides = [1, 1]} : vector<8x32xf32> to vector<1x32xf32>
    %139 = vector.shape_cast %138 : vector<1x32xf32> to vector<32xf32>
    %140 = vector.shape_cast %139 : vector<32xf32> to vector<1x32xf32>
    %141 = vector.broadcast %140 : vector<1x32xf32> to vector<32x32xf32>
    %142 = arith.mulf %137, %141 : vector<32x32xf32>
    %143 = arith.addf %136, %142 : vector<32x32xf32>
    %144 = vector.extract_strided_slice %100 {offsets = [192, 0], sizes = [32, 32], strides = [1, 1]} : vector<256x32xf32> to vector<32x32xf32>
    %145 = vector.extract_strided_slice %41 {offsets = [6, 0], sizes = [1, 32], strides = [1, 1]} : vector<8x32xf32> to vector<1x32xf32>
    %146 = vector.shape_cast %145 : vector<1x32xf32> to vector<32xf32>
    %147 = vector.shape_cast %146 : vector<32xf32> to vector<1x32xf32>
    %148 = vector.broadcast %147 : vector<1x32xf32> to vector<32x32xf32>
    %149 = arith.mulf %144, %148 : vector<32x32xf32>
    %150 = arith.addf %143, %149 : vector<32x32xf32>
    %151 = vector.extract_strided_slice %100 {offsets = [224, 0], sizes = [32, 32], strides = [1, 1]} : vector<256x32xf32> to vector<32x32xf32>
    %152 = vector.extract_strided_slice %41 {offsets = [7, 0], sizes = [1, 32], strides = [1, 1]} : vector<8x32xf32> to vector<1x32xf32>
    %153 = vector.shape_cast %152 : vector<1x32xf32> to vector<32xf32>
    %154 = vector.shape_cast %153 : vector<32xf32> to vector<1x32xf32>
    %155 = vector.broadcast %154 : vector<1x32xf32> to vector<32x32xf32>
    %156 = arith.mulf %151, %155 : vector<32x32xf32>
    %157 = arith.addf %150, %156 : vector<32x32xf32>
    %158 = arith.truncf %157 : vector<32x32xf32> to vector<32x32xbf16>
    %c0_30 = arith.constant 0 : index
    %c0_31 = arith.constant 0 : index
    %159 = vector.load %arg8[%c0_30, %c0_31] : memref<32x32xbf16, #tpu.memory_space<vmem>>, vector<32x32xbf16>
    %cst_32 = arith.constant dense<0.000000e+00> : vector<32x32xf32>
    %160 = tpu.matmul %158, %159, %cst_32 {dimension_numbers = #tpu.dot_dimension_numbers<[1], [0], [0], [1], [0, 0, 1, 1], [], []>} : vector<32x32xbf16>, vector<32x32xbf16>, vector<32x32xf32> -> vector<32x32xf32>
    %c0_33 = arith.constant 0 : index
    %c0_34 = arith.constant 0 : index
    %161 = vector.load %arg9[%c0_33, %c0_34] : memref<1x32xf32, #tpu.memory_space<vmem>>, vector<1x32xf32>
    %162 = vector.shape_cast %161 : vector<1x32xf32> to vector<32xf32>
    %163 = vector.shape_cast %162 : vector<32xf32> to vector<1x32xf32>
    %164 = vector.broadcast %163 : vector<1x32xf32> to vector<32x32xf32>
    %165 = arith.addf %160, %164 : vector<32x32xf32>
    %166 = arith.addf %1, %165 : vector<32x32xf32>
    %c0_35 = arith.constant 0 : index
    %c0_36 = arith.constant 0 : index
    %167 = vector.load %arg10[%c0_35, %c0_36] : memref<1x32xf32, #tpu.memory_space<vmem>>, vector<1x32xf32>
    %168 = vector.shape_cast %167 : vector<1x32xf32> to vector<32xf32>
    %c0_37 = arith.constant 0 : index
    %c0_38 = arith.constant 0 : index
    %169 = vector.load %arg11[%c0_37, %c0_38] : memref<1x32xf32, #tpu.memory_space<vmem>>, vector<1x32xf32>
    %170 = vector.shape_cast %169 : vector<1x32xf32> to vector<32xf32>
    %cst_39 = arith.constant dense<0.000000e+00> : vector<32xf32>
    %171 = vector.multi_reduction <add>, %166, %cst_39 [1] : vector<32x32xf32> to vector<32xf32>
    %172 = vector.shape_cast %171 : vector<32xf32> to vector<32x1xf32>
    %cst_40 = arith.constant 3.200000e+01 : f32
    %173 = vector.broadcast %cst_40 : f32 to vector<32x1xf32>
    %174 = arith.divf %172, %173 : vector<32x1xf32>
    %175 = vector.broadcast %174 : vector<32x1xf32> to vector<32x32xf32>
    %176 = arith.subf %166, %175 : vector<32x32xf32>
    %177 = arith.mulf %176, %176 : vector<32x32xf32>
    %cst_41 = arith.constant dense<0.000000e+00> : vector<32xf32>
    %178 = vector.multi_reduction <add>, %177, %cst_41 [1] : vector<32x32xf32> to vector<32xf32>
    %179 = vector.shape_cast %178 : vector<32xf32> to vector<32x1xf32>
    %cst_42 = arith.constant 3.200000e+01 : f32
    %180 = vector.broadcast %cst_42 : f32 to vector<32x1xf32>
    %181 = arith.divf %179, %180 : vector<32x1xf32>
    %182 = vector.broadcast %174 : vector<32x1xf32> to vector<32x32xf32>
    %183 = arith.subf %166, %182 : vector<32x32xf32>
    %cst_43 = arith.constant 9.99999974E-6 : f32
    %184 = vector.broadcast %cst_43 : f32 to vector<32x1xf32>
    %185 = arith.addf %181, %184 : vector<32x1xf32>
    %186 = math.rsqrt %185 : vector<32x1xf32>
    %187 = vector.broadcast %186 : vector<32x1xf32> to vector<32x32xf32>
    %188 = arith.mulf %183, %187 : vector<32x32xf32>
    %189 = vector.shape_cast %168 : vector<32xf32> to vector<1x32xf32>
    %190 = vector.broadcast %189 : vector<1x32xf32> to vector<32x32xf32>
    %191 = arith.mulf %188, %190 : vector<32x32xf32>
    %192 = vector.shape_cast %170 : vector<32xf32> to vector<1x32xf32>
    %193 = vector.broadcast %192 : vector<1x32xf32> to vector<32x32xf32>
    %194 = arith.addf %191, %193 : vector<32x32xf32>
    %195 = arith.truncf %194 : vector<32x32xf32> to vector<32x32xbf16>
    %c0_44 = arith.constant 0 : index
    %c0_45 = arith.constant 0 : index
    %196 = vector.load %arg12[%c0_44, %c0_45] : memref<32x128xbf16, #tpu.memory_space<vmem>>, vector<32x128xbf16>
    %cst_46 = arith.constant dense<0.000000e+00> : vector<32x128xf32>
    %197 = tpu.matmul %195, %196, %cst_46 {dimension_numbers = #tpu.dot_dimension_numbers<[1], [0], [0], [1], [0, 0, 1, 1], [], []>} : vector<32x32xbf16>, vector<32x128xbf16>, vector<32x128xf32> -> vector<32x128xf32>
    %c0_47 = arith.constant 0 : index
    %c0_48 = arith.constant 0 : index
    %198 = vector.load %arg13[%c0_47, %c0_48] : memref<1x128xf32, #tpu.memory_space<vmem>>, vector<1x128xf32>
    %199 = vector.shape_cast %198 : vector<1x128xf32> to vector<128xf32>
    %200 = vector.shape_cast %199 : vector<128xf32> to vector<1x128xf32>
    %201 = vector.broadcast %200 : vector<1x128xf32> to vector<32x128xf32>
    %202 = arith.addf %197, %201 : vector<32x128xf32>
    %c0_49 = arith.constant 0 : index
    %c0_50 = arith.constant 0 : index
    %203 = vector.load %arg14[%c0_49, %c0_50] : memref<27x128xf32, #tpu.memory_space<vmem>>, vector<27x128xf32>
    %204 = vector.extract_strided_slice %203 {offsets = [0, 0], sizes = [1, 128], strides = [1, 1]} : vector<27x128xf32> to vector<1x128xf32>
    %205 = vector.shape_cast %204 : vector<1x128xf32> to vector<128xf32>
    %206 = vector.shape_cast %205 : vector<128xf32> to vector<1x128xf32>
    %207 = vector.broadcast %206 : vector<1x128xf32> to vector<32x128xf32>
    %208 = arith.mulf %202, %207 : vector<32x128xf32>
    %209 = vector.extract_strided_slice %203 {offsets = [1, 0], sizes = [1, 128], strides = [1, 1]} : vector<27x128xf32> to vector<1x128xf32>
    %210 = vector.shape_cast %209 : vector<1x128xf32> to vector<128xf32>
    %211 = vector.shape_cast %210 : vector<128xf32> to vector<1x128xf32>
    %212 = vector.broadcast %211 : vector<1x128xf32> to vector<32x128xf32>
    %213 = arith.mulf %202, %212 : vector<32x128xf32>
    %214 = vector.extract_strided_slice %203 {offsets = [2, 0], sizes = [1, 128], strides = [1, 1]} : vector<27x128xf32> to vector<1x128xf32>
    %215 = vector.shape_cast %214 : vector<1x128xf32> to vector<128xf32>
    %216 = vector.shape_cast %215 : vector<128xf32> to vector<1x128xf32>
    %217 = vector.broadcast %216 : vector<1x128xf32> to vector<32x128xf32>
    %218 = arith.mulf %202, %217 : vector<32x128xf32>
    %219 = vector.extract_strided_slice %203 {offsets = [3, 0], sizes = [1, 128], strides = [1, 1]} : vector<27x128xf32> to vector<1x128xf32>
    %220 = vector.shape_cast %219 : vector<1x128xf32> to vector<128xf32>
    %221 = vector.shape_cast %220 : vector<128xf32> to vector<1x128xf32>
    %222 = vector.broadcast %221 : vector<1x128xf32> to vector<32x128xf32>
    %223 = arith.mulf %202, %222 : vector<32x128xf32>
    %224 = vector.extract_strided_slice %203 {offsets = [4, 0], sizes = [1, 128], strides = [1, 1]} : vector<27x128xf32> to vector<1x128xf32>
    %225 = vector.shape_cast %224 : vector<1x128xf32> to vector<128xf32>
    %226 = vector.shape_cast %225 : vector<128xf32> to vector<1x128xf32>
    %227 = vector.broadcast %226 : vector<1x128xf32> to vector<32x128xf32>
    %228 = arith.mulf %202, %227 : vector<32x128xf32>
    %229 = vector.extract_strided_slice %203 {offsets = [5, 0], sizes = [1, 128], strides = [1, 1]} : vector<27x128xf32> to vector<1x128xf32>
    %230 = vector.shape_cast %229 : vector<1x128xf32> to vector<128xf32>
    %231 = vector.shape_cast %230 : vector<128xf32> to vector<1x128xf32>
    %232 = vector.broadcast %231 : vector<1x128xf32> to vector<32x128xf32>
    %233 = arith.mulf %202, %232 : vector<32x128xf32>
    %234 = vector.extract_strided_slice %203 {offsets = [6, 0], sizes = [1, 128], strides = [1, 1]} : vector<27x128xf32> to vector<1x128xf32>
    %235 = vector.shape_cast %234 : vector<1x128xf32> to vector<128xf32>
    %236 = vector.shape_cast %235 : vector<128xf32> to vector<1x128xf32>
    %237 = vector.broadcast %236 : vector<1x128xf32> to vector<32x128xf32>
    %238 = arith.mulf %202, %237 : vector<32x128xf32>
    %239 = vector.extract_strided_slice %203 {offsets = [7, 0], sizes = [1, 128], strides = [1, 1]} : vector<27x128xf32> to vector<1x128xf32>
    %240 = vector.shape_cast %239 : vector<1x128xf32> to vector<128xf32>
    %241 = vector.shape_cast %240 : vector<128xf32> to vector<1x128xf32>
    %242 = vector.broadcast %241 : vector<1x128xf32> to vector<32x128xf32>
    %243 = arith.mulf %202, %242 : vector<32x128xf32>
    %244 = vector.extract_strided_slice %203 {offsets = [8, 0], sizes = [1, 128], strides = [1, 1]} : vector<27x128xf32> to vector<1x128xf32>
    %245 = vector.shape_cast %244 : vector<1x128xf32> to vector<128xf32>
    %246 = vector.shape_cast %245 : vector<128xf32> to vector<1x128xf32>
    %247 = vector.broadcast %246 : vector<1x128xf32> to vector<32x128xf32>
    %248 = arith.mulf %202, %247 : vector<32x128xf32>
    %249 = vector.extract_strided_slice %203 {offsets = [9, 0], sizes = [1, 128], strides = [1, 1]} : vector<27x128xf32> to vector<1x128xf32>
    %250 = vector.shape_cast %249 : vector<1x128xf32> to vector<128xf32>
    %251 = vector.shape_cast %250 : vector<128xf32> to vector<1x128xf32>
    %252 = vector.broadcast %251 : vector<1x128xf32> to vector<32x128xf32>
    %253 = arith.mulf %202, %252 : vector<32x128xf32>
    %254 = vector.extract_strided_slice %203 {offsets = [10, 0], sizes = [1, 128], strides = [1, 1]} : vector<27x128xf32> to vector<1x128xf32>
    %255 = vector.shape_cast %254 : vector<1x128xf32> to vector<128xf32>
    %256 = vector.shape_cast %255 : vector<128xf32> to vector<1x128xf32>
    %257 = vector.broadcast %256 : vector<1x128xf32> to vector<32x128xf32>
    %258 = arith.mulf %202, %257 : vector<32x128xf32>
    %259 = vector.extract_strided_slice %203 {offsets = [11, 0], sizes = [1, 128], strides = [1, 1]} : vector<27x128xf32> to vector<1x128xf32>
    %260 = vector.shape_cast %259 : vector<1x128xf32> to vector<128xf32>
    %261 = vector.shape_cast %260 : vector<128xf32> to vector<1x128xf32>
    %262 = vector.broadcast %261 : vector<1x128xf32> to vector<32x128xf32>
    %263 = arith.mulf %202, %262 : vector<32x128xf32>
    %264 = vector.extract_strided_slice %203 {offsets = [12, 0], sizes = [1, 128], strides = [1, 1]} : vector<27x128xf32> to vector<1x128xf32>
    %265 = vector.shape_cast %264 : vector<1x128xf32> to vector<128xf32>
    %266 = vector.shape_cast %265 : vector<128xf32> to vector<1x128xf32>
    %267 = vector.broadcast %266 : vector<1x128xf32> to vector<32x128xf32>
    %268 = arith.mulf %202, %267 : vector<32x128xf32>
    %269 = vector.extract_strided_slice %203 {offsets = [13, 0], sizes = [1, 128], strides = [1, 1]} : vector<27x128xf32> to vector<1x128xf32>
    %270 = vector.shape_cast %269 : vector<1x128xf32> to vector<128xf32>
    %271 = vector.shape_cast %270 : vector<128xf32> to vector<1x128xf32>
    %272 = vector.broadcast %271 : vector<1x128xf32> to vector<32x128xf32>
    %273 = arith.mulf %202, %272 : vector<32x128xf32>
    %274 = vector.extract_strided_slice %203 {offsets = [14, 0], sizes = [1, 128], strides = [1, 1]} : vector<27x128xf32> to vector<1x128xf32>
    %275 = vector.shape_cast %274 : vector<1x128xf32> to vector<128xf32>
    %276 = vector.shape_cast %275 : vector<128xf32> to vector<1x128xf32>
    %277 = vector.broadcast %276 : vector<1x128xf32> to vector<32x128xf32>
    %278 = arith.mulf %202, %277 : vector<32x128xf32>
    %279 = vector.extract_strided_slice %203 {offsets = [15, 0], sizes = [1, 128], strides = [1, 1]} : vector<27x128xf32> to vector<1x128xf32>
    %280 = vector.shape_cast %279 : vector<1x128xf32> to vector<128xf32>
    %281 = vector.shape_cast %280 : vector<128xf32> to vector<1x128xf32>
    %282 = vector.broadcast %281 : vector<1x128xf32> to vector<32x128xf32>
    %283 = arith.mulf %202, %282 : vector<32x128xf32>
    %284 = vector.extract_strided_slice %203 {offsets = [16, 0], sizes = [1, 128], strides = [1, 1]} : vector<27x128xf32> to vector<1x128xf32>
    %285 = vector.shape_cast %284 : vector<1x128xf32> to vector<128xf32>
    %286 = vector.shape_cast %285 : vector<128xf32> to vector<1x128xf32>
    %287 = vector.broadcast %286 : vector<1x128xf32> to vector<32x128xf32>
    %288 = arith.mulf %202, %287 : vector<32x128xf32>
    %289 = vector.extract_strided_slice %203 {offsets = [17, 0], sizes = [1, 128], strides = [1, 1]} : vector<27x128xf32> to vector<1x128xf32>
    %290 = vector.shape_cast %289 : vector<1x128xf32> to vector<128xf32>
    %291 = vector.shape_cast %290 : vector<128xf32> to vector<1x128xf32>
    %292 = vector.broadcast %291 : vector<1x128xf32> to vector<32x128xf32>
    %293 = arith.mulf %202, %292 : vector<32x128xf32>
    %294 = vector.extract_strided_slice %203 {offsets = [18, 0], sizes = [1, 128], strides = [1, 1]} : vector<27x128xf32> to vector<1x128xf32>
    %295 = vector.shape_cast %294 : vector<1x128xf32> to vector<128xf32>
    %296 = vector.shape_cast %295 : vector<128xf32> to vector<1x128xf32>
    %297 = vector.broadcast %296 : vector<1x128xf32> to vector<32x128xf32>
    %298 = arith.mulf %202, %297 : vector<32x128xf32>
    %299 = vector.extract_strided_slice %203 {offsets = [19, 0], sizes = [1, 128], strides = [1, 1]} : vector<27x128xf32> to vector<1x128xf32>
    %300 = vector.shape_cast %299 : vector<1x128xf32> to vector<128xf32>
    %301 = vector.shape_cast %300 : vector<128xf32> to vector<1x128xf32>
    %302 = vector.broadcast %301 : vector<1x128xf32> to vector<32x128xf32>
    %303 = arith.mulf %202, %302 : vector<32x128xf32>
    %304 = vector.extract_strided_slice %203 {offsets = [20, 0], sizes = [1, 128], strides = [1, 1]} : vector<27x128xf32> to vector<1x128xf32>
    %305 = vector.shape_cast %304 : vector<1x128xf32> to vector<128xf32>
    %306 = vector.shape_cast %305 : vector<128xf32> to vector<1x128xf32>
    %307 = vector.broadcast %306 : vector<1x128xf32> to vector<32x128xf32>
    %308 = arith.mulf %202, %307 : vector<32x128xf32>
    %309 = vector.extract_strided_slice %203 {offsets = [21, 0], sizes = [1, 128], strides = [1, 1]} : vector<27x128xf32> to vector<1x128xf32>
    %310 = vector.shape_cast %309 : vector<1x128xf32> to vector<128xf32>
    %311 = vector.shape_cast %310 : vector<128xf32> to vector<1x128xf32>
    %312 = vector.broadcast %311 : vector<1x128xf32> to vector<32x128xf32>
    %313 = arith.mulf %202, %312 : vector<32x128xf32>
    %314 = vector.extract_strided_slice %203 {offsets = [22, 0], sizes = [1, 128], strides = [1, 1]} : vector<27x128xf32> to vector<1x128xf32>
    %315 = vector.shape_cast %314 : vector<1x128xf32> to vector<128xf32>
    %316 = vector.shape_cast %315 : vector<128xf32> to vector<1x128xf32>
    %317 = vector.broadcast %316 : vector<1x128xf32> to vector<32x128xf32>
    %318 = arith.mulf %202, %317 : vector<32x128xf32>
    %319 = vector.extract_strided_slice %203 {offsets = [23, 0], sizes = [1, 128], strides = [1, 1]} : vector<27x128xf32> to vector<1x128xf32>
    %320 = vector.shape_cast %319 : vector<1x128xf32> to vector<128xf32>
    %321 = vector.shape_cast %320 : vector<128xf32> to vector<1x128xf32>
    %322 = vector.broadcast %321 : vector<1x128xf32> to vector<32x128xf32>
    %323 = arith.mulf %202, %322 : vector<32x128xf32>
    %324 = vector.extract_strided_slice %203 {offsets = [24, 0], sizes = [1, 128], strides = [1, 1]} : vector<27x128xf32> to vector<1x128xf32>
    %325 = vector.shape_cast %324 : vector<1x128xf32> to vector<128xf32>
    %326 = vector.shape_cast %325 : vector<128xf32> to vector<1x128xf32>
    %327 = vector.broadcast %326 : vector<1x128xf32> to vector<32x128xf32>
    %328 = arith.mulf %202, %327 : vector<32x128xf32>
    %329 = vector.extract_strided_slice %203 {offsets = [25, 0], sizes = [1, 128], strides = [1, 1]} : vector<27x128xf32> to vector<1x128xf32>
    %330 = vector.shape_cast %329 : vector<1x128xf32> to vector<128xf32>
    %331 = vector.shape_cast %330 : vector<128xf32> to vector<1x128xf32>
    %332 = vector.broadcast %331 : vector<1x128xf32> to vector<32x128xf32>
    %333 = arith.mulf %202, %332 : vector<32x128xf32>
    %334 = vector.extract_strided_slice %203 {offsets = [26, 0], sizes = [1, 128], strides = [1, 1]} : vector<27x128xf32> to vector<1x128xf32>
    %335 = vector.shape_cast %334 : vector<1x128xf32> to vector<128xf32>
    %336 = vector.shape_cast %335 : vector<128xf32> to vector<1x128xf32>
    %337 = vector.broadcast %336 : vector<1x128xf32> to vector<32x128xf32>
    %338 = arith.mulf %202, %337 : vector<32x128xf32>
    %339 = tpu.concatenate %208, %213, %218, %223, %228, %233, %238, %243, %248, %253, %258, %263, %268, %273, %278, %283 in 0 : vector<32x128xf32>, vector<32x128xf32>, vector<32x128xf32>, vector<32x128xf32>, vector<32x128xf32>, vector<32x128xf32>, vector<32x128xf32>, vector<32x128xf32>, vector<32x128xf32>, vector<32x128xf32>, vector<32x128xf32>, vector<32x128xf32>, vector<32x128xf32>, vector<32x128xf32>, vector<32x128xf32>, vector<32x128xf32> -> vector<512x128xf32>
    %340 = tpu.concatenate %288, %293, %298, %303, %308, %313, %318, %323, %328, %333, %338 in 0 : vector<32x128xf32>, vector<32x128xf32>, vector<32x128xf32>, vector<32x128xf32>, vector<32x128xf32>, vector<32x128xf32>, vector<32x128xf32>, vector<32x128xf32>, vector<32x128xf32>, vector<32x128xf32>, vector<32x128xf32> -> vector<352x128xf32>
    %341 = tpu.concatenate %339, %340 in 0 : vector<512x128xf32>, vector<352x128xf32> -> vector<864x128xf32>
    %c0_51 = arith.constant 0 : index
    %c0_52 = arith.constant 0 : index
    %342 = vector.load %arg19[%c0_51, %c0_52] : memref<32x864xf32, #tpu.memory_space<vmem>>, vector<32x864xf32>
    %cst_53 = arith.constant dense<0.000000e+00> : vector<32x128xf32>
    %343 = tpu.matmul %342, %341, %cst_53 {dimension_numbers = #tpu.dot_dimension_numbers<[1], [0], [0], [1], [0, 0, 1, 1], [], []>} : vector<32x864xf32>, vector<864x128xf32>, vector<32x128xf32> -> vector<32x128xf32>
    %c0_54 = arith.constant 0 : index
    %c0_55 = arith.constant 0 : index
    %344 = vector.load %arg15[%c0_54, %c0_55] : memref<1x128xf32, #tpu.memory_space<vmem>>, vector<1x128xf32>
    %345 = vector.shape_cast %344 : vector<1x128xf32> to vector<128xf32>
    %346 = vector.shape_cast %345 : vector<128xf32> to vector<1x128xf32>
    %347 = vector.broadcast %346 : vector<1x128xf32> to vector<32x128xf32>
    %348 = arith.addf %343, %347 : vector<32x128xf32>
    %cst_56 = arith.constant 5.000000e-01 : f32
    %349 = vector.broadcast %cst_56 : f32 to vector<32x128xf32>
    %350 = arith.mulf %349, %348 : vector<32x128xf32>
    %cst_57 = arith.constant 0.707106769 : f32
    %351 = vector.broadcast %cst_57 : f32 to vector<32x128xf32>
    %352 = arith.mulf %348, %351 : vector<32x128xf32>
    %cst_58 = arith.constant 0.000000e+00 : f32
    %353 = vector.broadcast %cst_58 : f32 to vector<32x128xf32>
    %354 = arith.cmpf oge, %352, %353 : vector<32x128xf32>
    %cst_59 = arith.constant 1.000000e+00 : f32
    %cst_60 = arith.constant -1.000000e+00 : f32
    %355 = vector.broadcast %cst_59 : f32 to vector<32x128xf32>
    %356 = vector.broadcast %cst_60 : f32 to vector<32x128xf32>
    %357 = arith.select %354, %355, %356 : vector<32x128xi1>, vector<32x128xf32>
    %358 = math.absf %352 : vector<32x128xf32>
    %cst_61 = arith.constant 0.327591091 : f32
    %359 = vector.broadcast %cst_61 : f32 to vector<32x128xf32>
    %360 = arith.mulf %359, %358 : vector<32x128xf32>
    %cst_62 = arith.constant 1.000000e+00 : f32
    %361 = vector.broadcast %cst_62 : f32 to vector<32x128xf32>
    %362 = arith.addf %361, %360 : vector<32x128xf32>
    %cst_63 = arith.constant 1.000000e+00 : f32
    %363 = vector.broadcast %cst_63 : f32 to vector<32x128xf32>
    %364 = arith.divf %363, %362 : vector<32x128xf32>
    %cst_64 = arith.constant 1.06140542 : f32
    %365 = vector.broadcast %cst_64 : f32 to vector<32x128xf32>
    %366 = arith.mulf %365, %364 : vector<32x128xf32>
    %cst_65 = arith.constant -1.45315206 : f32
    %367 = vector.broadcast %cst_65 : f32 to vector<32x128xf32>
    %368 = arith.addf %366, %367 : vector<32x128xf32>
    %369 = arith.mulf %368, %364 : vector<32x128xf32>
    %cst_66 = arith.constant 1.42141378 : f32
    %370 = vector.broadcast %cst_66 : f32 to vector<32x128xf32>
    %371 = arith.addf %369, %370 : vector<32x128xf32>
    %372 = arith.mulf %371, %364 : vector<32x128xf32>
    %cst_67 = arith.constant -0.284496725 : f32
    %373 = vector.broadcast %cst_67 : f32 to vector<32x128xf32>
    %374 = arith.addf %372, %373 : vector<32x128xf32>
    %375 = arith.mulf %374, %364 : vector<32x128xf32>
    %cst_68 = arith.constant 0.254829586 : f32
    %376 = vector.broadcast %cst_68 : f32 to vector<32x128xf32>
    %377 = arith.addf %375, %376 : vector<32x128xf32>
    %378 = arith.mulf %377, %364 : vector<32x128xf32>
    %cst_69 = arith.constant 0.000000e+00 : f32
    %379 = vector.broadcast %cst_69 : f32 to vector<32x128xf32>
    %380 = arith.subf %379, %358 : vector<32x128xf32>
    %381 = arith.mulf %380, %358 : vector<32x128xf32>
    %382 = math.exp %381 : vector<32x128xf32>
    %383 = arith.mulf %378, %382 : vector<32x128xf32>
    %cst_70 = arith.constant 1.000000e+00 : f32
    %384 = vector.broadcast %cst_70 : f32 to vector<32x128xf32>
    %385 = arith.subf %384, %383 : vector<32x128xf32>
    %386 = arith.mulf %357, %385 : vector<32x128xf32>
    %cst_71 = arith.constant 1.000000e+00 : f32
    %387 = vector.broadcast %cst_71 : f32 to vector<32x128xf32>
    %388 = arith.addf %387, %386 : vector<32x128xf32>
    %389 = arith.mulf %350, %388 : vector<32x128xf32>
    %390 = arith.truncf %389 : vector<32x128xf32> to vector<32x128xbf16>
    %c0_72 = arith.constant 0 : index
    %c0_73 = arith.constant 0 : index
    %391 = vector.load %arg16[%c0_72, %c0_73] : memref<128x32xbf16, #tpu.memory_space<vmem>>, vector<128x32xbf16>
    %cst_74 = arith.constant dense<0.000000e+00> : vector<32x32xf32>
    %392 = tpu.matmul %390, %391, %cst_74 {dimension_numbers = #tpu.dot_dimension_numbers<[1], [0], [0], [1], [0, 0, 1, 1], [], []>} : vector<32x128xbf16>, vector<128x32xbf16>, vector<32x32xf32> -> vector<32x32xf32>
    %c0_75 = arith.constant 0 : index
    %c0_76 = arith.constant 0 : index
    %393 = vector.load %arg17[%c0_75, %c0_76] : memref<1x32xf32, #tpu.memory_space<vmem>>, vector<1x32xf32>
    %394 = vector.shape_cast %393 : vector<1x32xf32> to vector<32xf32>
    %395 = vector.shape_cast %394 : vector<32xf32> to vector<1x32xf32>
    %396 = vector.broadcast %395 : vector<1x32xf32> to vector<32x32xf32>
    %397 = arith.addf %392, %396 : vector<32x32xf32>
    %398 = arith.addf %166, %397 : vector<32x32xf32>
    %c0_77 = arith.constant 0 : index
    %c0_78 = arith.constant 0 : index
    %c0_79 = arith.constant 0 : index
    %399 = vector.load %arg20[%c0_77, %c0_78, %c0_79] : memref<1x32x32xf32, #tpu.memory_space<vmem>>, vector<1x32x32xf32>
    %400 = vector.shape_cast %399 : vector<1x32x32xf32> to vector<32x32xf32>
    %401 = vector.shape_cast %398 : vector<32x32xf32> to vector<1x32x32xf32>
    tpu.vector_store %arg20[%c0_77, %c0_78, %c0_79], %401 {strides = array<i32>} : memref<1x32x32xf32, #tpu.memory_space<vmem>>, vector<1x32x32xf32>,
    return
  }
  func.func @transform_0(%arg0: i32) -> (i32, i32, i32) {
    %c0_i32 = arith.constant 0 : i32
    %c0_i32_0 = arith.constant 0 : i32
    %c0_i32_1 = arith.constant 0 : i32
    return %arg0, %c0_i32, %c0_i32_0 : i32, i32, i32
  }
  func.func @transform_1(%arg0: i32) -> (i32, i32, i32) {
    %c0_i32 = arith.constant 0 : i32
    %c0_i32_0 = arith.constant 0 : i32
    %c0_i32_1 = arith.constant 0 : i32
    return %arg0, %c0_i32, %c0_i32_0 : i32, i32, i32
  }
  func.func @transform_2(%arg0: i32) -> (i32, i32) {
    %c0_i32 = arith.constant 0 : i32
    %c0_i32_0 = arith.constant 0 : i32
    %c0_i32_1 = arith.constant 0 : i32
    return %c0_i32, %c0_i32_0 : i32, i32
  }
  func.func @transform_3(%arg0: i32) -> (i32, i32) {
    %c0_i32 = arith.constant 0 : i32
    %c0_i32_0 = arith.constant 0 : i32
    %c0_i32_1 = arith.constant 0 : i32
    return %c0_i32, %c0_i32_0 : i32, i32
  }
  func.func @transform_4(%arg0: i32) -> (i32, i32) {
    %c0_i32 = arith.constant 0 : i32
    %c0_i32_0 = arith.constant 0 : i32
    %c0_i32_1 = arith.constant 0 : i32
    return %c0_i32, %c0_i32_0 : i32, i32
  }
  func.func @transform_5(%arg0: i32) -> (i32, i32) {
    %c0_i32 = arith.constant 0 : i32
    %c0_i32_0 = arith.constant 0 : i32
    %c0_i32_1 = arith.constant 0 : i32
    return %c0_i32, %c0_i32_0 : i32, i32
  }
  func.func @transform_6(%arg0: i32) -> (i32, i32) {
    %c0_i32 = arith.constant 0 : i32
    %c0_i32_0 = arith.constant 0 : i32
    %c0_i32_1 = arith.constant 0 : i32
    return %c0_i32, %c0_i32_0 : i32, i32
  }
  func.func @transform_7(%arg0: i32) -> (i32, i32) {
    %c0_i32 = arith.constant 0 : i32
    %c0_i32_0 = arith.constant 0 : i32
    %c0_i32_1 = arith.constant 0 : i32
    return %c0_i32, %c0_i32_0 : i32, i32
  }
  func.func @transform_8(%arg0: i32) -> (i32, i32) {
    %c0_i32 = arith.constant 0 : i32
    %c0_i32_0 = arith.constant 0 : i32
    %c0_i32_1 = arith.constant 0 : i32
    return %c0_i32, %c0_i32_0 : i32, i32
  }
  func.func @transform_9(%arg0: i32) -> (i32, i32) {
    %c0_i32 = arith.constant 0 : i32
    %c0_i32_0 = arith.constant 0 : i32
    %c0_i32_1 = arith.constant 0 : i32
    return %c0_i32, %c0_i32_0 : i32, i32
  }
  func.func @transform_10(%arg0: i32) -> (i32, i32) {
    %c0_i32 = arith.constant 0 : i32
    %c0_i32_0 = arith.constant 0 : i32
    %c0_i32_1 = arith.constant 0 : i32
    return %c0_i32, %c0_i32_0 : i32, i32
  }
  func.func @transform_11(%arg0: i32) -> (i32, i32) {
    %c0_i32 = arith.constant 0 : i32
    %c0_i32_0 = arith.constant 0 : i32
    %c0_i32_1 = arith.constant 0 : i32
    return %c0_i32, %c0_i32_0 : i32, i32
  }
  func.func @transform_12(%arg0: i32) -> (i32, i32) {
    %c0_i32 = arith.constant 0 : i32
    %c0_i32_0 = arith.constant 0 : i32
    %c0_i32_1 = arith.constant 0 : i32
    return %c0_i32, %c0_i32_0 : i32, i32
  }
  func.func @transform_13(%arg0: i32) -> (i32, i32) {
    %c0_i32 = arith.constant 0 : i32
    %c0_i32_0 = arith.constant 0 : i32
    %c0_i32_1 = arith.constant 0 : i32
    return %c0_i32, %c0_i32_0 : i32, i32
  }
  func.func @transform_14(%arg0: i32) -> (i32, i32) {
    %c0_i32 = arith.constant 0 : i32
    %c0_i32_0 = arith.constant 0 : i32
    %c0_i32_1 = arith.constant 0 : i32
    return %c0_i32, %c0_i32_0 : i32, i32
  }
  func.func @transform_15(%arg0: i32) -> (i32, i32) {
    %c0_i32 = arith.constant 0 : i32
    %c0_i32_0 = arith.constant 0 : i32
    %c0_i32_1 = arith.constant 0 : i32
    return %c0_i32, %c0_i32_0 : i32, i32
  }
  func.func @transform_16(%arg0: i32) -> (i32, i32) {
    %c0_i32 = arith.constant 0 : i32
    %c0_i32_0 = arith.constant 0 : i32
    %c0_i32_1 = arith.constant 0 : i32
    return %c0_i32, %c0_i32_0 : i32, i32
  }
  func.func @transform_17(%arg0: i32) -> (i32, i32) {
    %c0_i32 = arith.constant 0 : i32
    %c0_i32_0 = arith.constant 0 : i32
    %c0_i32_1 = arith.constant 0 : i32
    return %c0_i32, %c0_i32_0 : i32, i32
  }
  func.func @transform_18(%arg0: i32) -> (i32, i32) {
    %c0_i32 = arith.constant 0 : i32
    %c0_i32_0 = arith.constant 0 : i32
    %c0_i32_1 = arith.constant 0 : i32
    return %c0_i32, %c0_i32_0 : i32, i32
  }
  func.func @transform_19(%arg0: i32) -> (i32, i32, i32) {
    %c0_i32 = arith.constant 0 : i32
    %c0_i32_0 = arith.constant 0 : i32
    %c0_i32_1 = arith.constant 0 : i32
    return %arg0, %c0_i32, %c0_i32_0 : i32, i32, i32
  }
}

</mosaic_0001>

<llo_original>
// kernel: tpu_custom_call.1
$region0: #{tpu_custom_call.1}
  #allocation0 [shape = 'u32[]', space=smem, size = 0x4, offset = 0x4, fixed_abs, tag = 'smem constant byte address 0x4 - core index']
  #allocation1 [shape = 'u32[144,128]{1,0:T(1,128)}', space=vmem, size = 0x12000, scoped, tag = 'internal scratch']
  %s0 = inlined_call_operand.vmem [shape: f32[2,32,32], index: 0, kind: input, shape index: {}]
  %s1 = inlined_call_operand.hbm [shape: f32[2,32,32], index: 1, kind: input, shape index: {}]
  %s2 = inlined_call_operand.vmem [shape: f32[1,32], index: 2, kind: input, shape index: {}]
  %s3 = inlined_call_operand.hbm [shape: f32[1,32], index: 3, kind: input, shape index: {}]
  %s4 = inlined_call_operand.hbm [shape: bf16[32,32], index: 4, kind: input, shape index: {}]
  %s5 = inlined_call_operand.hbm [shape: bf16[32,32], index: 5, kind: input, shape index: {}]
  %s6 = inlined_call_operand.hbm [shape: bf16[32,32], index: 6, kind: input, shape index: {}]
  %s7 = inlined_call_operand.hbm [shape: bf16[32,32], index: 7, kind: input, shape index: {}]
  %s8 = inlined_call_operand.hbm [shape: f32[1,32], index: 8, kind: input, shape index: {}]
  %s9 = inlined_call_operand.hbm [shape: f32[1,32], index: 9, kind: input, shape index: {}]
  %s10 = inlined_call_operand.hbm [shape: f32[1,32], index: 10, kind: input, shape index: {}]
  %s11 = inlined_call_operand.hbm [shape: bf16[32,128], index: 11, kind: input, shape index: {}]
  %s12 = inlined_call_operand.vmem [shape: f32[1,128], index: 12, kind: input, shape index: {}]
  %s13 = inlined_call_operand.vmem [shape: f32[27,128], index: 13, kind: input, shape index: {}]
  %s14 = inlined_call_operand.vmem [shape: f32[1,128], index: 14, kind: input, shape index: {}]
  %s15 = inlined_call_operand.vmem [shape: bf16[128,32], index: 15, kind: input, shape index: {}]
  %s16 = inlined_call_operand.vmem [shape: f32[1,32], index: 16, kind: input, shape index: {}]
  %s17 = inlined_call_operand.vmem [shape: f32[8,32], index: 17, kind: input, shape index: {}]
  %s18 = inlined_call_operand.hbm [shape: f32[32,864], index: 18, kind: input, shape index: {}]
  %s19 = inlined_call_operand.hbm [shape: f32[2,32,32], index: 19, kind: output, shape index: {}]
  %s20 = sld [smem:[#allocation0]]
  $region153: #{tpu_custom_call.1} parent=0
    _
  %s22 = ssub.s32 1, %s20
  %s23 = scalar_select 0, %s22, %s20
  $region1: #{tpu_custom_call.1} parent=0
    #allocation2 [shape = 'u8[32768]{0}', space=vmem, size = 0x8000, scoped, tag = 'input window, operand 1']
    #allocation3 [shape = 's32[2]{0}', space=sflag, size = 0x8, scoped, tag = 'scoped memory for tpu_custom_call.1']
    #allocation4 [shape = 's32[2]{0}', space=sflag, size = 0x8, scoped, tag = 'scoped memory for tpu_custom_call.1']
    #allocation5 [shape = 'u8[512]{0}', space=vmem, size = 0x400, scoped, tag = 'input window, operand 3, single buffered']
    #allocation6 [shape = 's32[1]{0}', space=sflag, size = 0x4, scoped, tag = 'scoped memory for tpu_custom_call.1']
    #allocation7 [shape = 'u8[8192]{0}', space=vmem, size = 0x2000, scoped, tag = 'input window, operand 4, single buffered']
    #allocation8 [shape = 'u8[8192]{0}', space=vmem, size = 0x2000, scoped, tag = 'input window, operand 5, single buffered']
    #allocation9 [shape = 's32[1]{0}', space=sflag, size = 0x4, scoped, tag = 'scoped memory for tpu_custom_call.1']
    #allocation10 [shape = 'u8[8192]{0}', space=vmem, size = 0x2000, scoped, tag = 'input window, operand 6, single buffered']
    #allocation11 [shape = 'u8[8192]{0}', space=vmem, size = 0x2000, scoped, tag = 'input window, operand 7, single buffered']
    #allocation12 [shape = 's32[1]{0}', space=sflag, size = 0x4, scoped, tag = 'scoped memory for tpu_custom_call.1']
    #allocation13 [shape = 'u8[512]{0}', space=vmem, size = 0x400, scoped, tag = 'input window, operand 8, single buffered']
    #allocation14 [shape = 'u8[512]{0}', space=vmem, size = 0x400, scoped, tag = 'input window, operand 9, single buffered']
    #allocation15 [shape = 's32[1]{0}', space=sflag, size = 0x4, scoped, tag = 'scoped memory for tpu_custom_call.1']
    #allocation16 [shape = 'u8[512]{0}', space=vmem, size = 0x400, scoped, tag = 'input window, operand 10, single buffered']
    #allocation17 [shape = 'u8[8192]{0}', space=vmem, size = 0x2000, scoped, tag = 'input window, operand 11, single buffered']
    #allocation18 [shape = 's32[1]{0}', space=sflag, size = 0x4, scoped, tag = 'scoped memory for tpu_custom_call.1']
    #allocation19 [shape = 'u8[114688]{0}', space=vmem, size = 0x1c000, scoped, tag = 'input window, operand 18, single buffered']
    #allocation20 [shape = 'u8[32768]{0}', space=vmem, size = 0x8000, scoped, tag = 'output window, operand 0']
    %24 = vsyncpa [#allocation3], 0
    %s25 = scalar_lea.sflag [#allocation3], 1
    %26 = vsyncpa %s25, 0
    %27 = vsyncpa [#allocation6], 0
    %28 = vsyncpa [#allocation9], 0
    %29 = vsyncpa [#allocation12], 0
    %30 = vsyncpa [#allocation15], 0
    %31 = vsyncpa [#allocation18], 0
    %32 = vsyncpa [#allocation4], 0
    %s33 = scalar_lea.sflag [#allocation4], 1
    %34 = vsyncpa %s33, 0
    loop: start=0, step=1, limit=4
    $region2: #{tpu_custom_call.1} parent=1 // loop_pre_header
      _
    $region3: #{tpu_custom_call.1} parent=1 // loop_header
      %s36 = sphi 0, %s40
      %p37 = scmp.ge.s32.totalorder %s36, 4
      %s46 = sphi 0, %s48
      %s49 = sphi 0, %s46
      %s50 = sphi 0, %s49
      %s66 = sphi 0, %s50
      %s72 = sphi 0, %s74
      %s75 = sphi 0, %s72
      %s76 = sphi 0, %s75
      %s92 = sphi 0, %s76
      %s96 = sphi 0, %s96
      %s98 = sphi 0, %s96
      %s99 = sphi 0, %s98
      %s113 = sphi 0, %s99
      %s117 = sphi 0, %s117
      %s119 = sphi 0, %s117
      %s120 = sphi 0, %s119
      %s134 = sphi 0, %s120
      %s138 = sphi 0, %s138
      %s140 = sphi 0, %s138
      %s141 = sphi 0, %s140
      %s155 = sphi 0, %s141
      %s159 = sphi 0, %s159
      %s161 = sphi 0, %s159
      %s162 = sphi 0, %s161
      %s176 = sphi 0, %s162
      %s180 = sphi 0, %s180
      %s182 = sphi 0, %s180
      %s183 = sphi 0, %s182
      %s197 = sphi 0, %s183
      %s201 = sphi 0, %s201
      %s203 = sphi 0, %s201
      %s204 = sphi 0, %s203
      %s218 = sphi 0, %s204
      %s222 = sphi 0, %s222
      %s224 = sphi 0, %s222
      %s225 = sphi 0, %s224
      %s239 = sphi 0, %s225
      %s243 = sphi 0, %s243
      %s245 = sphi 0, %s243
      %s246 = sphi 0, %s245
      %s260 = sphi 0, %s246
      %s264 = sphi 0, %s264
      %s266 = sphi 0, %s264
      %s267 = sphi 0, %s266
      %s281 = sphi 0, %s267
      %s285 = sphi 0, %s285
      %s287 = sphi 0, %s285
      %s288 = sphi 0, %s287
      %s302 = sphi 0, %s288
      %s306 = sphi 0, %s306
      %s308 = sphi 0, %s306
      %s309 = sphi 0, %s308
      %s323 = sphi 0, %s309
      %s327 = sphi 0, %s327
      %s329 = sphi 0, %s327
      %s330 = sphi 0, %s329
      %s344 = sphi 0, %s330
      %s348 = sphi 0, %s348
      %s350 = sphi 0, %s348
      %s351 = sphi 0, %s350
      %s365 = sphi 0, %s351
      %s369 = sphi 0, %s369
      %s371 = sphi 0, %s369
      %s372 = sphi 0, %s371
      %s386 = sphi 0, %s372
      %s390 = sphi 0, %s390
      %s392 = sphi 0, %s390
      %s393 = sphi 0, %s392
      %s407 = sphi 0, %s393
      %s411 = sphi 0, %s411
      %s413 = sphi 0, %s411
      %s414 = sphi 0, %s413
      %s428 = sphi 0, %s414
      %s432 = sphi 0, %s432
      %s434 = sphi 0, %s432
      %s435 = sphi 0, %s434
      %s449 = sphi 0, %s435
      %s455 = sphi 0, %s457
      %s458 = sphi 0, %s455
      %s459 = sphi 0, %s458
      %s475 = sphi 0, %s459
    $region4: #{tpu_custom_call.1} parent=1 // loop_header_branch
      %39 = sbr.rel (%p37) target = $region8
    $region5: #{tpu_custom_call.1} parent=1 // loop_body
      %s41 = ssub.s32 %s36, 1
      %s42 = ssub.s32 %s36, 2
      %s43 = sadd.s32 %s36, 1
      %s44 = ssub.s32 %s36, %s43
      %p45 = scmp.eq.s32.totalorder %s44, 0
      %s47 = sadd.s32 %s46, 1
      %s48 = scalar_select %p45, %s46, %s47
      %p51 = pneg %p45
      %p52 = scmp.eq.s32.totalorder %s36, 1
      %p53 = por %p51, %p52
      %p54 = scmp.ne.s32.totalorder %s46, %s49
      %p55 = scmp.eq.s32.totalorder %s36, 0
      %p56 = por %p54, %p55
      %p57 = scmp.ne.s32.totalorder %s46, %s49
      %p58 = scmp.eq.s32.totalorder %s41, 1
      %p59 = por %p57, %p58
      %p60 = scmp.ne.s32.totalorder %s49, %s50
      %p61 = scmp.eq.s32.totalorder %s41, 0
      %p62 = por %p60, %p61
      %p63 = scmp.ne.s32.totalorder %s49, %s50
      %p64 = scmp.eq.s32.totalorder %s42, 1
      %p65 = por %p63, %p64
      %p67 = scmp.ne.s32.totalorder %s50, %s66
      %p68 = scmp.eq.s32.totalorder %s42, 0
      %p69 = por %p67, %p68
      %s70 = ssub.s32 %s36, %s43
      %p71 = scmp.eq.s32.totalorder %s70, 0
      %s73 = sadd.s32 %s72, 1
      %s74 = scalar_select %p71, %s72, %s73
      %p77 = pneg %p71
      %p78 = scmp.eq.s32.totalorder %s36, 1
      %p79 = por %p77, %p78
      %p80 = scmp.ne.s32.totalorder %s72, %s75
      %p81 = scmp.eq.s32.totalorder %s36, 0
      %p82 = por %p80, %p81
      %p83 = scmp.ne.s32.totalorder %s72, %s75
      %p84 = scmp.eq.s32.totalorder %s41, 1
      %p85 = por %p83, %p84
      %p86 = scmp.ne.s32.totalorder %s75, %s76
      %p87 = scmp.eq.s32.totalorder %s41, 0
      %p88 = por %p86, %p87
      %p89 = scmp.ne.s32.totalorder %s75, %s76
      %p90 = scmp.eq.s32.totalorder %s42, 1
      %p91 = por %p89, %p90
      %p93 = scmp.ne.s32.totalorder %s76, %s92
      %p94 = scmp.eq.s32.totalorder %s42, 0
      %p95 = por %p93, %p94
      %s97 = sadd.s32 %s96, 1
      %p100 = scmp.eq.s32.totalorder %s36, 1
      %p101 = scmp.ne.s32.totalorder %s96, %s98
      %p102 = scmp.eq.s32.totalorder %s36, 0
      %p103 = por %p101, %p102
      %p104 = scmp.ne.s32.totalorder %s96, %s98
      %p105 = scmp.eq.s32.totalorder %s41, 1
      %p106 = por %p104, %p105
      %p107 = scmp.ne.s32.totalorder %s98, %s99
      %p108 = scmp.eq.s32.totalorder %s41, 0
      %p109 = por %p107, %p108
      %p110 = scmp.ne.s32.totalorder %s98, %s99
      %p111 = scmp.eq.s32.totalorder %s42, 1
      %p112 = por %p110, %p111
      %p114 = scmp.ne.s32.totalorder %s99, %s113
      %p115 = scmp.eq.s32.totalorder %s42, 0
      %p116 = por %p114, %p115
      %s118 = sadd.s32 %s117, 1
      %p121 = scmp.eq.s32.totalorder %s36, 1
      %p122 = scmp.ne.s32.totalorder %s117, %s119
      %p123 = scmp.eq.s32.totalorder %s36, 0
      %p124 = por %p122, %p123
      %p125 = scmp.ne.s32.totalorder %s117, %s119
      %p126 = scmp.eq.s32.totalorder %s41, 1
      %p127 = por %p125, %p126
      %p128 = scmp.ne.s32.totalorder %s119, %s120
      %p129 = scmp.eq.s32.totalorder %s41, 0
      %p130 = por %p128, %p129
      %p131 = scmp.ne.s32.totalorder %s119, %s120
      %p132 = scmp.eq.s32.totalorder %s42, 1
      %p133 = por %p131, %p132
      %p135 = scmp.ne.s32.totalorder %s120, %s134
      %p136 = scmp.eq.s32.totalorder %s42, 0
      %p137 = por %p135, %p136
      %s139 = sadd.s32 %s138, 1
      %p142 = scmp.eq.s32.totalorder %s36, 1
      %p143 = scmp.ne.s32.totalorder %s138, %s140
      %p144 = scmp.eq.s32.totalorder %s36, 0
      %p145 = por %p143, %p144
      %p146 = scmp.ne.s32.totalorder %s138, %s140
      %p147 = scmp.eq.s32.totalorder %s41, 1
      %p148 = por %p146, %p147
      %p149 = scmp.ne.s32.totalorder %s140, %s141
      %p150 = scmp.eq.s32.totalorder %s41, 0
      %p151 = por %p149, %p150
      %p152 = scmp.ne.s32.totalorder %s140, %s141
      %p153 = scmp.eq.s32.totalorder %s42, 1
      %p154 = por %p152, %p153
      %p156 = scmp.ne.s32.totalorder %s141, %s155
      %p157 = scmp.eq.s32.totalorder %s42, 0
      %p158 = por %p156, %p157
      %s160 = sadd.s32 %s159, 1
      %p163 = scmp.eq.s32.totalorder %s36, 1
      %p164 = scmp.ne.s32.totalorder %s159, %s161
      %p165 = scmp.eq.s32.totalorder %s36, 0
      %p166 = por %p164, %p165
      %p167 = scmp.ne.s32.totalorder %s159, %s161
      %p168 = scmp.eq.s32.totalorder %s41, 1
      %p169 = por %p167, %p168
      %p170 = scmp.ne.s32.totalorder %s161, %s162
      %p171 = scmp.eq.s32.totalorder %s41, 0
      %p172 = por %p170, %p171
      %p173 = scmp.ne.s32.totalorder %s161, %s162
      %p174 = scmp.eq.s32.totalorder %s42, 1
      %p175 = por %p173, %p174
      %p177 = scmp.ne.s32.totalorder %s162, %s176
      %p178 = scmp.eq.s32.totalorder %s42, 0
      %p179 = por %p177, %p178
      %s181 = sadd.s32 %s180, 1
      %p184 = scmp.eq.s32.totalorder %s36, 1
      %p185 = scmp.ne.s32.totalorder %s180, %s182
      %p186 = scmp.eq.s32.totalorder %s36, 0
      %p187 = por %p185, %p186
      %p188 = scmp.ne.s32.totalorder %s180, %s182
      %p189 = scmp.eq.s32.totalorder %s41, 1
      %p190 = por %p188, %p189
      %p191 = scmp.ne.s32.totalorder %s182, %s183
      %p192 = scmp.eq.s32.totalorder %s41, 0
      %p193 = por %p191, %p192
      %p194 = scmp.ne.s32.totalorder %s182, %s183
      %p195 = scmp.eq.s32.totalorder %s42, 1
      %p196 = por %p194, %p195
      %p198 = scmp.ne.s32.totalorder %s183, %s197
      %p199 = scmp.eq.s32.totalorder %s42, 0
      %p200 = por %p198, %p199
      %s202 = sadd.s32 %s201, 1
      %p205 = scmp.eq.s32.totalorder %s36, 1
      %p206 = scmp.ne.s32.totalorder %s201, %s203
      %p207 = scmp.eq.s32.totalorder %s36, 0
      %p208 = por %p206, %p207
      %p209 = scmp.ne.s32.totalorder %s201, %s203
      %p210 = scmp.eq.s32.totalorder %s41, 1
      %p211 = por %p209, %p210
      %p212 = scmp.ne.s32.totalorder %s203, %s204
      %p213 = scmp.eq.s32.totalorder %s41, 0
      %p214 = por %p212, %p213
      %p215 = scmp.ne.s32.totalorder %s203, %s204
      %p216 = scmp.eq.s32.totalorder %s42, 1
      %p217 = por %p215, %p216
      %p219 = scmp.ne.s32.totalorder %s204, %s218
      %p220 = scmp.eq.s32.totalorder %s42, 0
      %p221 = por %p219, %p220
      %s223 = sadd.s32 %s222, 1
      %p226 = scmp.eq.s32.totalorder %s36, 1
      %p227 = scmp.ne.s32.totalorder %s222, %s224
      %p228 = scmp.eq.s32.totalorder %s36, 0
      %p229 = por %p227, %p228
      %p230 = scmp.ne.s32.totalorder %s222, %s224
      %p231 = scmp.eq.s32.totalorder %s41, 1
      %p232 = por %p230, %p231
      %p233 = scmp.ne.s32.totalorder %s224, %s225
      %p234 = scmp.eq.s32.totalorder %s41, 0
      %p235 = por %p233, %p234
      %p236 = scmp.ne.s32.totalorder %s224, %s225
      %p237 = scmp.eq.s32.totalorder %s42, 1
      %p238 = por %p236, %p237
      %p240 = scmp.ne.s32.totalorder %s225, %s239
      %p241 = scmp.eq.s32.totalorder %s42, 0
      %p242 = por %p240, %p241
      %s244 = sadd.s32 %s243, 1
      %p247 = scmp.eq.s32.totalorder %s36, 1
      %p248 = scmp.ne.s32.totalorder %s243, %s245
      %p249 = scmp.eq.s32.totalorder %s36, 0
      %p250 = por %p248, %p249
      %p251 = scmp.ne.s32.totalorder %s243, %s245
      %p252 = scmp.eq.s32.totalorder %s41, 1
      %p253 = por %p251, %p252
      %p254 = scmp.ne.s32.totalorder %s245, %s246
      %p255 = scmp.eq.s32.totalorder %s41, 0
      %p256 = por %p254, %p255
      %p257 = scmp.ne.s32.totalorder %s245, %s246
      %p258 = scmp.eq.s32.totalorder %s42, 1
      %p259 = por %p257, %p258
      %p261 = scmp.ne.s32.totalorder %s246, %s260
      %p262 = scmp.eq.s32.totalorder %s42, 0
      %p263 = por %p261, %p262
      %s265 = sadd.s32 %s264, 1
      %p268 = scmp.eq.s32.totalorder %s36, 1
      %p269 = scmp.ne.s32.totalorder %s264, %s266
      %p270 = scmp.eq.s32.totalorder %s36, 0
      %p271 = por %p269, %p270
      %p272 = scmp.ne.s32.totalorder %s264, %s266
      %p273 = scmp.eq.s32.totalorder %s41, 1
      %p274 = por %p272, %p273
      %p275 = scmp.ne.s32.totalorder %s266, %s267
      %p276 = scmp.eq.s32.totalorder %s41, 0
      %p277 = por %p275, %p276
      %p278 = scmp.ne.s32.totalorder %s266, %s267
      %p279 = scmp.eq.s32.totalorder %s42, 1
      %p280 = por %p278, %p279
      %p282 = scmp.ne.s32.totalorder %s267, %s281
      %p283 = scmp.eq.s32.totalorder %s42, 0
      %p284 = por %p282, %p283
      %s286 = sadd.s32 %s285, 1
      %p289 = scmp.eq.s32.totalorder %s36, 1
      %p290 = scmp.ne.s32.totalorder %s285, %s287
      %p291 = scmp.eq.s32.totalorder %s36, 0
      %p292 = por %p290, %p291
      %p293 = scmp.ne.s32.totalorder %s285, %s287
      %p294 = scmp.eq.s32.totalorder %s41, 1
      %p295 = por %p293, %p294
      %p296 = scmp.ne.s32.totalorder %s287, %s288
      %p297 = scmp.eq.s32.totalorder %s41, 0
      %p298 = por %p296, %p297
      %p299 = scmp.ne.s32.totalorder %s287, %s288
      %p300 = scmp.eq.s32.totalorder %s42, 1
      %p301 = por %p299, %p300
      %p303 = scmp.ne.s32.totalorder %s288, %s302
      %p304 = scmp.eq.s32.totalorder %s42, 0
      %p305 = por %p303, %p304
      %s307 = sadd.s32 %s306, 1
      %p310 = scmp.eq.s32.totalorder %s36, 1
      %p311 = scmp.ne.s32.totalorder %s306, %s308
      %p312 = scmp.eq.s32.totalorder %s36, 0
      %p313 = por %p311, %p312
      %p314 = scmp.ne.s32.totalorder %s306, %s308
      %p315 = scmp.eq.s32.totalorder %s41, 1
      %p316 = por %p314, %p315
      %p317 = scmp.ne.s32.totalorder %s308, %s309
      %p318 = scmp.eq.s32.totalorder %s41, 0
      %p319 = por %p317, %p318
      %p320 = scmp.ne.s32.totalorder %s308, %s309
      %p321 = scmp.eq.s32.totalorder %s42, 1
      %p322 = por %p320, %p321
      %p324 = scmp.ne.s32.totalorder %s309, %s323
      %p325 = scmp.eq.s32.totalorder %s42, 0
      %p326 = por %p324, %p325
      %s328 = sadd.s32 %s327, 1
      %p331 = scmp.eq.s32.totalorder %s36, 1
      %p332 = scmp.ne.s32.totalorder %s327, %s329
      %p333 = scmp.eq.s32.totalorder %s36, 0
      %p334 = por %p332, %p333
      %p335 = scmp.ne.s32.totalorder %s327, %s329
      %p336 = scmp.eq.s32.totalorder %s41, 1
      %p337 = por %p335, %p336
      %p338 = scmp.ne.s32.totalorder %s329, %s330
      %p339 = scmp.eq.s32.totalorder %s41, 0
      %p340 = por %p338, %p339
      %p341 = scmp.ne.s32.totalorder %s329, %s330
      %p342 = scmp.eq.s32.totalorder %s42, 1
      %p343 = por %p341, %p342
      %p345 = scmp.ne.s32.totalorder %s330, %s344
      %p346 = scmp.eq.s32.totalorder %s42, 0
      %p347 = por %p345, %p346
      %s349 = sadd.s32 %s348, 1
      %p352 = scmp.eq.s32.totalorder %s36, 1
      %p353 = scmp.ne.s32.totalorder %s348, %s350
      %p354 = scmp.eq.s32.totalorder %s36, 0
      %p355 = por %p353, %p354
      %p356 = scmp.ne.s32.totalorder %s348, %s350
      %p357 = scmp.eq.s32.totalorder %s41, 1
      %p358 = por %p356, %p357
      %p359 = scmp.ne.s32.totalorder %s350, %s351
      %p360 = scmp.eq.s32.totalorder %s41, 0
      %p361 = por %p359, %p360
      %p362 = scmp.ne.s32.totalorder %s350, %s351
      %p363 = scmp.eq.s32.totalorder %s42, 1
      %p364 = por %p362, %p363
      %p366 = scmp.ne.s32.totalorder %s351, %s365
      %p367 = scmp.eq.s32.totalorder %s42, 0
      %p368 = por %p366, %p367
      %s370 = sadd.s32 %s369, 1
      %p373 = scmp.eq.s32.totalorder %s36, 1
      %p374 = scmp.ne.s32.totalorder %s369, %s371
      %p375 = scmp.eq.s32.totalorder %s36, 0
      %p376 = por %p374, %p375
      %p377 = scmp.ne.s32.totalorder %s369, %s371
      %p378 = scmp.eq.s32.totalorder %s41, 1
      %p379 = por %p377, %p378
      %p380 = scmp.ne.s32.totalorder %s371, %s372
      %p381 = scmp.eq.s32.totalorder %s41, 0
      %p382 = por %p380, %p381
      %p383 = scmp.ne.s32.totalorder %s371, %s372
      %p384 = scmp.eq.s32.totalorder %s42, 1
      %p385 = por %p383, %p384
      %p387 = scmp.ne.s32.totalorder %s372, %s386
      %p388 = scmp.eq.s32.totalorder %s42, 0
      %p389 = por %p387, %p388
      %s391 = sadd.s32 %s390, 1
      %p394 = scmp.eq.s32.totalorder %s36, 1
      %p395 = scmp.ne.s32.totalorder %s390, %s392
      %p396 = scmp.eq.s32.totalorder %s36, 0
      %p397 = por %p395, %p396
      %p398 = scmp.ne.s32.totalorder %s390, %s392
      %p399 = scmp.eq.s32.totalorder %s41, 1
      %p400 = por %p398, %p399
      %p401 = scmp.ne.s32.totalorder %s392, %s393
      %p402 = scmp.eq.s32.totalorder %s41, 0
      %p403 = por %p401, %p402
      %p404 = scmp.ne.s32.totalorder %s392, %s393
      %p405 = scmp.eq.s32.totalorder %s42, 1
      %p406 = por %p404, %p405
      %p408 = scmp.ne.s32.totalorder %s393, %s407
      %p409 = scmp.eq.s32.totalorder %s42, 0
      %p410 = por %p408, %p409
      %s412 = sadd.s32 %s411, 1
      %p415 = scmp.eq.s32.totalorder %s36, 1
      %p416 = scmp.ne.s32.totalorder %s411, %s413
      %p417 = scmp.eq.s32.totalorder %s36, 0
      %p418 = por %p416, %p417
      %p419 = scmp.ne.s32.totalorder %s411, %s413
      %p420 = scmp.eq.s32.totalorder %s41, 1
      %p421 = por %p419, %p420
      %p422 = scmp.ne.s32.totalorder %s413, %s414
      %p423 = scmp.eq.s32.totalorder %s41, 0
      %p424 = por %p422, %p423
      %p425 = scmp.ne.s32.totalorder %s413, %s414
      %p426 = scmp.eq.s32.totalorder %s42, 1
      %p427 = por %p425, %p426
      %p429 = scmp.ne.s32.totalorder %s414, %s428
      %p430 = scmp.eq.s32.totalorder %s42, 0
      %p431 = por %p429, %p430
      %s433 = sadd.s32 %s432, 1
      %p436 = scmp.eq.s32.totalorder %s36, 1
      %p437 = scmp.ne.s32.totalorder %s432, %s434
      %p438 = scmp.eq.s32.totalorder %s36, 0
      %p439 = por %p437, %p438
      %p440 = scmp.ne.s32.totalorder %s432, %s434
      %p441 = scmp.eq.s32.totalorder %s41, 1
      %p442 = por %p440, %p441
      %p443 = scmp.ne.s32.totalorder %s434, %s435
      %p444 = scmp.eq.s32.totalorder %s41, 0
      %p445 = por %p443, %p444
      %p446 = scmp.ne.s32.totalorder %s434, %s435
      %p447 = scmp.eq.s32.totalorder %s42, 1
      %p448 = por %p446, %p447
      %p450 = scmp.ne.s32.totalorder %s435, %s449
      %p451 = scmp.eq.s32.totalorder %s42, 0
      %p452 = por %p450, %p451
      %s453 = ssub.s32 %s36, %s43
      %p454 = scmp.eq.s32.totalorder %s453, 0
      %s456 = sadd.s32 %s455, 1
      %s457 = scalar_select %p454, %s455, %s456
      %p460 = pneg %p454
      %p461 = scmp.eq.s32.totalorder %s36, 1
      %p462 = por %p460, %p461
      %p463 = scmp.ne.s32.totalorder %s455, %s458
      %p464 = scmp.eq.s32.totalorder %s36, 0
      %p465 = por %p463, %p464
      %p466 = scmp.ne.s32.totalorder %s455, %s458
      %p467 = scmp.eq.s32.totalorder %s41, 1
      %p468 = por %p466, %p467
      %p469 = scmp.ne.s32.totalorder %s458, %s459
      %p470 = scmp.eq.s32.totalorder %s41, 0
      %p471 = por %p469, %p470
      %p472 = scmp.ne.s32.totalorder %s458, %s459
      %p473 = scmp.eq.s32.totalorder %s42, 1
      %p474 = por %p472, %p473
      %p476 = scmp.ne.s32.totalorder %s459, %s475
      %p477 = scmp.eq.s32.totalorder %s42, 0
      %p478 = por %p476, %p477
      %p479 = scmp.le.s32.totalorder 1, %s36
      %p480 = scmp.lt.s32.totalorder %s36, 3
      %p481 = pnand %p479, %p480
      %p482 = pneg %p481
      // Predicated region
      $region9: #{tpu_custom_call.1} parent=5 // pred_check
        _
      $region10: #{tpu_custom_call.1} parent=5 // pred_check_branch
        %484 = sbr.rel (%p481) target = $region12
      $region11: #{tpu_custom_call.1} parent=5 // pred_region
        %s485 = ssub.s32 %s36, 1
        // Predicated region
        $region13: #{tpu_custom_call.1} parent=11 // pred_check
          %p486 = pneg %p109
        $region14: #{tpu_custom_call.1} parent=11 // pred_check_branch
          %488 = sbr.rel (%p486) target = $region16
        $region15: #{tpu_custom_call.1} parent=11 // pred_region
          _
        $region16: #{tpu_custom_call.1} parent=11 // pred_fallthru
          _
        // Predicated region
        $region17: #{tpu_custom_call.1} parent=11 // pred_check
          %p489 = pneg %p130
        $region18: #{tpu_custom_call.1} parent=11 // pred_check_branch
          %491 = sbr.rel (%p489) target = $region20
        $region19: #{tpu_custom_call.1} parent=11 // pred_region
          %s493 = ssub.s32 16, 16
          %494 = vsyncadd [#allocation6], %s493
          %s496 = sshll.u32 [#allocation5], 4
          %s497 = int_to_ptr.vmem [resolvable:$true] %s496
          %499 = dma.hbm_to_vmem [thread:$0]  %s3, 16, %s497, [#allocation6]
        $region20: #{tpu_custom_call.1} parent=11 // pred_fallthru
          _
        // Predicated region
        $region21: #{tpu_custom_call.1} parent=11 // pred_check
          %p500 = pneg %p151
        $region22: #{tpu_custom_call.1} parent=11 // pred_check_branch
          %502 = sbr.rel (%p500) target = $region24
        $region23: #{tpu_custom_call.1} parent=11 // pred_region
          %s504 = ssub.s32 256, 256
          %505 = vsyncadd [#allocation6], %s504
          %s506 = sshll.u32 [#allocation7], 4
          %s507 = int_to_ptr.vmem [resolvable:$true] %s506
          %512 = dma.hbm_to_vmem [thread:$0]  %s4, 256, %s507, [#allocation6], 64, 64, 4
        $region24: #{tpu_custom_call.1} parent=11 // pred_fallthru
          _
        // Predicated region
        $region25: #{tpu_custom_call.1} parent=11 // pred_check
          %p513 = pneg %p172
        $region26: #{tpu_custom_call.1} parent=11 // pred_check_branch
          %515 = sbr.rel (%p513) target = $region28
        $region27: #{tpu_custom_call.1} parent=11 // pred_region
          %s517 = ssub.s32 256, 256
          %518 = vsyncadd [#allocation9], %s517
          %s519 = sshll.u32 [#allocation8], 4
          %s520 = int_to_ptr.vmem [resolvable:$true] %s519
          %525 = dma.hbm_to_vmem [thread:$0]  %s5, 256, %s520, [#allocation9], 64, 64, 4
        $region28: #{tpu_custom_call.1} parent=11 // pred_fallthru
          _
        // Predicated region
        $region29: #{tpu_custom_call.1} parent=11 // pred_check
          %p526 = pneg %p193
        $region30: #{tpu_custom_call.1} parent=11 // pred_check_branch
          %528 = sbr.rel (%p526) target = $region32
        $region31: #{tpu_custom_call.1} parent=11 // pred_region
          %s530 = ssub.s32 256, 256
          %531 = vsyncadd [#allocation9], %s530
          %s532 = sshll.u32 [#allocation10], 4
          %s533 = int_to_ptr.vmem [resolvable:$true] %s532
          %538 = dma.hbm_to_vmem [thread:$0]  %s6, 256, %s533, [#allocation9], 64, 64, 4
        $region32: #{tpu_custom_call.1} parent=11 // pred_fallthru
          _
        // Predicated region
        $region33: #{tpu_custom_call.1} parent=11 // pred_check
          %p539 = pneg %p214
        $region34: #{tpu_custom_call.1} parent=11 // pred_check_branch
          %541 = sbr.rel (%p539) target = $region36
        $region35: #{tpu_custom_call.1} parent=11 // pred_region
          %s543 = ssub.s32 256, 256
          %544 = vsyncadd [#allocation12], %s543
          %s545 = sshll.u32 [#allocation11], 4
          %s546 = int_to_ptr.vmem [resolvable:$true] %s545
          %551 = dma.hbm_to_vmem [thread:$0]  %s7, 256, %s546, [#allocation12], 64, 64, 4
        $region36: #{tpu_custom_call.1} parent=11 // pred_fallthru
          _
        // Predicated region
        $region37: #{tpu_custom_call.1} parent=11 // pred_check
          %p552 = pneg %p235
        $region38: #{tpu_custom_call.1} parent=11 // pred_check_branch
          %554 = sbr.rel (%p552) target = $region40
        $region39: #{tpu_custom_call.1} parent=11 // pred_region
          %s556 = ssub.s32 16, 16
          %557 = vsyncadd [#allocation12], %s556
          %s559 = sshll.u32 [#allocation13], 4
          %s560 = int_to_ptr.vmem [resolvable:$true] %s559
          %562 = dma.hbm_to_vmem [thread:$0]  %s8, 16, %s560, [#allocation12]
        $region40: #{tpu_custom_call.1} parent=11 // pred_fallthru
          _
        // Predicated region
        $region41: #{tpu_custom_call.1} parent=11 // pred_check
          %p563 = pneg %p256
        $region42: #{tpu_custom_call.1} parent=11 // pred_check_branch
          %565 = sbr.rel (%p563) target = $region44
        $region43: #{tpu_custom_call.1} parent=11 // pred_region
          %s567 = ssub.s32 16, 16
          %568 = vsyncadd [#allocation15], %s567
          %s570 = sshll.u32 [#allocation14], 4
          %s571 = int_to_ptr.vmem [resolvable:$true] %s570
          %573 = dma.hbm_to_vmem [thread:$0]  %s9, 16, %s571, [#allocation15]
        $region44: #{tpu_custom_call.1} parent=11 // pred_fallthru
          _
        // Predicated region
        $region45: #{tpu_custom_call.1} parent=11 // pred_check
          %p574 = pneg %p277
        $region46: #{tpu_custom_call.1} parent=11 // pred_check_branch
          %576 = sbr.rel (%p574) target = $region48
        $region47: #{tpu_custom_call.1} parent=11 // pred_region
          %s578 = ssub.s32 16, 16
          %579 = vsyncadd [#allocation15], %s578
          %s581 = sshll.u32 [#allocation16], 4
          %s582 = int_to_ptr.vmem [resolvable:$true] %s581
          %584 = dma.hbm_to_vmem [thread:$0]  %s10, 16, %s582, [#allocation15]
        $region48: #{tpu_custom_call.1} parent=11 // pred_fallthru
          _
        // Predicated region
        $region49: #{tpu_custom_call.1} parent=11 // pred_check
          %p585 = pneg %p298
        $region50: #{tpu_custom_call.1} parent=11 // pred_check_branch
          %587 = sbr.rel (%p585) target = $region52
        $region51: #{tpu_custom_call.1} parent=11 // pred_region
          %s589 = ssub.s32 256, 256
          %590 = vsyncadd [#allocation18], %s589
          %s591 = sshll.u32 [#allocation17], 4
          %s592 = int_to_ptr.vmem [resolvable:$true] %s591
          %597 = dma.hbm_to_vmem [thread:$0]  %s11, 256, %s592, [#allocation18], 64, 64, 4
        $region52: #{tpu_custom_call.1} parent=11 // pred_fallthru
          _
        // Predicated region
        $region53: #{tpu_custom_call.1} parent=11 // pred_check
          %p598 = pneg %p319
        $region54: #{tpu_custom_call.1} parent=11 // pred_check_branch
          %600 = sbr.rel (%p598) target = $region56
        $region55: #{tpu_custom_call.1} parent=11 // pred_region
          _
        $region56: #{tpu_custom_call.1} parent=11 // pred_fallthru
          _
        // Predicated region
        $region57: #{tpu_custom_call.1} parent=11 // pred_check
          %p601 = pneg %p340
        $region58: #{tpu_custom_call.1} parent=11 // pred_check_branch
          %603 = sbr.rel (%p601) target = $region60
        $region59: #{tpu_custom_call.1} parent=11 // pred_region
          _
        $region60: #{tpu_custom_call.1} parent=11 // pred_fallthru
          _
        // Predicated region
        $region61: #{tpu_custom_call.1} parent=11 // pred_check
          %p604 = pneg %p361
        $region62: #{tpu_custom_call.1} parent=11 // pred_check_branch
          %606 = sbr.rel (%p604) target = $region64
        $region63: #{tpu_custom_call.1} parent=11 // pred_region
          _
        $region64: #{tpu_custom_call.1} parent=11 // pred_fallthru
          _
        // Predicated region
        $region65: #{tpu_custom_call.1} parent=11 // pred_check
          %p607 = pneg %p382
        $region66: #{tpu_custom_call.1} parent=11 // pred_check_branch
          %609 = sbr.rel (%p607) target = $region68
        $region67: #{tpu_custom_call.1} parent=11 // pred_region
          _
        $region68: #{tpu_custom_call.1} parent=11 // pred_fallthru
          _
        // Predicated region
        $region69: #{tpu_custom_call.1} parent=11 // pred_check
          %p610 = pneg %p403
        $region70: #{tpu_custom_call.1} parent=11 // pred_check_branch
          %612 = sbr.rel (%p610) target = $region72
        $region71: #{tpu_custom_call.1} parent=11 // pred_region
          _
        $region72: #{tpu_custom_call.1} parent=11 // pred_fallthru
          _
        // Predicated region
        $region73: #{tpu_custom_call.1} parent=11 // pred_check
          %p613 = pneg %p424
        $region74: #{tpu_custom_call.1} parent=11 // pred_check_branch
          %615 = sbr.rel (%p613) target = $region76
        $region75: #{tpu_custom_call.1} parent=11 // pred_region
          _
        $region76: #{tpu_custom_call.1} parent=11 // pred_fallthru
          _
        // Predicated region
        $region77: #{tpu_custom_call.1} parent=11 // pred_check
          %p616 = pneg %p445
        $region78: #{tpu_custom_call.1} parent=11 // pred_check_branch
          %618 = sbr.rel (%p616) target = $region80
        $region79: #{tpu_custom_call.1} parent=11 // pred_region
          %s620 = ssub.s32 3584, 3584
          %621 = vsyncadd [#allocation18], %s620
          %s622 = sshll.u32 [#allocation19], 4
          %s623 = int_to_ptr.vmem [resolvable:$true] %s622
          %628 = dma.hbm_to_vmem [thread:$0]  %s18, 3584, %s623, [#allocation18], 896, 896, 56
        $region80: #{tpu_custom_call.1} parent=11 // pred_fallthru
          _
      $region12: #{tpu_custom_call.1} parent=5 // pred_fallthru
        _
      %p629 = scmp.lt.s32.totalorder %s36, 2
      // Predicated region
      $region81: #{tpu_custom_call.1} parent=5 // pred_check
        %p630 = pneg %p629
      $region82: #{tpu_custom_call.1} parent=5 // pred_check_branch
        %632 = sbr.rel (%p630) target = $region84
      $region83: #{tpu_custom_call.1} parent=5 // pred_region
        // Predicated region
        $region85: #{tpu_custom_call.1} parent=83 // pred_check
          %p633 = pneg %p56
        $region86: #{tpu_custom_call.1} parent=83 // pred_check_branch
          %635 = sbr.rel (%p633) target = $region88
        $region87: #{tpu_custom_call.1} parent=83 // pred_region
          %p636 = scmp.lt.s32.totalorder %s36, 1
          %s637 = scalar_select %p636, %s36, 1
          %s638 = smul.addr %s637, 4
          %s639 = smul.addr %s638, 8
          %s640 = scalar_lea.vmem %s0, %s639
        $region88: #{tpu_custom_call.1} parent=83 // pred_fallthru
          _
        // Predicated region
        $region89: #{tpu_custom_call.1} parent=83 // pred_check
          %p641 = pneg %p82
        $region90: #{tpu_custom_call.1} parent=83 // pred_check_branch
          %643 = sbr.rel (%p641) target = $region92
        $region91: #{tpu_custom_call.1} parent=83 // pred_region
          %s644 = sand.u32 %s72, 1
          %s645 = scalar_lea.sflag [#allocation3], %s644
          %s646 = sand.u32 %s72, 1
          %s647 = smul.addr %s646, 32
          %s648 = scalar_lea.vmem [#allocation2], %s647
          %s650 = ssub.s32 512, 512
          %651 = vsyncadd %s645, %s650
          %s652 = smul.addr %s36, 4
          %s653 = smul.addr %s652, 128
          %s654 = scalar_lea.hbm %s1, %s653
          %s655 = sshll.u32 %s648, 4
          %s656 = int_to_ptr.vmem [resolvable:$true] %s655
          %661 = dma.hbm_to_vmem [thread:$0]  %s654, 512, %s656, %s645, 128, 128, 8
        $region92: #{tpu_custom_call.1} parent=83 // pred_fallthru
          _
      $region84: #{tpu_custom_call.1} parent=5 // pred_fallthru
        _
      %p662 = scmp.le.s32.totalorder 1, %s36
      %p663 = scmp.lt.s32.totalorder %s36, 3
      %p664 = pnand %p662, %p663
      %p665 = pneg %p664
      // Predicated region
      $region93: #{tpu_custom_call.1} parent=5 // pred_check
        _
      $region94: #{tpu_custom_call.1} parent=5 // pred_check_branch
        %667 = sbr.rel (%p664) target = $region96
      $region95: #{tpu_custom_call.1} parent=5 // pred_region
        %s668 = ssub.s32 %s36, 1
        %s669 = sand.u32 %s75, 1
        %s670 = scalar_lea.sflag [#allocation3], %s669
        %s671 = sand.u32 %s75, 1
        %s672 = smul.addr %s671, 32
        %s673 = scalar_lea.vmem [#allocation2], %s672
        // Predicated region
        $region97: #{tpu_custom_call.1} parent=95 // pred_check
          %p674 = pneg %p88
        $region98: #{tpu_custom_call.1} parent=95 // pred_check_branch
          %676 = sbr.rel (%p674) target = $region100
        $region99: #{tpu_custom_call.1} parent=95 // pred_region
          %677 = dma.done %s670, 512
        $region100: #{tpu_custom_call.1} parent=95 // pred_fallthru
          _
        // Predicated region
        $region101: #{tpu_custom_call.1} parent=95 // pred_check
          %p678 = pneg %p130
        $region102: #{tpu_custom_call.1} parent=95 // pred_check_branch
          %680 = sbr.rel (%p678) target = $region104
        $region103: #{tpu_custom_call.1} parent=95 // pred_region
          %681 = dma.done [#allocation6], 16
        $region104: #{tpu_custom_call.1} parent=95 // pred_fallthru
          _
        // Predicated region
        $region105: #{tpu_custom_call.1} parent=95 // pred_check
          %p682 = pneg %p151
        $region106: #{tpu_custom_call.1} parent=95 // pred_check_branch
          %684 = sbr.rel (%p682) target = $region108
        $region107: #{tpu_custom_call.1} parent=95 // pred_region
          %685 = dma.done [#allocation6], 256
        $region108: #{tpu_custom_call.1} parent=95 // pred_fallthru
          _
        // Predicated region
        $region109: #{tpu_custom_call.1} parent=95 // pred_check
          %p686 = pneg %p172
        $region110: #{tpu_custom_call.1} parent=95 // pred_check_branch
          %688 = sbr.rel (%p686) target = $region112
        $region111: #{tpu_custom_call.1} parent=95 // pred_region
          %689 = dma.done [#allocation9], 256
        $region112: #{tpu_custom_call.1} parent=95 // pred_fallthru
          _
        // Predicated region
        $region113: #{tpu_custom_call.1} parent=95 // pred_check
          %p690 = pneg %p193
        $region114: #{tpu_custom_call.1} parent=95 // pred_check_branch
          %692 = sbr.rel (%p690) target = $region116
        $region115: #{tpu_custom_call.1} parent=95 // pred_region
          %693 = dma.done [#allocation9], 256
        $region116: #{tpu_custom_call.1} parent=95 // pred_fallthru
          _
        // Predicated region
        $region117: #{tpu_custom_call.1} parent=95 // pred_check
          %p694 = pneg %p214
        $region118: #{tpu_custom_call.1} parent=95 // pred_check_branch
          %696 = sbr.rel (%p694) target = $region120
        $region119: #{tpu_custom_call.1} parent=95 // pred_region
          %697 = dma.done [#allocation12], 256
        $region120: #{tpu_custom_call.1} parent=95 // pred_fallthru
          _
        // Predicated region
        $region121: #{tpu_custom_call.1} parent=95 // pred_check
          %p698 = pneg %p235
        $region122: #{tpu_custom_call.1} parent=95 // pred_check_branch
          %700 = sbr.rel (%p698) target = $region124
        $region123: #{tpu_custom_call.1} parent=95 // pred_region
          %701 = dma.done [#allocation12], 16
        $region124: #{tpu_custom_call.1} parent=95 // pred_fallthru
          _
        // Predicated region
        $region125: #{tpu_custom_call.1} parent=95 // pred_check
          %p702 = pneg %p256
        $region126: #{tpu_custom_call.1} parent=95 // pred_check_branch
          %704 = sbr.rel (%p702) target = $region128
        $region127: #{tpu_custom_call.1} parent=95 // pred_region
          %705 = dma.done [#allocation15], 16
        $region128: #{tpu_custom_call.1} parent=95 // pred_fallthru
          _
        // Predicated region
        $region129: #{tpu_custom_call.1} parent=95 // pred_check
          %p706 = pneg %p277
        $region130: #{tpu_custom_call.1} parent=95 // pred_check_branch
          %708 = sbr.rel (%p706) target = $region132
        $region131: #{tpu_custom_call.1} parent=95 // pred_region
          %709 = dma.done [#allocation15], 16
        $region132: #{tpu_custom_call.1} parent=95 // pred_fallthru
          _
        // Predicated region
        $region133: #{tpu_custom_call.1} parent=95 // pred_check
          %p710 = pneg %p298
        $region134: #{tpu_custom_call.1} parent=95 // pred_check_branch
          %712 = sbr.rel (%p710) target = $region136
        $region135: #{tpu_custom_call.1} parent=95 // pred_region
          %713 = dma.done [#allocation18], 256
        $region136: #{tpu_custom_call.1} parent=95 // pred_fallthru
          _
        // Predicated region
        $region137: #{tpu_custom_call.1} parent=95 // pred_check
          %p714 = pneg %p445
        $region138: #{tpu_custom_call.1} parent=95 // pred_check_branch
          %716 = sbr.rel (%p714) target = $region140
        $region139: #{tpu_custom_call.1} parent=95 // pred_region
          %717 = dma.done [#allocation18], 3584
        $region140: #{tpu_custom_call.1} parent=95 // pred_fallthru
          _
        %p718 = scmp.lt.s32.totalorder %s41, 1
        %s719 = scalar_select %p718, %s41, 1
        %s720 = smul.addr %s719, 4
        %s721 = smul.addr %s720, 8
        %s722 = scalar_lea.vmem %s0, %s721
        %p723 = pneg %p62
        %p724 = pneg %p59
        %s725 = sand.u32 %s75, 1
        %s726 = scalar_lea.sflag [#allocation3], %s725
        %s727 = sand.u32 %s75, 1
        %s728 = smul.addr %s727, 32
        %s729 = scalar_lea.vmem [#allocation2], %s728
        %p730 = pneg %p88
        %p731 = pneg %p85
        %p732 = pneg %p109
        %p733 = pneg %p106
        %p734 = pneg %p130
        %p735 = pneg %p127
        %p736 = pneg %p151
        %p737 = pneg %p148
        %p738 = pneg %p172
        %p739 = pneg %p169
        %p740 = pneg %p193
        %p741 = pneg %p190
        %p742 = pneg %p214
        %p743 = pneg %p211
        %p744 = pneg %p235
        %p745 = pneg %p232
        %p746 = pneg %p256
        %p747 = pneg %p253
        %p748 = pneg %p277
        %p749 = pneg %p274
        %p750 = pneg %p298
        %p751 = pneg %p295
        %p752 = pneg %p319
        %p753 = pneg %p316
        %p754 = pneg %p340
        %p755 = pneg %p337
        %p756 = pneg %p361
        %p757 = pneg %p358
        %p758 = pneg %p382
        %p759 = pneg %p379
        %p760 = pneg %p403
        %p761 = pneg %p400
        %p762 = pneg %p424
        %p763 = pneg %p421
        %p764 = pneg %p445
        %p765 = pneg %p442
        %p766 = pneg %p471
        %p767 = pneg %p468
        %s768 = sand.u32 %s458, 1
        %s769 = scalar_lea.sflag [#allocation4], %s768
        %s770 = sand.u32 %s458, 1
        %s771 = smul.addr %s770, 32
        %s772 = scalar_lea.vmem [#allocation20], %s771
        %p773 = scmp.lt.s32.totalorder %s41, 1
        %s774 = scalar_select %p773, %s41, 1
        %s775 = smul.addr %s774, 4
        %s776 = smul.addr %s775, 8
        %s777 = scalar_lea.vmem %s0, %s776
        %v779 = vld [vmem:[%s777] sm:$0xff]
        %v780 = vld [vmem:[%s777 + $0x8] sm:$0xff]
        %v781 = vld [vmem:[%s777 + $0x10] sm:$0xff]
        %v782 = vld [vmem:[%s777 + $0x18] sm:$0xff]
        %v783 = vld [vmem:[%s673] sm:$0xff]
        %v784 = vld [vmem:[%s673 + $0x8] sm:$0xff]
        %v785 = vld [vmem:[%s673 + $0x10] sm:$0xff]
        %v786 = vld [vmem:[%s673 + $0x18] sm:$0xff]
        %v787 = vld [vmem:[%s2] sm:$0x1]
        %v788 = vld [vmem:[#allocation5] sm:$0x1]
        %vm789 = vcmask 261120
        %v790 = vsel %vm789, %v779, 0.0
        %791 = vadd.xlane.f32.xlu0 %v790
        %v792 = vpop.xlane.xlu0 %791
        %v793 = vsel %vm789, %v780, 0.0
        %794 = vadd.xlane.f32.xlu0 %v793
        %v795 = vpop.xlane.xlu0 %794
        %v796 = vsel %vm789, %v781, 0.0
        %797 = vadd.xlane.f32.xlu0 %v796
        %v798 = vpop.xlane.xlu0 %797
        %v799 = vsel %vm789, %v782, 0.0
        %800 = vadd.xlane.f32.xlu0 %v799
        %v801 = vpop.xlane.xlu0 %800
        %v802 = vrcp.pop 32.0
        %v803 = vmul.f32 %v792, %v802
        %v804 = vmul.f32 %v795, %v802
        %v805 = vmul.f32 %v798, %v802
        %v806 = vmul.f32 %v801, %v802
        %v807 = vsub.f32 %v779, %v803
        %v808 = vsub.f32 %v780, %v804
        %v809 = vsub.f32 %v781, %v805
        %v810 = vsub.f32 %v782, %v806
        %v811 = vmul.f32 %v807, %v807
        %v812 = vmul.f32 %v808, %v808
        %v813 = vmul.f32 %v809, %v809
        %v814 = vmul.f32 %v810, %v810
        %v815 = vsel %vm789, %v811, 0.0
        %816 = vadd.xlane.f32.xlu0 %v815
        %v817 = vpop.xlane.xlu0 %816
        %v818 = vsel %vm789, %v812, 0.0
        %819 = vadd.xlane.f32.xlu0 %v818
        %v820 = vpop.xlane.xlu0 %819
        %v821 = vsel %vm789, %v813, 0.0
        %822 = vadd.xlane.f32.xlu0 %v821
        %v823 = vpop.xlane.xlu0 %822
        %v824 = vsel %vm789, %v814, 0.0
        %825 = vadd.xlane.f32.xlu0 %v824
        %v826 = vpop.xlane.xlu0 %825
        %v827 = vmul.f32 %v817, %v802
        %v828 = vmul.f32 %v820, %v802
        %v829 = vmul.f32 %v823, %v802
        %v830 = vmul.f32 %v826, %v802
        %v831 = vadd.f32 %v827, 1e-05
        %v832 = vadd.f32 %v828, 1e-05
        %v833 = vadd.f32 %v829, 1e-05
        %v834 = vadd.f32 %v830, 1e-05
        %v835 = vrsqrt.pop %v831
        %v836 = vrsqrt.pop %v832
        %v837 = vrsqrt.pop %v833
        %v838 = vrsqrt.pop %v834
        %v839 = vmul.f32 %v807, %v835
        %v840 = vmul.f32 %v808, %v836
        %v841 = vmul.f32 %v809, %v837
        %v842 = vmul.f32 %v810, %v838
        %v844 = vlaneseq
        %v845 = vshrl.u32 %v844, 7
        %v846 = vsub.s32 0, %v845
        %v847 = vrot.slane %v787, %v846
        %v849 = vmul.f32 %v839, %v847
        %v850 = vmul.f32 %v840, %v847
        %v851 = vmul.f32 %v841, %v847
        %v852 = vmul.f32 %v842, %v847
        %v854 = vlaneseq
        %v855 = vshrl.u32 %v854, 7
        %v856 = vsub.s32 0, %v855
        %v857 = vrot.slane %v788, %v856
        %v859 = vadd.f32 %v849, %v857
        %v860 = vadd.f32 %v850, %v857
        %v861 = vadd.f32 %v851, %v857
        %v862 = vadd.f32 %v852, %v857
        %v863 = vpack.c.bf16 %v784, %v783
        %v864 = vpack.c.bf16 %v786, %v785
        %v865 = vld [vmem:[#allocation7] sm:$0xf]
        %v866 = vld [vmem:[#allocation7 + $0x4] sm:$0xf]
        %v867 = vld [vmem:[#allocation7 + $0x8] sm:$0xf]
        %v868 = vld [vmem:[#allocation7 + $0xc] sm:$0xf]
        %v873 = vunpack.c.l.b16 %v865
        %v874 = vunpack.c.l.b16 %v866
        %v875 = vunpack.c.l.b16 %v867
        %v876 = vunpack.c.l.b16 %v868
        %v877 = vpack.c.b16 %v874, %v873
        %v878 = vpack.c.b16 %v876, %v875
        %v882 = vsel %vm789, %v863, 0
        %v885 = vsel %vm789, %v864, 0
        %887 = vmatprep.subr.bf16.mxu0 0
        %888 = vmatpush1.bf16.msra.mxu0 %v877
        %889 = vmatprep.subr.bf16.mxu0 0
        %890 = vmatpush1.bf16.msra.mxu0 %v878
        %891 = vmatprep.subr.bf16.mxu0 0
        %892 = vmatpush1.bf16.msra.mxu0 0
        %893 = vmatprep.subr.bf16.mxu0 0
        %894 = vmatpush1.bf16.msra.mxu0 0
        %895 = vmatprep.subr.bf16.mxu0 0
        %896 = vmatpush1.bf16.msra.mxu0 0
        %897 = vmatprep.subr.bf16.mxu0 0
        %898 = vmatpush1.bf16.msra.mxu0 0
        %899 = vmatprep.subr.bf16.mxu0 0
        %900 = vmatpush1.bf16.msra.mxu0 0
        %901 = vmatprep.subr.bf16.mxu0 0
        %902 = vmatpush1.bf16.msra.mxu0 0
        %903 = vmatprep.subr.bf16.mxu0 0
        %904 = vmatpush1.bf16.msra.mxu0 0
        %905 = vmatprep.subr.bf16.mxu0 0
        %906 = vmatpush1.bf16.msra.mxu0 0
        %907 = vmatprep.subr.bf16.mxu0 0
        %908 = vmatpush1.bf16.msra.mxu0 0
        %909 = vmatprep.subr.bf16.mxu0 0
        %910 = vmatpush1.bf16.msra.mxu0 0
        %911 = vmatprep.subr.bf16.mxu0 0
        %912 = vmatpush1.bf16.msra.mxu0 0
        %913 = vmatprep.subr.bf16.mxu0 0
        %914 = vmatpush1.bf16.msra.mxu0 0
        %915 = vmatprep.subr.bf16.mxu0 0
        %916 = vmatpush1.bf16.msra.mxu0 0
        %917 = vmatprep.subr.bf16.mxu0 0
        %918 = vmatpush1.bf16.msra.mxu0 0
        %919 = vmatprep.mubr.bf16.mxu0 0
        %920 = vmatmul.mubr.bf16.gmra.mrb[0].mxu0 %v882
        %v921 = vpop.f32.mrb[0].mxu0
        %v922 = vadd.f32 0.0, %v921
        %v923 = vpop.f32.mrb[0].mxu0
        %v924 = vpop.f32.mrb[0].mxu0
        %v925 = vadd.f32 0.0, %v924
        %v926 = vpop.f32.mrb[0].mxu0
        %927 = vmatprep.mubr.bf16.mxu0 0
        %928 = vmatmul.mubr.bf16.gmra.mrb[0].mxu0 %v885
        %v929 = vpop.f32.mrb[0].mxu0
        %v930 = vadd.f32 0.0, %v929
        %v931 = vpop.f32.mrb[0].mxu0
        %v932 = vpop.f32.mrb[0].mxu0
        %v933 = vadd.f32 0.0, %v932
        %v934 = vpop.f32.mrb[0].mxu0
        %935 = vdwg.mxu0
        %v936 = vpack.c.bf16 %v860, %v859
        %v937 = vpack.c.bf16 %v862, %v861
        %v938 = vld [vmem:[#allocation8] sm:$0xf]
        %v939 = vld [vmem:[#allocation8 + $0x4] sm:$0xf]
        %v940 = vld [vmem:[#allocation8 + $0x8] sm:$0xf]
        %v941 = vld [vmem:[#allocation8 + $0xc] sm:$0xf]
        %v946 = vunpack.c.l.b16 %v938
        %v947 = vunpack.c.l.b16 %v939
        %v948 = vunpack.c.l.b16 %v940
        %v949 = vunpack.c.l.b16 %v941
        %v950 = vpack.c.b16 %v947, %v946
        %v951 = vpack.c.b16 %v949, %v948
        %v955 = vsel %vm789, %v936, 0
        %v958 = vsel %vm789, %v937, 0
        %960 = vmatprep.subr.bf16.mxu0 0
        %961 = vmatpush1.bf16.msra.mxu0 %v950
        %962 = vmatprep.subr.bf16.mxu0 0
        %963 = vmatpush1.bf16.msra.mxu0 %v951
        %964 = vmatprep.subr.bf16.mxu0 0
        %965 = vmatpush1.bf16.msra.mxu0 0
        %966 = vmatprep.subr.bf16.mxu0 0
        %967 = vmatpush1.bf16.msra.mxu0 0
        %968 = vmatprep.subr.bf16.mxu0 0
        %969 = vmatpush1.bf16.msra.mxu0 0
        %970 = vmatprep.subr.bf16.mxu0 0
        %971 = vmatpush1.bf16.msra.mxu0 0
        %972 = vmatprep.subr.bf16.mxu0 0
        %973 = vmatpush1.bf16.msra.mxu0 0
        %974 = vmatprep.subr.bf16.mxu0 0
        %975 = vmatpush1.bf16.msra.mxu0 0
        %976 = vmatprep.subr.bf16.mxu0 0
        %977 = vmatpush1.bf16.msra.mxu0 0
        %978 = vmatprep.subr.bf16.mxu0 0
        %979 = vmatpush1.bf16.msra.mxu0 0
        %980 = vmatprep.subr.bf16.mxu0 0
        %981 = vmatpush1.bf16.msra.mxu0 0
        %982 = vmatprep.subr.bf16.mxu0 0
        %983 = vmatpush1.bf16.msra.mxu0 0
        %984 = vmatprep.subr.bf16.mxu0 0
        %985 = vmatpush1.bf16.msra.mxu0 0
        %986 = vmatprep.subr.bf16.mxu0 0
        %987 = vmatpush1.bf16.msra.mxu0 0
        %988 = vmatprep.subr.bf16.mxu0 0
        %989 = vmatpush1.bf16.msra.mxu0 0
        %990 = vmatprep.subr.bf16.mxu0 0
        %991 = vmatpush1.bf16.msra.mxu0 0
        %992 = vmatprep.mubr.bf16.mxu0 0
        %993 = vmatmul.mubr.bf16.gmra.mrb[0].mxu0 %v955
        %v994 = vpop.f32.mrb[0].mxu0
        %v995 = vadd.f32 0.0, %v994
        %v996 = vpop.f32.mrb[0].mxu0
        %v997 = vpop.f32.mrb[0].mxu0
        %v998 = vadd.f32 0.0, %v997
        %v999 = vpop.f32.mrb[0].mxu0
        %1000 = vmatprep.mubr.bf16.mxu0 0
        %1001 = vmatmul.mubr.bf16.gmra.mrb[0].mxu0 %v958
        %v1002 = vpop.f32.mrb[0].mxu0
        %v1003 = vadd.f32 0.0, %v1002
        %v1004 = vpop.f32.mrb[0].mxu0
        %v1005 = vpop.f32.mrb[0].mxu0
        %v1006 = vadd.f32 0.0, %v1005
        %v1007 = vpop.f32.mrb[0].mxu0
        %1008 = vdwg.mxu0
        %v1009 = vld [vmem:[#allocation10] sm:$0xf]
        %v1010 = vld [vmem:[#allocation10 + $0x4] sm:$0xf]
        %v1011 = vld [vmem:[#allocation10 + $0x8] sm:$0xf]
        %v1012 = vld [vmem:[#allocation10 + $0xc] sm:$0xf]
        %v1017 = vunpack.c.l.b16 %v1009
        %v1018 = vunpack.c.l.b16 %v1010
        %v1019 = vunpack.c.l.b16 %v1011
        %v1020 = vunpack.c.l.b16 %v1012
        %v1021 = vpack.c.b16 %v1018, %v1017
        %v1022 = vpack.c.b16 %v1020, %v1019
        %1025 = vmatprep.subr.bf16.mxu0 0
        %1026 = vmatpush1.bf16.msra.mxu0 %v1021
        %1027 = vmatprep.subr.bf16.mxu0 0
        %1028 = vmatpush1.bf16.msra.mxu0 %v1022
        %1029 = vmatprep.subr.bf16.mxu0 0
        %1030 = vmatpush1.bf16.msra.mxu0 0
        %1031 = vmatprep.subr.bf16.mxu0 0
        %1032 = vmatpush1.bf16.msra.mxu0 0
        %1033 = vmatprep.subr.bf16.mxu0 0
        %1034 = vmatpush1.bf16.msra.mxu0 0
        %1035 = vmatprep.subr.bf16.mxu0 0
        %1036 = vmatpush1.bf16.msra.mxu0 0
        %1037 = vmatprep.subr.bf16.mxu0 0
        %1038 = vmatpush1.bf16.msra.mxu0 0
        %1039 = vmatprep.subr.bf16.mxu0 0
        %1040 = vmatpush1.bf16.msra.mxu0 0
        %1041 = vmatprep.subr.bf16.mxu0 0
        %1042 = vmatpush1.bf16.msra.mxu0 0
        %1043 = vmatprep.subr.bf16.mxu0 0
        %1044 = vmatpush1.bf16.msra.mxu0 0
        %1045 = vmatprep.subr.bf16.mxu0 0
        %1046 = vmatpush1.bf16.msra.mxu0 0
        %1047 = vmatprep.subr.bf16.mxu0 0
        %1048 = vmatpush1.bf16.msra.mxu0 0
        %1049 = vmatprep.subr.bf16.mxu0 0
        %1050 = vmatpush1.bf16.msra.mxu0 0
        %1051 = vmatprep.subr.bf16.mxu0 0
        %1052 = vmatpush1.bf16.msra.mxu0 0
        %1053 = vmatprep.subr.bf16.mxu0 0
        %1054 = vmatpush1.bf16.msra.mxu0 0
        %1055 = vmatprep.subr.bf16.mxu0 0
        %1056 = vmatpush1.bf16.msra.mxu0 0
        %1057 = vmatprep.mubr.bf16.mxu0 0
        %1058 = vmatmul.mubr.bf16.gmra.mrb[0].mxu0 %v955
        %v1059 = vpop.f32.mrb[0].mxu0
        %v1060 = vadd.f32 0.0, %v1059
        %v1061 = vpop.f32.mrb[0].mxu0
        %v1062 = vpop.f32.mrb[0].mxu0
        %v1063 = vadd.f32 0.0, %v1062
        %v1064 = vpop.f32.mrb[0].mxu0
        %1065 = vmatprep.mubr.bf16.mxu0 0
        %1066 = vmatmul.mubr.bf16.gmra.mrb[0].mxu0 %v958
        %v1067 = vpop.f32.mrb[0].mxu0
        %v1068 = vadd.f32 0.0, %v1067
        %v1069 = vpop.f32.mrb[0].mxu0
        %v1070 = vpop.f32.mrb[0].mxu0
        %v1071 = vadd.f32 0.0, %v1070
        %v1072 = vpop.f32.mrb[0].mxu0
        %1073 = vdwg.mxu0
        %v1074 = vld [vmem:[%s17] sm:$0xff]
        %v1075 = vmul.f32 %v922, -0.5
        %v1076 = vmul.f32 %v925, -0.5
        %v1077 = vmul.f32 %v930, -0.5
        %v1078 = vmul.f32 %v933, -0.5
        %v1079 = vlaneseq
        %v1080 = vshrl.u32 %v1079, 7
        %v1081 = vsub.s32 0, %v1080
        %v1082 = vrot.slane %v1074, %v1081
        %v1083 = vmul.f32 %v1075, %v1082
        %v1084 = vmul.f32 %v1076, %v1082
        %v1085 = vmul.f32 %v1077, %v1082
        %v1086 = vmul.f32 %v1078, %v1082
        %v1087 = vlaneseq
        %v1088 = vshrl.u32 %v1087, 7
        %v1089 = vsub.s32 1, %v1088
        %v1090 = vrot.slane %v1074, %v1089
        %v1091 = vmul.f32 %v1075, %v1090
        %v1092 = vmul.f32 %v1076, %v1090
        %v1093 = vmul.f32 %v1077, %v1090
        %v1094 = vmul.f32 %v1078, %v1090
        %v1095 = vlaneseq
        %v1096 = vshrl.u32 %v1095, 7
        %v1097 = vsub.s32 2, %v1096
        %v1098 = vrot.slane %v1074, %v1097
        %v1099 = vmul.f32 %v1075, %v1098
        %v1100 = vmul.f32 %v1076, %v1098
        %v1101 = vmul.f32 %v1077, %v1098
        %v1102 = vmul.f32 %v1078, %v1098
        %v1103 = vlaneseq
        %v1104 = vshrl.u32 %v1103, 7
        %v1105 = vsub.s32 3, %v1104
        %v1106 = vrot.slane %v1074, %v1105
        %v1107 = vmul.f32 %v1075, %v1106
        %v1108 = vmul.f32 %v1076, %v1106
        %v1109 = vmul.f32 %v1077, %v1106
        %v1110 = vmul.f32 %v1078, %v1106
        %v1111 = vlaneseq
        %v1112 = vshrl.u32 %v1111, 7
        %v1113 = vsub.s32 4, %v1112
        %v1114 = vrot.slane %v1074, %v1113
        %v1115 = vmul.f32 %v1075, %v1114
        %v1116 = vmul.f32 %v1076, %v1114
        %v1117 = vmul.f32 %v1077, %v1114
        %v1118 = vmul.f32 %v1078, %v1114
        %v1119 = vlaneseq
        %v1120 = vshrl.u32 %v1119, 7
        %v1121 = vsub.s32 5, %v1120
        %v1122 = vrot.slane %v1074, %v1121
        %v1123 = vmul.f32 %v1075, %v1122
        %v1124 = vmul.f32 %v1076, %v1122
        %v1125 = vmul.f32 %v1077, %v1122
        %v1126 = vmul.f32 %v1078, %v1122
        %v1127 = vlaneseq
        %v1128 = vshrl.u32 %v1127, 7
        %v1129 = vsub.s32 6, %v1128
        %v1130 = vrot.slane %v1074, %v1129
        %v1131 = vmul.f32 %v1075, %v1130
        %v1132 = vmul.f32 %v1076, %v1130
        %v1133 = vmul.f32 %v1077, %v1130
        %v1134 = vmul.f32 %v1078, %v1130
        %v1135 = vlaneseq
        %v1136 = vshrl.u32 %v1135, 7
        %v1137 = vsub.s32 7, %v1136
        %v1138 = vrot.slane %v1074, %v1137
        %v1139 = vmul.f32 %v1075, %v1138
        %v1140 = vmul.f32 %v1076, %v1138
        %v1141 = vmul.f32 %v1077, %v1138
        %v1142 = vmul.f32 %v1078, %v1138
        %v1143 = vpack.c.bf16 %v1084, %v1083
        %v1144 = vpack.c.bf16 %v1086, %v1085
        %v1145 = vpack.c.bf16 %v1092, %v1091
        %v1146 = vpack.c.bf16 %v1094, %v1093
        %v1147 = vpack.c.bf16 %v1100, %v1099
        %v1148 = vpack.c.bf16 %v1102, %v1101
        %v1149 = vpack.c.bf16 %v1108, %v1107
        %v1150 = vpack.c.bf16 %v1110, %v1109
        %v1151 = vpack.c.bf16 %v1116, %v1115
        %v1152 = vpack.c.bf16 %v1118, %v1117
        %v1153 = vpack.c.bf16 %v1124, %v1123
        %v1154 = vpack.c.bf16 %v1126, %v1125
        %v1155 = vpack.c.bf16 %v1132, %v1131
        %v1156 = vpack.c.bf16 %v1134, %v1133
        %v1157 = vpack.c.bf16 %v1140, %v1139
        %v1158 = vpack.c.bf16 %v1142, %v1141
        %v1159 = vpack.c.bf16 %v998, %v995
        %v1160 = vpack.c.bf16 %v1006, %v1003
        %v1162 = vsel %vm789, %v1143, 0
        %v1165 = vsel %vm789, %v1144, 0
        %v1168 = vsel %vm789, %v1145, 0
        %v1171 = vsel %vm789, %v1146, 0
        %v1174 = vsel %vm789, %v1147, 0
        %v1177 = vsel %vm789, %v1148, 0
        %v1180 = vsel %vm789, %v1149, 0
        %v1183 = vsel %vm789, %v1150, 0
        %v1186 = vsel %vm789, %v1151, 0
        %v1189 = vsel %vm789, %v1152, 0
        %v1192 = vsel %vm789, %v1153, 0
        %v1195 = vsel %vm789, %v1154, 0
        %v1198 = vsel %vm789, %v1155, 0
        %v1201 = vsel %vm789, %v1156, 0
        %v1204 = vsel %vm789, %v1157, 0
        %v1207 = vsel %vm789, %v1158, 0
        %v1210 = vsel %vm789, %v1159, 0
        %v1213 = vsel %vm789, %v1160, 0
        %1215 = vmatprep.subr.bf16.mxu0 0
        %1216 = vmatpush1.bf16.xpose.msra.mxu0 %v1210
        %1217 = vmatprep.subr.bf16.mxu0 0
        %1218 = vmatpush1.bf16.xpose.msra.mxu0 %v1213
        %1219 = vmatprep.subr.bf16.mxu0 0
        %1220 = vmatpush1.bf16.xpose.msra.mxu0 0
        %1221 = vmatprep.subr.bf16.mxu0 0
        %1222 = vmatpush1.bf16.xpose.msra.mxu0 0
        %1223 = vmatprep.subr.bf16.mxu0 0
        %1224 = vmatpush1.bf16.xpose.msra.mxu0 0
        %1225 = vmatprep.subr.bf16.mxu0 0
        %1226 = vmatpush1.bf16.xpose.msra.mxu0 0
        %1227 = vmatprep.subr.bf16.mxu0 0
        %1228 = vmatpush1.bf16.xpose.msra.mxu0 0
        %1229 = vmatprep.subr.bf16.mxu0 0
        %1230 = vmatpush1.bf16.xpose.msra.mxu0 0
        %1231 = vmatprep.subr.bf16.mxu0 0
        %1232 = vmatpush1.bf16.xpose.msra.mxu0 0
        %1233 = vmatprep.subr.bf16.mxu0 0
        %1234 = vmatpush1.bf16.xpose.msra.mxu0 0
        %1235 = vmatprep.subr.bf16.mxu0 0
        %1236 = vmatpush1.bf16.xpose.msra.mxu0 0
        %1237 = vmatprep.subr.bf16.mxu0 0
        %1238 = vmatpush1.bf16.xpose.msra.mxu0 0
        %1239 = vmatprep.subr.bf16.mxu0 0
        %1240 = vmatpush1.bf16.xpose.msra.mxu0 0
        %1241 = vmatprep.subr.bf16.mxu0 0
        %1242 = vmatpush1.bf16.xpose.msra.mxu0 0
        %1243 = vmatprep.subr.bf16.mxu0 0
        %1244 = vmatpush1.bf16.xpose.msra.mxu0 0
        %1245 = vmatprep.subr.bf16.mxu0 0
        %1246 = vmatpush1.bf16.xpose.msra.mxu0 0
        %1247 = vmatprep.mubr.bf16.mxu0 0
        %1248 = vmatmul.mubr.bf16.gmra.mrb[0].mxu0 %v1162
        %v1249 = vpop.f32.mrb[0].mxu0
        %v1250 = vadd.f32 0.0, %v1249
        %v1251 = vpop.f32.mrb[0].mxu0
        %v1252 = vpop.f32.mrb[0].mxu0
        %v1253 = vadd.f32 0.0, %v1252
        %v1254 = vpop.f32.mrb[0].mxu0
        %1255 = vmatprep.mubr.bf16.mxu0 0
        %1256 = vmatmul.mubr.bf16.gmra.mrb[0].mxu0 %v1165
        %v1257 = vpop.f32.mrb[0].mxu0
        %v1258 = vadd.f32 0.0, %v1257
        %v1259 = vpop.f32.mrb[0].mxu0
        %v1260 = vpop.f32.mrb[0].mxu0
        %v1261 = vadd.f32 0.0, %v1260
        %v1262 = vpop.f32.mrb[0].mxu0
        %1263 = vmatprep.mubr.bf16.mxu0 0
        %1264 = vmatmul.mubr.bf16.gmra.mrb[0].mxu0 %v1168
        %v1265 = vpop.f32.mrb[0].mxu0
        %v1266 = vadd.f32 0.0, %v1265
        %v1267 = vpop.f32.mrb[0].mxu0
        %v1268 = vpop.f32.mrb[0].mxu0
        %v1269 = vadd.f32 0.0, %v1268
        %v1270 = vpop.f32.mrb[0].mxu0
        %1271 = vmatprep.mubr.bf16.mxu0 0
        %1272 = vmatmul.mubr.bf16.gmra.mrb[0].mxu0 %v1171
        %v1273 = vpop.f32.mrb[0].mxu0
        %v1274 = vadd.f32 0.0, %v1273
        %v1275 = vpop.f32.mrb[0].mxu0
        %v1276 = vpop.f32.mrb[0].mxu0
        %v1277 = vadd.f32 0.0, %v1276
        %v1278 = vpop.f32.mrb[0].mxu0
        %1279 = vmatprep.mubr.bf16.mxu0 0
        %1280 = vmatmul.mubr.bf16.gmra.mrb[0].mxu0 %v1174
        %v1281 = vpop.f32.mrb[0].mxu0
        %v1282 = vadd.f32 0.0, %v1281
        %v1283 = vpop.f32.mrb[0].mxu0
        %v1284 = vpop.f32.mrb[0].mxu0
        %v1285 = vadd.f32 0.0, %v1284
        %v1286 = vpop.f32.mrb[0].mxu0
        %1287 = vmatprep.mubr.bf16.mxu0 0
        %1288 = vmatmul.mubr.bf16.gmra.mrb[0].mxu0 %v1177
        %v1289 = vpop.f32.mrb[0].mxu0
        %v1290 = vadd.f32 0.0, %v1289
        %v1291 = vpop.f32.mrb[0].mxu0
        %v1292 = vpop.f32.mrb[0].mxu0
        %v1293 = vadd.f32 0.0, %v1292
        %v1294 = vpop.f32.mrb[0].mxu0
        %1295 = vmatprep.mubr.bf16.mxu0 0
        %1296 = vmatmul.mubr.bf16.gmra.mrb[0].mxu0 %v1180
        %v1297 = vpop.f32.mrb[0].mxu0
        %v1298 = vadd.f32 0.0, %v1297
        %v1299 = vpop.f32.mrb[0].mxu0
        %v1300 = vpop.f32.mrb[0].mxu0
        %v1301 = vadd.f32 0.0, %v1300
        %v1302 = vpop.f32.mrb[0].mxu0
        %1303 = vmatprep.mubr.bf16.mxu0 0
        %1304 = vmatmul.mubr.bf16.gmra.mrb[0].mxu0 %v1183
        %v1305 = vpop.f32.mrb[0].mxu0
        %v1306 = vadd.f32 0.0, %v1305
        %v1307 = vpop.f32.mrb[0].mxu0
        %v1308 = vpop.f32.mrb[0].mxu0
        %v1309 = vadd.f32 0.0, %v1308
        %v1310 = vpop.f32.mrb[0].mxu0
        %1311 = vmatprep.mubr.bf16.mxu0 0
        %1312 = vmatmul.mubr.bf16.gmra.mrb[0].mxu0 %v1186
        %v1313 = vpop.f32.mrb[0].mxu0
        %v1314 = vadd.f32 0.0, %v1313
        %v1315 = vpop.f32.mrb[0].mxu0
        %v1316 = vpop.f32.mrb[0].mxu0
        %v1317 = vadd.f32 0.0, %v1316
        %v1318 = vpop.f32.mrb[0].mxu0
        %1319 = vmatprep.mubr.bf16.mxu0 0
        %1320 = vmatmul.mubr.bf16.gmra.mrb[0].mxu0 %v1189
        %v1321 = vpop.f32.mrb[0].mxu0
        %v1322 = vadd.f32 0.0, %v1321
        %v1323 = vpop.f32.mrb[0].mxu0
        %v1324 = vpop.f32.mrb[0].mxu0
        %v1325 = vadd.f32 0.0, %v1324
        %v1326 = vpop.f32.mrb[0].mxu0
        %1327 = vmatprep.mubr.bf16.mxu0 0
        %1328 = vmatmul.mubr.bf16.gmra.mrb[0].mxu0 %v1192
        %v1329 = vpop.f32.mrb[0].mxu0
        %v1330 = vadd.f32 0.0, %v1329
        %v1331 = vpop.f32.mrb[0].mxu0
        %v1332 = vpop.f32.mrb[0].mxu0
        %v1333 = vadd.f32 0.0, %v1332
        %v1334 = vpop.f32.mrb[0].mxu0
        %1335 = vmatprep.mubr.bf16.mxu0 0
        %1336 = vmatmul.mubr.bf16.gmra.mrb[0].mxu0 %v1195
        %v1337 = vpop.f32.mrb[0].mxu0
        %v1338 = vadd.f32 0.0, %v1337
        %v1339 = vpop.f32.mrb[0].mxu0
        %v1340 = vpop.f32.mrb[0].mxu0
        %v1341 = vadd.f32 0.0, %v1340
        %v1342 = vpop.f32.mrb[0].mxu0
        %1343 = vmatprep.mubr.bf16.mxu0 0
        %1344 = vmatmul.mubr.bf16.gmra.mrb[0].mxu0 %v1198
        %v1345 = vpop.f32.mrb[0].mxu0
        %v1346 = vadd.f32 0.0, %v1345
        %v1347 = vpop.f32.mrb[0].mxu0
        %v1348 = vpop.f32.mrb[0].mxu0
        %v1349 = vadd.f32 0.0, %v1348
        %v1350 = vpop.f32.mrb[0].mxu0
        %1351 = vmatprep.mubr.bf16.mxu0 0
        %1352 = vmatmul.mubr.bf16.gmra.mrb[0].mxu0 %v1201
        %v1353 = vpop.f32.mrb[0].mxu0
        %v1354 = vadd.f32 0.0, %v1353
        %v1355 = vpop.f32.mrb[0].mxu0
        %v1356 = vpop.f32.mrb[0].mxu0
        %v1357 = vadd.f32 0.0, %v1356
        %v1358 = vpop.f32.mrb[0].mxu0
        %1359 = vmatprep.mubr.bf16.mxu0 0
        %1360 = vmatmul.mubr.bf16.gmra.mrb[0].mxu0 %v1204
        %v1361 = vpop.f32.mrb[0].mxu0
        %v1362 = vadd.f32 0.0, %v1361
        %v1363 = vpop.f32.mrb[0].mxu0
        %v1364 = vpop.f32.mrb[0].mxu0
        %v1365 = vadd.f32 0.0, %v1364
        %v1366 = vpop.f32.mrb[0].mxu0
        %1367 = vmatprep.mubr.bf16.mxu0 0
        %1368 = vmatmul.mubr.bf16.gmra.mrb[0].mxu0 %v1207
        %v1369 = vpop.f32.mrb[0].mxu0
        %v1370 = vadd.f32 0.0, %v1369
        %v1371 = vpop.f32.mrb[0].mxu0
        %v1372 = vpop.f32.mrb[0].mxu0
        %v1373 = vadd.f32 0.0, %v1372
        %v1374 = vpop.f32.mrb[0].mxu0
        %1375 = vdwg.mxu0
        %v1376 = vsel %vm789, %v1250, -inf
        %1377 = vmax.xlane.f32.xlu0 %v1376
        %v1378 = vpop.xlane.xlu0 %1377
        %v1379 = vsel %vm789, %v1253, -inf
        %1380 = vmax.xlane.f32.xlu0 %v1379
        %v1381 = vpop.xlane.xlu0 %1380
        %v1382 = vsel %vm789, %v1258, -inf
        %1383 = vmax.xlane.f32.xlu0 %v1382
        %v1384 = vpop.xlane.xlu0 %1383
        %v1385 = vsel %vm789, %v1261, -inf
        %1386 = vmax.xlane.f32.xlu0 %v1385
        %v1387 = vpop.xlane.xlu0 %1386
        %v1388 = vsel %vm789, %v1266, -inf
        %1389 = vmax.xlane.f32.xlu0 %v1388
        %v1390 = vpop.xlane.xlu0 %1389
        %v1391 = vsel %vm789, %v1269, -inf
        %1392 = vmax.xlane.f32.xlu0 %v1391
        %v1393 = vpop.xlane.xlu0 %1392
        %v1394 = vsel %vm789, %v1274, -inf
        %1395 = vmax.xlane.f32.xlu0 %v1394
        %v1396 = vpop.xlane.xlu0 %1395
        %v1397 = vsel %vm789, %v1277, -inf
        %1398 = vmax.xlane.f32.xlu0 %v1397
        %v1399 = vpop.xlane.xlu0 %1398
        %v1400 = vsel %vm789, %v1282, -inf
        %1401 = vmax.xlane.f32.xlu0 %v1400
        %v1402 = vpop.xlane.xlu0 %1401
        %v1403 = vsel %vm789, %v1285, -inf
        %1404 = vmax.xlane.f32.xlu0 %v1403
        %v1405 = vpop.xlane.xlu0 %1404
        %v1406 = vsel %vm789, %v1290, -inf
        %1407 = vmax.xlane.f32.xlu0 %v1406
        %v1408 = vpop.xlane.xlu0 %1407
        %v1409 = vsel %vm789, %v1293, -inf
        %1410 = vmax.xlane.f32.xlu0 %v1409
        %v1411 = vpop.xlane.xlu0 %1410
        %v1412 = vsel %vm789, %v1298, -inf
        %1413 = vmax.xlane.f32.xlu0 %v1412
        %v1414 = vpop.xlane.xlu0 %1413
        %v1415 = vsel %vm789, %v1301, -inf
        %1416 = vmax.xlane.f32.xlu0 %v1415
        %v1417 = vpop.xlane.xlu0 %1416
        %v1418 = vsel %vm789, %v1306, -inf
        %1419 = vmax.xlane.f32.xlu0 %v1418
        %v1420 = vpop.xlane.xlu0 %1419
        %v1421 = vsel %vm789, %v1309, -inf
        %1422 = vmax.xlane.f32.xlu0 %v1421
        %v1423 = vpop.xlane.xlu0 %1422
        %v1424 = vsel %vm789, %v1314, -inf
        %1425 = vmax.xlane.f32.xlu0 %v1424
        %v1426 = vpop.xlane.xlu0 %1425
        %v1427 = vsel %vm789, %v1317, -inf
        %1428 = vmax.xlane.f32.xlu0 %v1427
        %v1429 = vpop.xlane.xlu0 %1428
        %v1430 = vsel %vm789, %v1322, -inf
        %1431 = vmax.xlane.f32.xlu0 %v1430
        %v1432 = vpop.xlane.xlu0 %1431
        %v1433 = vsel %vm789, %v1325, -inf
        %1434 = vmax.xlane.f32.xlu0 %v1433
        %v1435 = vpop.xlane.xlu0 %1434
        %v1436 = vsel %vm789, %v1330, -inf
        %1437 = vmax.xlane.f32.xlu0 %v1436
        %v1438 = vpop.xlane.xlu0 %1437
        %v1439 = vsel %vm789, %v1333, -inf
        %1440 = vmax.xlane.f32.xlu0 %v1439
        %v1441 = vpop.xlane.xlu0 %1440
        %v1442 = vsel %vm789, %v1338, -inf
        %1443 = vmax.xlane.f32.xlu0 %v1442
        %v1444 = vpop.xlane.xlu0 %1443
        %v1445 = vsel %vm789, %v1341, -inf
        %1446 = vmax.xlane.f32.xlu0 %v1445
        %v1447 = vpop.xlane.xlu0 %1446
        %v1448 = vsel %vm789, %v1346, -inf
        %1449 = vmax.xlane.f32.xlu0 %v1448
        %v1450 = vpop.xlane.xlu0 %1449
        %v1451 = vsel %vm789, %v1349, -inf
        %1452 = vmax.xlane.f32.xlu0 %v1451
        %v1453 = vpop.xlane.xlu0 %1452
        %v1454 = vsel %vm789, %v1354, -inf
        %1455 = vmax.xlane.f32.xlu0 %v1454
        %v1456 = vpop.xlane.xlu0 %1455
        %v1457 = vsel %vm789, %v1357, -inf
        %1458 = vmax.xlane.f32.xlu0 %v1457
        %v1459 = vpop.xlane.xlu0 %1458
        %v1460 = vsel %vm789, %v1362, -inf
        %1461 = vmax.xlane.f32.xlu0 %v1460
        %v1462 = vpop.xlane.xlu0 %1461
        %v1463 = vsel %vm789, %v1365, -inf
        %1464 = vmax.xlane.f32.xlu0 %v1463
        %v1465 = vpop.xlane.xlu0 %1464
        %v1466 = vsel %vm789, %v1370, -inf
        %1467 = vmax.xlane.f32.xlu0 %v1466
        %v1468 = vpop.xlane.xlu0 %1467
        %v1469 = vsel %vm789, %v1373, -inf
        %1470 = vmax.xlane.f32.xlu0 %v1469
        %v1471 = vpop.xlane.xlu0 %1470
        %v1472 = vsub.f32 %v1250, %v1378
        %v1473 = vsub.f32 %v1253, %v1381
        %v1474 = vsub.f32 %v1258, %v1384
        %v1475 = vsub.f32 %v1261, %v1387
        %v1476 = vsub.f32 %v1266, %v1390
        %v1477 = vsub.f32 %v1269, %v1393
        %v1478 = vsub.f32 %v1274, %v1396
        %v1479 = vsub.f32 %v1277, %v1399
        %v1480 = vsub.f32 %v1282, %v1402
        %v1481 = vsub.f32 %v1285, %v1405
        %v1482 = vsub.f32 %v1290, %v1408
        %v1483 = vsub.f32 %v1293, %v1411
        %v1484 = vsub.f32 %v1298, %v1414
        %v1485 = vsub.f32 %v1301, %v1417
        %v1486 = vsub.f32 %v1306, %v1420
        %v1487 = vsub.f32 %v1309, %v1423
        %v1488 = vsub.f32 %v1314, %v1426
        %v1489 = vsub.f32 %v1317, %v1429
        %v1490 = vsub.f32 %v1322, %v1432
        %v1491 = vsub.f32 %v1325, %v1435
        %v1492 = vsub.f32 %v1330, %v1438
        %v1493 = vsub.f32 %v1333, %v1441
        %v1494 = vsub.f32 %v1338, %v1444
        %v1495 = vsub.f32 %v1341, %v1447
        %v1496 = vsub.f32 %v1346, %v1450
        %v1497 = vsub.f32 %v1349, %v1453
        %v1498 = vsub.f32 %v1354, %v1456
        %v1499 = vsub.f32 %v1357, %v1459
        %v1500 = vsub.f32 %v1362, %v1462
        %v1501 = vsub.f32 %v1365, %v1465
        %v1502 = vsub.f32 %v1370, %v1468
        %v1503 = vsub.f32 %v1373, %v1471
        %v1504 = vmul.f32 %v1472, 1.442695
        %v1505 = vpow.pop %v1504
        %v1506 = vmul.f32 %v1473, 1.442695
        %v1507 = vpow.pop %v1506
        %v1508 = vmul.f32 %v1474, 1.442695
        %v1509 = vpow.pop %v1508
        %v1510 = vmul.f32 %v1475, 1.442695
        %v1511 = vpow.pop %v1510
        %v1512 = vmul.f32 %v1476, 1.442695
        %v1513 = vpow.pop %v1512
        %v1514 = vmul.f32 %v1477, 1.442695
        %v1515 = vpow.pop %v1514
        %v1516 = vmul.f32 %v1478, 1.442695
        %v1517 = vpow.pop %v1516
        %v1518 = vmul.f32 %v1479, 1.442695
        %v1519 = vpow.pop %v1518
        %v1520 = vmul.f32 %v1480, 1.442695
        %v1521 = vpow.pop %v1520
        %v1522 = vmul.f32 %v1481, 1.442695
        %v1523 = vpow.pop %v1522
        %v1524 = vmul.f32 %v1482, 1.442695
        %v1525 = vpow.pop %v1524
        %v1526 = vmul.f32 %v1483, 1.442695
        %v1527 = vpow.pop %v1526
        %v1528 = vmul.f32 %v1484, 1.442695
        %v1529 = vpow.pop %v1528
        %v1530 = vmul.f32 %v1485, 1.442695
        %v1531 = vpow.pop %v1530
        %v1532 = vmul.f32 %v1486, 1.442695
        %v1533 = vpow.pop %v1532
        %v1534 = vmul.f32 %v1487, 1.442695
        %v1535 = vpow.pop %v1534
        %v1536 = vmul.f32 %v1488, 1.442695
        %v1537 = vpow.pop %v1536
        %v1538 = vmul.f32 %v1489, 1.442695
        %v1539 = vpow.pop %v1538
        %v1540 = vmul.f32 %v1490, 1.442695
        %v1541 = vpow.pop %v1540
        %v1542 = vmul.f32 %v1491, 1.442695
        %v1543 = vpow.pop %v1542
        %v1544 = vmul.f32 %v1492, 1.442695
        %v1545 = vpow.pop %v1544
        %v1546 = vmul.f32 %v1493, 1.442695
        %v1547 = vpow.pop %v1546
        %v1548 = vmul.f32 %v1494, 1.442695
        %v1549 = vpow.pop %v1548
        %v1550 = vmul.f32 %v1495, 1.442695
        %v1551 = vpow.pop %v1550
        %v1552 = vmul.f32 %v1496, 1.442695
        %v1553 = vpow.pop %v1552
        %v1554 = vmul.f32 %v1497, 1.442695
        %v1555 = vpow.pop %v1554
        %v1556 = vmul.f32 %v1498, 1.442695
        %v1557 = vpow.pop %v1556
        %v1558 = vmul.f32 %v1499, 1.442695
        %v1559 = vpow.pop %v1558
        %v1560 = vmul.f32 %v1500, 1.442695
        %v1561 = vpow.pop %v1560
        %v1562 = vmul.f32 %v1501, 1.442695
        %v1563 = vpow.pop %v1562
        %v1564 = vmul.f32 %v1502, 1.442695
        %v1565 = vpow.pop %v1564
        %v1566 = vmul.f32 %v1503, 1.442695
        %v1567 = vpow.pop %v1566
        %v1568 = vsel %vm789, %v1505, 0.0
        %1569 = vadd.xlane.f32.xlu0 %v1568
        %v1570 = vpop.xlane.xlu0 %1569
        %v1571 = vsel %vm789, %v1507, 0.0
        %1572 = vadd.xlane.f32.xlu0 %v1571
        %v1573 = vpop.xlane.xlu0 %1572
        %v1574 = vsel %vm789, %v1509, 0.0
        %1575 = vadd.xlane.f32.xlu0 %v1574
        %v1576 = vpop.xlane.xlu0 %1575
        %v1577 = vsel %vm789, %v1511, 0.0
        %1578 = vadd.xlane.f32.xlu0 %v1577
        %v1579 = vpop.xlane.xlu0 %1578
        %v1580 = vsel %vm789, %v1513, 0.0
        %1581 = vadd.xlane.f32.xlu0 %v1580
        %v1582 = vpop.xlane.xlu0 %1581
        %v1583 = vsel %vm789, %v1515, 0.0
        %1584 = vadd.xlane.f32.xlu0 %v1583
        %v1585 = vpop.xlane.xlu0 %1584
        %v1586 = vsel %vm789, %v1517, 0.0
        %1587 = vadd.xlane.f32.xlu0 %v1586
        %v1588 = vpop.xlane.xlu0 %1587
        %v1589 = vsel %vm789, %v1519, 0.0
        %1590 = vadd.xlane.f32.xlu0 %v1589
        %v1591 = vpop.xlane.xlu0 %1590
        %v1592 = vsel %vm789, %v1521, 0.0
        %1593 = vadd.xlane.f32.xlu0 %v1592
        %v1594 = vpop.xlane.xlu0 %1593
        %v1595 = vsel %vm789, %v1523, 0.0
        %1596 = vadd.xlane.f32.xlu0 %v1595
        %v1597 = vpop.xlane.xlu0 %1596
        %v1598 = vsel %vm789, %v1525, 0.0
        %1599 = vadd.xlane.f32.xlu0 %v1598
        %v1600 = vpop.xlane.xlu0 %1599
        %v1601 = vsel %vm789, %v1527, 0.0
        %1602 = vadd.xlane.f32.xlu0 %v1601
        %v1603 = vpop.xlane.xlu0 %1602
        %v1604 = vsel %vm789, %v1529, 0.0
        %1605 = vadd.xlane.f32.xlu0 %v1604
        %v1606 = vpop.xlane.xlu0 %1605
        %v1607 = vsel %vm789, %v1531, 0.0
        %1608 = vadd.xlane.f32.xlu0 %v1607
        %v1609 = vpop.xlane.xlu0 %1608
        %v1610 = vsel %vm789, %v1533, 0.0
        %1611 = vadd.xlane.f32.xlu0 %v1610
        %v1612 = vpop.xlane.xlu0 %1611
        %v1613 = vsel %vm789, %v1535, 0.0
        %1614 = vadd.xlane.f32.xlu0 %v1613
        %v1615 = vpop.xlane.xlu0 %1614
        %v1616 = vsel %vm789, %v1537, 0.0
        %1617 = vadd.xlane.f32.xlu0 %v1616
        %v1618 = vpop.xlane.xlu0 %1617
        %v1619 = vsel %vm789, %v1539, 0.0
        %1620 = vadd.xlane.f32.xlu0 %v1619
        %v1621 = vpop.xlane.xlu0 %1620
        %v1622 = vsel %vm789, %v1541, 0.0
        %1623 = vadd.xlane.f32.xlu0 %v1622
        %v1624 = vpop.xlane.xlu0 %1623
        %v1625 = vsel %vm789, %v1543, 0.0
        %1626 = vadd.xlane.f32.xlu0 %v1625
        %v1627 = vpop.xlane.xlu0 %1626
        %v1628 = vsel %vm789, %v1545, 0.0
        %1629 = vadd.xlane.f32.xlu0 %v1628
        %v1630 = vpop.xlane.xlu0 %1629
        %v1631 = vsel %vm789, %v1547, 0.0
        %1632 = vadd.xlane.f32.xlu0 %v1631
        %v1633 = vpop.xlane.xlu0 %1632
        %v1634 = vsel %vm789, %v1549, 0.0
        %1635 = vadd.xlane.f32.xlu0 %v1634
        %v1636 = vpop.xlane.xlu0 %1635
        %v1637 = vsel %vm789, %v1551, 0.0
        %1638 = vadd.xlane.f32.xlu0 %v1637
        %v1639 = vpop.xlane.xlu0 %1638
        %v1640 = vsel %vm789, %v1553, 0.0
        %1641 = vadd.xlane.f32.xlu0 %v1640
        %v1642 = vpop.xlane.xlu0 %1641
        %v1643 = vsel %vm789, %v1555, 0.0
        %1644 = vadd.xlane.f32.xlu0 %v1643
        %v1645 = vpop.xlane.xlu0 %1644
        %v1646 = vsel %vm789, %v1557, 0.0
        %1647 = vadd.xlane.f32.xlu0 %v1646
        %v1648 = vpop.xlane.xlu0 %1647
        %v1649 = vsel %vm789, %v1559, 0.0
        %1650 = vadd.xlane.f32.xlu0 %v1649
        %v1651 = vpop.xlane.xlu0 %1650
        %v1652 = vsel %vm789, %v1561, 0.0
        %1653 = vadd.xlane.f32.xlu0 %v1652
        %v1654 = vpop.xlane.xlu0 %1653
        %v1655 = vsel %vm789, %v1563, 0.0
        %1656 = vadd.xlane.f32.xlu0 %v1655
        %v1657 = vpop.xlane.xlu0 %1656
        %v1658 = vsel %vm789, %v1565, 0.0
        %1659 = vadd.xlane.f32.xlu0 %v1658
        %v1660 = vpop.xlane.xlu0 %1659
        %v1661 = vsel %vm789, %v1567, 0.0
        %1662 = vadd.xlane.f32.xlu0 %v1661
        %v1663 = vpop.xlane.xlu0 %1662
        %v1664 = vrcp.pop %v1570
        %v1665 = vrcp.pop %v1573
        %v1666 = vrcp.pop %v1576
        %v1667 = vrcp.pop %v1579
        %v1668 = vrcp.pop %v1582
        %v1669 = vrcp.pop %v1585
        %v1670 = vrcp.pop %v1588
        %v1671 = vrcp.pop %v1591
        %v1672 = vrcp.pop %v1594
        %v1673 = vrcp.pop %v1597
        %v1674 = vrcp.pop %v1600
        %v1675 = vrcp.pop %v1603
        %v1676 = vrcp.pop %v1606
        %v1677 = vrcp.pop %v1609
        %v1678 = vrcp.pop %v1612
        %v1679 = vrcp.pop %v1615
        %v1680 = vrcp.pop %v1618
        %v1681 = vrcp.pop %v1621
        %v1682 = vrcp.pop %v1624
        %v1683 = vrcp.pop %v1627
        %v1684 = vrcp.pop %v1630
        %v1685 = vrcp.pop %v1633
        %v1686 = vrcp.pop %v1636
        %v1687 = vrcp.pop %v1639
        %v1688 = vrcp.pop %v1642
        %v1689 = vrcp.pop %v1645
        %v1690 = vrcp.pop %v1648
        %v1691 = vrcp.pop %v1651
        %v1692 = vrcp.pop %v1654
        %v1693 = vrcp.pop %v1657
        %v1694 = vrcp.pop %v1660
        %v1695 = vrcp.pop %v1663
        %v1696 = vmul.f32 %v1505, %v1664
        %v1697 = vmul.f32 %v1507, %v1665
        %v1698 = vmul.f32 %v1509, %v1666
        %v1699 = vmul.f32 %v1511, %v1667
        %v1700 = vmul.f32 %v1513, %v1668
        %v1701 = vmul.f32 %v1515, %v1669
        %v1702 = vmul.f32 %v1517, %v1670
        %v1703 = vmul.f32 %v1519, %v1671
        %v1704 = vmul.f32 %v1521, %v1672
        %v1705 = vmul.f32 %v1523, %v1673
        %v1706 = vmul.f32 %v1525, %v1674
        %v1707 = vmul.f32 %v1527, %v1675
        %v1708 = vmul.f32 %v1529, %v1676
        %v1709 = vmul.f32 %v1531, %v1677
        %v1710 = vmul.f32 %v1533, %v1678
        %v1711 = vmul.f32 %v1535, %v1679
        %v1712 = vmul.f32 %v1537, %v1680
        %v1713 = vmul.f32 %v1539, %v1681
        %v1714 = vmul.f32 %v1541, %v1682
        %v1715 = vmul.f32 %v1543, %v1683
        %v1716 = vmul.f32 %v1545, %v1684
        %v1717 = vmul.f32 %v1547, %v1685
        %v1718 = vmul.f32 %v1549, %v1686
        %v1719 = vmul.f32 %v1551, %v1687
        %v1720 = vmul.f32 %v1553, %v1688
        %v1721 = vmul.f32 %v1555, %v1689
        %v1722 = vmul.f32 %v1557, %v1690
        %v1723 = vmul.f32 %v1559, %v1691
        %v1724 = vmul.f32 %v1561, %v1692
        %v1725 = vmul.f32 %v1563, %v1693
        %v1726 = vmul.f32 %v1565, %v1694
        %v1727 = vmul.f32 %v1567, %v1695
        %v1728 = vpack.c.bf16 %v1697, %v1696
        %v1729 = vpack.c.bf16 %v1699, %v1698
        %v1730 = vpack.c.bf16 %v1701, %v1700
        %v1731 = vpack.c.bf16 %v1703, %v1702
        %v1732 = vpack.c.bf16 %v1705, %v1704
        %v1733 = vpack.c.bf16 %v1707, %v1706
        %v1734 = vpack.c.bf16 %v1709, %v1708
        %v1735 = vpack.c.bf16 %v1711, %v1710
        %v1736 = vpack.c.bf16 %v1713, %v1712
        %v1737 = vpack.c.bf16 %v1715, %v1714
        %v1738 = vpack.c.bf16 %v1717, %v1716
        %v1739 = vpack.c.bf16 %v1719, %v1718
        %v1740 = vpack.c.bf16 %v1721, %v1720
        %v1741 = vpack.c.bf16 %v1723, %v1722
        %v1742 = vpack.c.bf16 %v1725, %v1724
        %v1743 = vpack.c.bf16 %v1727, %v1726
        %v1744 = vpack.c.bf16 %v1063, %v1060
        %v1745 = vpack.c.bf16 %v1071, %v1068
        %v1747 = vsel %vm789, %v1728, 0
        %v1750 = vsel %vm789, %v1729, 0
        %v1753 = vsel %vm789, %v1730, 0
        %v1756 = vsel %vm789, %v1731, 0
        %v1759 = vsel %vm789, %v1732, 0
        %v1762 = vsel %vm789, %v1733, 0
        %v1765 = vsel %vm789, %v1734, 0
        %v1768 = vsel %vm789, %v1735, 0
        %v1771 = vsel %vm789, %v1736, 0
        %v1774 = vsel %vm789, %v1737, 0
        %v1777 = vsel %vm789, %v1738, 0
        %v1780 = vsel %vm789, %v1739, 0
        %v1783 = vsel %vm789, %v1740, 0
        %v1786 = vsel %vm789, %v1741, 0
        %v1789 = vsel %vm789, %v1742, 0
        %v1792 = vsel %vm789, %v1743, 0
        %1794 = vmatprep.subr.bf16.mxu0 0
        %1795 = vmatpush1.bf16.msra.mxu0 %v1744
        %1796 = vmatprep.subr.bf16.mxu0 0
        %1797 = vmatpush1.bf16.msra.mxu0 %v1745
        %1798 = vmatprep.subr.bf16.mxu0 0
        %1799 = vmatpush1.bf16.msra.mxu0 0
        %1800 = vmatprep.subr.bf16.mxu0 0
        %1801 = vmatpush1.bf16.msra.mxu0 0
        %1802 = vmatprep.subr.bf16.mxu0 0
        %1803 = vmatpush1.bf16.msra.mxu0 0
        %1804 = vmatprep.subr.bf16.mxu0 0
        %1805 = vmatpush1.bf16.msra.mxu0 0
        %1806 = vmatprep.subr.bf16.mxu0 0
        %1807 = vmatpush1.bf16.msra.mxu0 0
        %1808 = vmatprep.subr.bf16.mxu0 0
        %1809 = vmatpush1.bf16.msra.mxu0 0
        %1810 = vmatprep.subr.bf16.mxu0 0
        %1811 = vmatpush1.bf16.msra.mxu0 0
        %1812 = vmatprep.subr.bf16.mxu0 0
        %1813 = vmatpush1.bf16.msra.mxu0 0
        %1814 = vmatprep.subr.bf16.mxu0 0
        %1815 = vmatpush1.bf16.msra.mxu0 0
        %1816 = vmatprep.subr.bf16.mxu0 0
        %1817 = vmatpush1.bf16.msra.mxu0 0
        %1818 = vmatprep.subr.bf16.mxu0 0
        %1819 = vmatpush1.bf16.msra.mxu0 0
        %1820 = vmatprep.subr.bf16.mxu0 0
        %1821 = vmatpush1.bf16.msra.mxu0 0
        %1822 = vmatprep.subr.bf16.mxu0 0
        %1823 = vmatpush1.bf16.msra.mxu0 0
        %1824 = vmatprep.subr.bf16.mxu0 0
        %1825 = vmatpush1.bf16.msra.mxu0 0
        %1826 = vmatprep.mubr.bf16.mxu0 0
        %1827 = vmatmul.mubr.bf16.gmra.mrb[0].mxu0 %v1747
        %v1828 = vpop.f32.mrb[0].mxu0
        %v1829 = vadd.f32 0.0, %v1828
        %v1830 = vpop.f32.mrb[0].mxu0
        %v1831 = vpop.f32.mrb[0].mxu0
        %v1832 = vadd.f32 0.0, %v1831
        %v1833 = vpop.f32.mrb[0].mxu0
        %1834 = vmatprep.mubr.bf16.mxu0 0
        %1835 = vmatmul.mubr.bf16.gmra.mrb[0].mxu0 %v1750
        %v1836 = vpop.f32.mrb[0].mxu0
        %v1837 = vadd.f32 0.0, %v1836
        %v1838 = vpop.f32.mrb[0].mxu0
        %v1839 = vpop.f32.mrb[0].mxu0
        %v1840 = vadd.f32 0.0, %v1839
        %v1841 = vpop.f32.mrb[0].mxu0
        %1842 = vmatprep.mubr.bf16.mxu0 0
        %1843 = vmatmul.mubr.bf16.gmra.mrb[0].mxu0 %v1753
        %v1844 = vpop.f32.mrb[0].mxu0
        %v1845 = vadd.f32 0.0, %v1844
        %v1846 = vpop.f32.mrb[0].mxu0
        %v1847 = vpop.f32.mrb[0].mxu0
        %v1848 = vadd.f32 0.0, %v1847
        %v1849 = vpop.f32.mrb[0].mxu0
        %1850 = vmatprep.mubr.bf16.mxu0 0
        %1851 = vmatmul.mubr.bf16.gmra.mrb[0].mxu0 %v1756
        %v1852 = vpop.f32.mrb[0].mxu0
        %v1853 = vadd.f32 0.0, %v1852
        %v1854 = vpop.f32.mrb[0].mxu0
        %v1855 = vpop.f32.mrb[0].mxu0
        %v1856 = vadd.f32 0.0, %v1855
        %v1857 = vpop.f32.mrb[0].mxu0
        %1858 = vmatprep.mubr.bf16.mxu0 0
        %1859 = vmatmul.mubr.bf16.gmra.mrb[0].mxu0 %v1759
        %v1860 = vpop.f32.mrb[0].mxu0
        %v1861 = vadd.f32 0.0, %v1860
        %v1862 = vpop.f32.mrb[0].mxu0
        %v1863 = vpop.f32.mrb[0].mxu0
        %v1864 = vadd.f32 0.0, %v1863
        %v1865 = vpop.f32.mrb[0].mxu0
        %1866 = vmatprep.mubr.bf16.mxu0 0
        %1867 = vmatmul.mubr.bf16.gmra.mrb[0].mxu0 %v1762
        %v1868 = vpop.f32.mrb[0].mxu0
        %v1869 = vadd.f32 0.0, %v1868
        %v1870 = vpop.f32.mrb[0].mxu0
        %v1871 = vpop.f32.mrb[0].mxu0
        %v1872 = vadd.f32 0.0, %v1871
        %v1873 = vpop.f32.mrb[0].mxu0
        %1874 = vmatprep.mubr.bf16.mxu0 0
        %1875 = vmatmul.mubr.bf16.gmra.mrb[0].mxu0 %v1765
        %v1876 = vpop.f32.mrb[0].mxu0
        %v1877 = vadd.f32 0.0, %v1876
        %v1878 = vpop.f32.mrb[0].mxu0
        %v1879 = vpop.f32.mrb[0].mxu0
        %v1880 = vadd.f32 0.0, %v1879
        %v1881 = vpop.f32.mrb[0].mxu0
        %1882 = vmatprep.mubr.bf16.mxu0 0
        %1883 = vmatmul.mubr.bf16.gmra.mrb[0].mxu0 %v1768
        %v1884 = vpop.f32.mrb[0].mxu0
        %v1885 = vadd.f32 0.0, %v1884
        %v1886 = vpop.f32.mrb[0].mxu0
        %v1887 = vpop.f32.mrb[0].mxu0
        %v1888 = vadd.f32 0.0, %v1887
        %v1889 = vpop.f32.mrb[0].mxu0
        %1890 = vmatprep.mubr.bf16.mxu0 0
        %1891 = vmatmul.mubr.bf16.gmra.mrb[0].mxu0 %v1771
        %v1892 = vpop.f32.mrb[0].mxu0
        %v1893 = vadd.f32 0.0, %v1892
        %v1894 = vpop.f32.mrb[0].mxu0
        %v1895 = vpop.f32.mrb[0].mxu0
        %v1896 = vadd.f32 0.0, %v1895
        %v1897 = vpop.f32.mrb[0].mxu0
        %1898 = vmatprep.mubr.bf16.mxu0 0
        %1899 = vmatmul.mubr.bf16.gmra.mrb[0].mxu0 %v1774
        %v1900 = vpop.f32.mrb[0].mxu0
        %v1901 = vadd.f32 0.0, %v1900
        %v1902 = vpop.f32.mrb[0].mxu0
        %v1903 = vpop.f32.mrb[0].mxu0
        %v1904 = vadd.f32 0.0, %v1903
        %v1905 = vpop.f32.mrb[0].mxu0
        %1906 = vmatprep.mubr.bf16.mxu0 0
        %1907 = vmatmul.mubr.bf16.gmra.mrb[0].mxu0 %v1777
        %v1908 = vpop.f32.mrb[0].mxu0
        %v1909 = vadd.f32 0.0, %v1908
        %v1910 = vpop.f32.mrb[0].mxu0
        %v1911 = vpop.f32.mrb[0].mxu0
        %v1912 = vadd.f32 0.0, %v1911
        %v1913 = vpop.f32.mrb[0].mxu0
        %1914 = vmatprep.mubr.bf16.mxu0 0
        %1915 = vmatmul.mubr.bf16.gmra.mrb[0].mxu0 %v1780
        %v1916 = vpop.f32.mrb[0].mxu0
        %v1917 = vadd.f32 0.0, %v1916
        %v1918 = vpop.f32.mrb[0].mxu0
        %v1919 = vpop.f32.mrb[0].mxu0
        %v1920 = vadd.f32 0.0, %v1919
        %v1921 = vpop.f32.mrb[0].mxu0
        %1922 = vmatprep.mubr.bf16.mxu0 0
        %1923 = vmatmul.mubr.bf16.gmra.mrb[0].mxu0 %v1783
        %v1924 = vpop.f32.mrb[0].mxu0
        %v1925 = vadd.f32 0.0, %v1924
        %v1926 = vpop.f32.mrb[0].mxu0
        %v1927 = vpop.f32.mrb[0].mxu0
        %v1928 = vadd.f32 0.0, %v1927
        %v1929 = vpop.f32.mrb[0].mxu0
        %1930 = vmatprep.mubr.bf16.mxu0 0
        %1931 = vmatmul.mubr.bf16.gmra.mrb[0].mxu0 %v1786
        %v1932 = vpop.f32.mrb[0].mxu0
        %v1933 = vadd.f32 0.0, %v1932
        %v1934 = vpop.f32.mrb[0].mxu0
        %v1935 = vpop.f32.mrb[0].mxu0
        %v1936 = vadd.f32 0.0, %v1935
        %v1937 = vpop.f32.mrb[0].mxu0
        %1938 = vmatprep.mubr.bf16.mxu0 0
        %1939 = vmatmul.mubr.bf16.gmra.mrb[0].mxu0 %v1789
        %v1940 = vpop.f32.mrb[0].mxu0
        %v1941 = vadd.f32 0.0, %v1940
        %v1942 = vpop.f32.mrb[0].mxu0
        %v1943 = vpop.f32.mrb[0].mxu0
        %v1944 = vadd.f32 0.0, %v1943
        %v1945 = vpop.f32.mrb[0].mxu0
        %1946 = vmatprep.mubr.bf16.mxu0 0
        %1947 = vmatmul.mubr.bf16.gmra.mrb[0].mxu0 %v1792
        %v1948 = vpop.f32.mrb[0].mxu0
        %v1949 = vadd.f32 0.0, %v1948
        %v1950 = vpop.f32.mrb[0].mxu0
        %v1951 = vpop.f32.mrb[0].mxu0
        %v1952 = vadd.f32 0.0, %v1951
        %v1953 = vpop.f32.mrb[0].mxu0
        %1954 = vdwg.mxu0
        %v1955 = vmul.f32 %v1829, %v1082
        %v1956 = vmul.f32 %v1832, %v1082
        %v1957 = vmul.f32 %v1837, %v1082
        %v1958 = vmul.f32 %v1840, %v1082
        %v1959 = vadd.f32 %v1955, 0.0
        %v1960 = vadd.f32 %v1956, 0.0
        %v1961 = vadd.f32 %v1957, 0.0
        %v1962 = vadd.f32 %v1958, 0.0
        %v1963 = vmul.f32 %v1845, %v1090
        %v1964 = vmul.f32 %v1848, %v1090
        %v1965 = vmul.f32 %v1853, %v1090
        %v1966 = vmul.f32 %v1856, %v1090
        %v1967 = vadd.f32 %v1959, %v1963
        %v1968 = vadd.f32 %v1960, %v1964
        %v1969 = vadd.f32 %v1961, %v1965
        %v1970 = vadd.f32 %v1962, %v1966
        %v1971 = vmul.f32 %v1861, %v1098
        %v1972 = vmul.f32 %v1864, %v1098
        %v1973 = vmul.f32 %v1869, %v1098
        %v1974 = vmul.f32 %v1872, %v1098
        %v1975 = vadd.f32 %v1967, %v1971
        %v1976 = vadd.f32 %v1968, %v1972
        %v1977 = vadd.f32 %v1969, %v1973
        %v1978 = vadd.f32 %v1970, %v1974
        %v1979 = vmul.f32 %v1877, %v1106
        %v1980 = vmul.f32 %v1880, %v1106
        %v1981 = vmul.f32 %v1885, %v1106
        %v1982 = vmul.f32 %v1888, %v1106
        %v1983 = vadd.f32 %v1975, %v1979
        %v1984 = vadd.f32 %v1976, %v1980
        %v1985 = vadd.f32 %v1977, %v1981
        %v1986 = vadd.f32 %v1978, %v1982
        %v1987 = vmul.f32 %v1893, %v1114
        %v1988 = vmul.f32 %v1896, %v1114
        %v1989 = vmul.f32 %v1901, %v1114
        %v1990 = vmul.f32 %v1904, %v1114
        %v1991 = vadd.f32 %v1983, %v1987
        %v1992 = vadd.f32 %v1984, %v1988
        %v1993 = vadd.f32 %v1985, %v1989
        %v1994 = vadd.f32 %v1986, %v1990
        %v1995 = vmul.f32 %v1909, %v1122
        %v1996 = vmul.f32 %v1912, %v1122
        %v1997 = vmul.f32 %v1917, %v1122
        %v1998 = vmul.f32 %v1920, %v1122
        %v1999 = vadd.f32 %v1991, %v1995
        %v2000 = vadd.f32 %v1992, %v1996
        %v2001 = vadd.f32 %v1993, %v1997
        %v2002 = vadd.f32 %v1994, %v1998
        %v2003 = vmul.f32 %v1925, %v1130
        %v2004 = vmul.f32 %v1928, %v1130
        %v2005 = vmul.f32 %v1933, %v1130
        %v2006 = vmul.f32 %v1936, %v1130
        %v2007 = vadd.f32 %v1999, %v2003
        %v2008 = vadd.f32 %v2000, %v2004
        %v2009 = vadd.f32 %v2001, %v2005
        %v2010 = vadd.f32 %v2002, %v2006
        %v2011 = vmul.f32 %v1941, %v1138
        %v2012 = vmul.f32 %v1944, %v1138
        %v2013 = vmul.f32 %v1949, %v1138
        %v2014 = vmul.f32 %v1952, %v1138
        %v2015 = vadd.f32 %v2007, %v2011
        %v2016 = vadd.f32 %v2008, %v2012
        %v2017 = vadd.f32 %v2009, %v2013
        %v2018 = vadd.f32 %v2010, %v2014
        %v2019 = vpack.c.bf16 %v2016, %v2015
        %v2020 = vpack.c.bf16 %v2018, %v2017
        %v2021 = vld [vmem:[#allocation11] sm:$0xf]
        %v2022 = vld [vmem:[#allocation11 + $0x4] sm:$0xf]
        %v2023 = vld [vmem:[#allocation11 + $0x8] sm:$0xf]
        %v2024 = vld [vmem:[#allocation11 + $0xc] sm:$0xf]
        %v2025 = vld [vmem:[#allocation13] sm:$0x1]
        %v2027 = vlaneseq
        %v2028 = vshrl.u32 %v2027, 7
        %v2029 = vsub.s32 0, %v2028
        %v2030 = vrot.slane %v2025, %v2029
        %v2036 = vunpack.c.l.b16 %v2021
        %v2037 = vunpack.c.l.b16 %v2022
        %v2038 = vunpack.c.l.b16 %v2023
        %v2039 = vunpack.c.l.b16 %v2024
        %v2040 = vpack.c.b16 %v2037, %v2036
        %v2041 = vpack.c.b16 %v2039, %v2038
        %v2045 = vsel %vm789, %v2019, 0
        %v2048 = vsel %vm789, %v2020, 0
        %2050 = vmatprep.subr.bf16.mxu0 0
        %2051 = vmatpush1.bf16.msra.mxu0 %v2040
        %2052 = vmatprep.subr.bf16.mxu0 0
        %2053 = vmatpush1.bf16.msra.mxu0 %v2041
        %2054 = vmatprep.subr.bf16.mxu0 0
        %2055 = vmatpush1.bf16.msra.mxu0 0
        %2056 = vmatprep.subr.bf16.mxu0 0
        %2057 = vmatpush1.bf16.msra.mxu0 0
        %2058 = vmatprep.subr.bf16.mxu0 0
        %2059 = vmatpush1.bf16.msra.mxu0 0
        %2060 = vmatprep.subr.bf16.mxu0 0
        %2061 = vmatpush1.bf16.msra.mxu0 0
        %2062 = vmatprep.subr.bf16.mxu0 0
        %2063 = vmatpush1.bf16.msra.mxu0 0
        %2064 = vmatprep.subr.bf16.mxu0 0
        %2065 = vmatpush1.bf16.msra.mxu0 0
        %2066 = vmatprep.subr.bf16.mxu0 0
        %2067 = vmatpush1.bf16.msra.mxu0 0
        %2068 = vmatprep.subr.bf16.mxu0 0
        %2069 = vmatpush1.bf16.msra.mxu0 0
        %2070 = vmatprep.subr.bf16.mxu0 0
        %2071 = vmatpush1.bf16.msra.mxu0 0
        %2072 = vmatprep.subr.bf16.mxu0 0
        %2073 = vmatpush1.bf16.msra.mxu0 0
        %2074 = vmatprep.subr.bf16.mxu0 0
        %2075 = vmatpush1.bf16.msra.mxu0 0
        %2076 = vmatprep.subr.bf16.mxu0 0
        %2077 = vmatpush1.bf16.msra.mxu0 0
        %2078 = vmatprep.subr.bf16.mxu0 0
        %2079 = vmatpush1.bf16.msra.mxu0 0
        %2080 = vmatprep.subr.bf16.mxu0 0
        %2081 = vmatpush1.bf16.msra.mxu0 0
        %2082 = vmatprep.mubr.bf16.mxu0 0
        %2083 = vmatmul.mubr.bf16.gmra.mrb[0].mxu0 %v2045
        %v2084 = vpop.f32.mrb[0].mxu0
        %v2085 = vadd.f32 %v2030, %v2084
        %v2086 = vpop.f32.mrb[0].mxu0
        %v2087 = vpop.f32.mrb[0].mxu0
        %v2088 = vadd.f32 %v2030, %v2087
        %v2089 = vpop.f32.mrb[0].mxu0
        %2090 = vmatprep.mubr.bf16.mxu0 0
        %2091 = vmatmul.mubr.bf16.gmra.mrb[0].mxu0 %v2048
        %v2092 = vpop.f32.mrb[0].mxu0
        %v2093 = vadd.f32 %v2030, %v2092
        %v2094 = vpop.f32.mrb[0].mxu0
        %v2095 = vpop.f32.mrb[0].mxu0
        %v2096 = vadd.f32 %v2030, %v2095
        %v2097 = vpop.f32.mrb[0].mxu0
        %2098 = vdwg.mxu0
        %v2099 = vadd.f32 %v779, %v2085
        %v2100 = vadd.f32 %v780, %v2088
        %v2101 = vadd.f32 %v781, %v2093
        %v2102 = vadd.f32 %v782, %v2096
        %v2103 = vld [vmem:[#allocation14] sm:$0x1]
        %v2104 = vld [vmem:[#allocation16] sm:$0x1]
        %v2105 = vsel %vm789, %v2099, 0.0
        %2106 = vadd.xlane.f32.xlu0 %v2105
        %v2107 = vpop.xlane.xlu0 %2106
        %v2108 = vsel %vm789, %v2100, 0.0
        %2109 = vadd.xlane.f32.xlu0 %v2108
        %v2110 = vpop.xlane.xlu0 %2109
        %v2111 = vsel %vm789, %v2101, 0.0
        %2112 = vadd.xlane.f32.xlu0 %v2111
        %v2113 = vpop.xlane.xlu0 %2112
        %v2114 = vsel %vm789, %v2102, 0.0
        %2115 = vadd.xlane.f32.xlu0 %v2114
        %v2116 = vpop.xlane.xlu0 %2115
        %v2117 = vmul.f32 %v2107, %v802
        %v2118 = vmul.f32 %v2110, %v802
        %v2119 = vmul.f32 %v2113, %v802
        %v2120 = vmul.f32 %v2116, %v802
        %v2121 = vsub.f32 %v2099, %v2117
        %v2122 = vsub.f32 %v2100, %v2118
        %v2123 = vsub.f32 %v2101, %v2119
        %v2124 = vsub.f32 %v2102, %v2120
        %v2125 = vmul.f32 %v2121, %v2121
        %v2126 = vmul.f32 %v2122, %v2122
        %v2127 = vmul.f32 %v2123, %v2123
        %v2128 = vmul.f32 %v2124, %v2124
        %v2129 = vsel %vm789, %v2125, 0.0
        %2130 = vadd.xlane.f32.xlu0 %v2129
        %v2131 = vpop.xlane.xlu0 %2130
        %v2132 = vsel %vm789, %v2126, 0.0
        %2133 = vadd.xlane.f32.xlu0 %v2132
        %v2134 = vpop.xlane.xlu0 %2133
        %v2135 = vsel %vm789, %v2127, 0.0
        %2136 = vadd.xlane.f32.xlu0 %v2135
        %v2137 = vpop.xlane.xlu0 %2136
        %v2138 = vsel %vm789, %v2128, 0.0
        %2139 = vadd.xlane.f32.xlu0 %v2138
        %v2140 = vpop.xlane.xlu0 %2139
        %v2141 = vmul.f32 %v2131, %v802
        %v2142 = vmul.f32 %v2134, %v802
        %v2143 = vmul.f32 %v2137, %v802
        %v2144 = vmul.f32 %v2140, %v802
        %v2145 = vadd.f32 %v2141, 1e-05
        %v2146 = vadd.f32 %v2142, 1e-05
        %v2147 = vadd.f32 %v2143, 1e-05
        %v2148 = vadd.f32 %v2144, 1e-05
        %v2149 = vrsqrt.pop %v2145
        %v2150 = vrsqrt.pop %v2146
        %v2151 = vrsqrt.pop %v2147
        %v2152 = vrsqrt.pop %v2148
        %v2153 = vmul.f32 %v2121, %v2149
        %v2154 = vmul.f32 %v2122, %v2150
        %v2155 = vmul.f32 %v2123, %v2151
        %v2156 = vmul.f32 %v2124, %v2152
        %v2158 = vlaneseq
        %v2159 = vshrl.u32 %v2158, 7
        %v2160 = vsub.s32 0, %v2159
        %v2161 = vrot.slane %v2103, %v2160
        %v2163 = vmul.f32 %v2153, %v2161
        %v2164 = vmul.f32 %v2154, %v2161
        %v2165 = vmul.f32 %v2155, %v2161
        %v2166 = vmul.f32 %v2156, %v2161
        %v2168 = vlaneseq
        %v2169 = vshrl.u32 %v2168, 7
        %v2170 = vsub.s32 0, %v2169
        %v2171 = vrot.slane %v2104, %v2170
        %v2173 = vadd.f32 %v2163, %v2171
        %v2174 = vadd.f32 %v2164, %v2171
        %v2175 = vadd.f32 %v2165, %v2171
        %v2176 = vadd.f32 %v2166, %v2171
        %v2177 = vpack.c.bf16 %v2174, %v2173
        %v2178 = vpack.c.bf16 %v2176, %v2175
        %v2179 = vld [vmem:[#allocation17] sm:$0xf]
        %v2180 = vld [vmem:[#allocation17 + $0x4] sm:$0xf]
        %v2181 = vld [vmem:[#allocation17 + $0x8] sm:$0xf]
        %v2182 = vld [vmem:[#allocation17 + $0xc] sm:$0xf]
        %v2183 = vld [vmem:[%s12] sm:$0x1]
        %v2185 = vlaneseq
        %v2186 = vshrl.u32 %v2185, 7
        %v2187 = vsub.s32 0, %v2186
        %v2188 = vrot.slane %v2183, %v2187
        %v2194 = vunpack.c.l.b16 %v2179
        %v2195 = vunpack.c.l.b16 %v2180
        %v2196 = vunpack.c.l.b16 %v2181
        %v2197 = vunpack.c.l.b16 %v2182
        %v2198 = vpack.c.b16 %v2195, %v2194
        %v2199 = vpack.c.b16 %v2197, %v2196
        %v2203 = vsel %vm789, %v2177, 0
        %v2206 = vsel %vm789, %v2178, 0
        %2208 = vmatprep.subr.bf16.mxu0 0
        %2209 = vmatpush1.bf16.msra.mxu0 %v2198
        %2210 = vmatprep.subr.bf16.mxu0 0
        %2211 = vmatpush1.bf16.msra.mxu0 %v2199
        %2212 = vmatprep.subr.bf16.mxu0 0
        %2213 = vmatpush1.bf16.msra.mxu0 0
        %2214 = vmatprep.subr.bf16.mxu0 0
        %2215 = vmatpush1.bf16.msra.mxu0 0
        %2216 = vmatprep.subr.bf16.mxu0 0
        %2217 = vmatpush1.bf16.msra.mxu0 0
        %2218 = vmatprep.subr.bf16.mxu0 0
        %2219 = vmatpush1.bf16.msra.mxu0 0
        %2220 = vmatprep.subr.bf16.mxu0 0
        %2221 = vmatpush1.bf16.msra.mxu0 0
        %2222 = vmatprep.subr.bf16.mxu0 0
        %2223 = vmatpush1.bf16.msra.mxu0 0
        %2224 = vmatprep.subr.bf16.mxu0 0
        %2225 = vmatpush1.bf16.msra.mxu0 0
        %2226 = vmatprep.subr.bf16.mxu0 0
        %2227 = vmatpush1.bf16.msra.mxu0 0
        %2228 = vmatprep.subr.bf16.mxu0 0
        %2229 = vmatpush1.bf16.msra.mxu0 0
        %2230 = vmatprep.subr.bf16.mxu0 0
        %2231 = vmatpush1.bf16.msra.mxu0 0
        %2232 = vmatprep.subr.bf16.mxu0 0
        %2233 = vmatpush1.bf16.msra.mxu0 0
        %2234 = vmatprep.subr.bf16.mxu0 0
        %2235 = vmatpush1.bf16.msra.mxu0 0
        %2236 = vmatprep.subr.bf16.mxu0 0
        %2237 = vmatpush1.bf16.msra.mxu0 0
        %2238 = vmatprep.subr.bf16.mxu0 0
        %2239 = vmatpush1.bf16.msra.mxu0 0
        %2240 = vmatprep.mubr.bf16.mxu0 0
        %2241 = vmatmul.mubr.bf16.gmra.mrb[0].mxu0 %v2203
        %v2242 = vpop.f32.mrb[0].mxu0
        %v2243 = vadd.f32 %v2188, %v2242
        %v2244 = vpop.f32.mrb[0].mxu0
        %v2245 = vpop.f32.mrb[0].mxu0
        %v2246 = vadd.f32 %v2188, %v2245
        %v2247 = vpop.f32.mrb[0].mxu0
        %2248 = vmatprep.mubr.bf16.mxu0 0
        %2249 = vmatmul.mubr.bf16.gmra.mrb[0].mxu0 %v2206
        %v2250 = vpop.f32.mrb[0].mxu0
        %v2251 = vadd.f32 %v2188, %v2250
        %v2252 = vpop.f32.mrb[0].mxu0
        %v2253 = vpop.f32.mrb[0].mxu0
        %v2254 = vadd.f32 %v2188, %v2253
        %v2255 = vpop.f32.mrb[0].mxu0
        %2256 = vdwg.mxu0
        %v2257 = vld [vmem:[%s13] sm:$0xff]
        %v2258 = vld [vmem:[%s13 + $0x8] sm:$0xff]
        %v2259 = vld [vmem:[%s13 + $0x10] sm:$0xff]
        %v2260 = vld [vmem:[%s13 + $0x18] sm:$0x7]
        %v2261 = vlaneseq
        %v2262 = vshrl.u32 %v2261, 7
        %v2263 = vsub.s32 0, %v2262
        %v2264 = vrot.slane %v2257, %v2263
        %v2265 = vmul.f32 %v2243, %v2264
        %v2266 = vmul.f32 %v2246, %v2264
        %v2267 = vmul.f32 %v2251, %v2264
        %v2268 = vmul.f32 %v2254, %v2264
        %v2269 = vlaneseq
        %v2270 = vshrl.u32 %v2269, 7
        %v2271 = vsub.s32 1, %v2270
        %v2272 = vrot.slane %v2257, %v2271
        %v2273 = vmul.f32 %v2243, %v2272
        %v2274 = vmul.f32 %v2246, %v2272
        %v2275 = vmul.f32 %v2251, %v2272
        %v2276 = vmul.f32 %v2254, %v2272
        %v2277 = vlaneseq
        %v2278 = vshrl.u32 %v2277, 7
        %v2279 = vsub.s32 2, %v2278
        %v2280 = vrot.slane %v2257, %v2279
        %v2281 = vmul.f32 %v2243, %v2280
        %v2282 = vmul.f32 %v2246, %v2280
        %v2283 = vmul.f32 %v2251, %v2280
        %v2284 = vmul.f32 %v2254, %v2280
        %v2285 = vlaneseq
        %v2286 = vshrl.u32 %v2285, 7
        %v2287 = vsub.s32 3, %v2286
        %v2288 = vrot.slane %v2257, %v2287
        %v2289 = vmul.f32 %v2243, %v2288
        %v2290 = vmul.f32 %v2246, %v2288
        %v2291 = vmul.f32 %v2251, %v2288
        %v2292 = vmul.f32 %v2254, %v2288
        %v2293 = vlaneseq
        %v2294 = vshrl.u32 %v2293, 7
        %v2295 = vsub.s32 4, %v2294
        %v2296 = vrot.slane %v2257, %v2295
        %v2297 = vmul.f32 %v2243, %v2296
        %v2298 = vmul.f32 %v2246, %v2296
        %v2299 = vmul.f32 %v2251, %v2296
        %v2300 = vmul.f32 %v2254, %v2296
        %v2301 = vlaneseq
        %v2302 = vshrl.u32 %v2301, 7
        %v2303 = vsub.s32 5, %v2302
        %v2304 = vrot.slane %v2257, %v2303
        %v2305 = vmul.f32 %v2243, %v2304
        %v2306 = vmul.f32 %v2246, %v2304
        %v2307 = vmul.f32 %v2251, %v2304
        %v2308 = vmul.f32 %v2254, %v2304
        %v2309 = vlaneseq
        %v2310 = vshrl.u32 %v2309, 7
        %v2311 = vsub.s32 6, %v2310
        %v2312 = vrot.slane %v2257, %v2311
        %v2313 = vmul.f32 %v2243, %v2312
        %v2314 = vmul.f32 %v2246, %v2312
        %v2315 = vmul.f32 %v2251, %v2312
        %v2316 = vmul.f32 %v2254, %v2312
        %v2317 = vlaneseq
        %v2318 = vshrl.u32 %v2317, 7
        %v2319 = vsub.s32 7, %v2318
        %v2320 = vrot.slane %v2257, %v2319
        %v2321 = vmul.f32 %v2243, %v2320
        %v2322 = vmul.f32 %v2246, %v2320
        %v2323 = vmul.f32 %v2251, %v2320
        %v2324 = vmul.f32 %v2254, %v2320
        %v2325 = vlaneseq
        %v2326 = vshrl.u32 %v2325, 7
        %v2327 = vsub.s32 0, %v2326
        %v2328 = vrot.slane %v2258, %v2327
        %v2329 = vmul.f32 %v2243, %v2328
        %v2330 = vmul.f32 %v2246, %v2328
        %v2331 = vmul.f32 %v2251, %v2328
        %v2332 = vmul.f32 %v2254, %v2328
        %v2333 = vlaneseq
        %v2334 = vshrl.u32 %v2333, 7
        %v2335 = vsub.s32 1, %v2334
        %v2336 = vrot.slane %v2258, %v2335
        %v2337 = vmul.f32 %v2243, %v2336
        %v2338 = vmul.f32 %v2246, %v2336
        %v2339 = vmul.f32 %v2251, %v2336
        %v2340 = vmul.f32 %v2254, %v2336
        %v2341 = vlaneseq
        %v2342 = vshrl.u32 %v2341, 7
        %v2343 = vsub.s32 2, %v2342
        %v2344 = vrot.slane %v2258, %v2343
        %v2345 = vmul.f32 %v2243, %v2344
        %v2346 = vmul.f32 %v2246, %v2344
        %v2347 = vmul.f32 %v2251, %v2344
        %v2348 = vmul.f32 %v2254, %v2344
        %v2349 = vlaneseq
        %v2350 = vshrl.u32 %v2349, 7
        %v2351 = vsub.s32 3, %v2350
        %v2352 = vrot.slane %v2258, %v2351
        %v2353 = vmul.f32 %v2243, %v2352
        %v2354 = vmul.f32 %v2246, %v2352
        %v2355 = vmul.f32 %v2251, %v2352
        %v2356 = vmul.f32 %v2254, %v2352
        %v2357 = vlaneseq
        %v2358 = vshrl.u32 %v2357, 7
        %v2359 = vsub.s32 4, %v2358
        %v2360 = vrot.slane %v2258, %v2359
        %v2361 = vmul.f32 %v2243, %v2360
        %v2362 = vmul.f32 %v2246, %v2360
        %v2363 = vmul.f32 %v2251, %v2360
        %v2364 = vmul.f32 %v2254, %v2360
        %v2365 = vlaneseq
        %v2366 = vshrl.u32 %v2365, 7
        %v2367 = vsub.s32 5, %v2366
        %v2368 = vrot.slane %v2258, %v2367
        %v2369 = vmul.f32 %v2243, %v2368
        %v2370 = vmul.f32 %v2246, %v2368
        %v2371 = vmul.f32 %v2251, %v2368
        %v2372 = vmul.f32 %v2254, %v2368
        %v2373 = vlaneseq
        %v2374 = vshrl.u32 %v2373, 7
        %v2375 = vsub.s32 6, %v2374
        %v2376 = vrot.slane %v2258, %v2375
        %v2377 = vmul.f32 %v2243, %v2376
        %v2378 = vmul.f32 %v2246, %v2376
        %v2379 = vmul.f32 %v2251, %v2376
        %v2380 = vmul.f32 %v2254, %v2376
        %v2381 = vlaneseq
        %v2382 = vshrl.u32 %v2381, 7
        %v2383 = vsub.s32 7, %v2382
        %v2384 = vrot.slane %v2258, %v2383
        %v2385 = vmul.f32 %v2243, %v2384
        %v2386 = vmul.f32 %v2246, %v2384
        %v2387 = vmul.f32 %v2251, %v2384
        %v2388 = vmul.f32 %v2254, %v2384
        %v2389 = vlaneseq
        %v2390 = vshrl.u32 %v2389, 7
        %v2391 = vsub.s32 0, %v2390
        %v2392 = vrot.slane %v2259, %v2391
        %v2393 = vmul.f32 %v2243, %v2392
        %v2394 = vmul.f32 %v2246, %v2392
        %v2395 = vmul.f32 %v2251, %v2392
        %v2396 = vmul.f32 %v2254, %v2392
        %v2397 = vlaneseq
        %v2398 = vshrl.u32 %v2397, 7
        %v2399 = vsub.s32 1, %v2398
        %v2400 = vrot.slane %v2259, %v2399
        %v2401 = vmul.f32 %v2243, %v2400
        %v2402 = vmul.f32 %v2246, %v2400
        %v2403 = vmul.f32 %v2251, %v2400
        %v2404 = vmul.f32 %v2254, %v2400
        %v2405 = vlaneseq
        %v2406 = vshrl.u32 %v2405, 7
        %v2407 = vsub.s32 2, %v2406
        %v2408 = vrot.slane %v2259, %v2407
        %v2409 = vmul.f32 %v2243, %v2408
        %v2410 = vmul.f32 %v2246, %v2408
        %v2411 = vmul.f32 %v2251, %v2408
        %v2412 = vmul.f32 %v2254, %v2408
        %v2413 = vlaneseq
        %v2414 = vshrl.u32 %v2413, 7
        %v2415 = vsub.s32 3, %v2414
        %v2416 = vrot.slane %v2259, %v2415
        %v2417 = vmul.f32 %v2243, %v2416
        %v2418 = vmul.f32 %v2246, %v2416
        %v2419 = vmul.f32 %v2251, %v2416
        %v2420 = vmul.f32 %v2254, %v2416
        %v2421 = vlaneseq
        %v2422 = vshrl.u32 %v2421, 7
        %v2423 = vsub.s32 4, %v2422
        %v2424 = vrot.slane %v2259, %v2423
        %v2425 = vmul.f32 %v2243, %v2424
        %v2426 = vmul.f32 %v2246, %v2424
        %v2427 = vmul.f32 %v2251, %v2424
        %v2428 = vmul.f32 %v2254, %v2424
        %v2429 = vlaneseq
        %v2430 = vshrl.u32 %v2429, 7
        %v2431 = vsub.s32 5, %v2430
        %v2432 = vrot.slane %v2259, %v2431
        %v2433 = vmul.f32 %v2243, %v2432
        %v2434 = vmul.f32 %v2246, %v2432
        %v2435 = vmul.f32 %v2251, %v2432
        %v2436 = vmul.f32 %v2254, %v2432
        %v2437 = vlaneseq
        %v2438 = vshrl.u32 %v2437, 7
        %v2439 = vsub.s32 6, %v2438
        %v2440 = vrot.slane %v2259, %v2439
        %v2441 = vmul.f32 %v2243, %v2440
        %v2442 = vmul.f32 %v2246, %v2440
        %v2443 = vmul.f32 %v2251, %v2440
        %v2444 = vmul.f32 %v2254, %v2440
        %v2445 = vlaneseq
        %v2446 = vshrl.u32 %v2445, 7
        %v2447 = vsub.s32 7, %v2446
        %v2448 = vrot.slane %v2259, %v2447
        %v2449 = vmul.f32 %v2243, %v2448
        %v2450 = vmul.f32 %v2246, %v2448
        %v2451 = vmul.f32 %v2251, %v2448
        %v2452 = vmul.f32 %v2254, %v2448
        %v2453 = vlaneseq
        %v2454 = vshrl.u32 %v2453, 7
        %v2455 = vsub.s32 0, %v2454
        %v2456 = vrot.slane %v2260, %v2455
        %v2457 = vmul.f32 %v2243, %v2456
        %v2458 = vmul.f32 %v2246, %v2456
        %v2459 = vmul.f32 %v2251, %v2456
        %v2460 = vmul.f32 %v2254, %v2456
        %v2461 = vlaneseq
        %v2462 = vshrl.u32 %v2461, 7
        %v2463 = vsub.s32 1, %v2462
        %v2464 = vrot.slane %v2260, %v2463
        %v2465 = vmul.f32 %v2243, %v2464
        %v2466 = vmul.f32 %v2246, %v2464
        %v2467 = vmul.f32 %v2251, %v2464
        %v2468 = vmul.f32 %v2254, %v2464
        %v2469 = vlaneseq
        %v2470 = vshrl.u32 %v2469, 7
        %v2471 = vsub.s32 2, %v2470
        %v2472 = vrot.slane %v2260, %v2471
        %v2473 = vmul.f32 %v2243, %v2472
        %v2474 = vmul.f32 %v2246, %v2472
        %v2475 = vmul.f32 %v2251, %v2472
        %v2476 = vmul.f32 %v2254, %v2472
        %v2477 = vld [vmem:[#allocation19] sm:$0xff]
        %v2478 = vld [vmem:[#allocation19 + $0x8] sm:$0xff]
        %v2479 = vld [vmem:[#allocation19 + $0x10] sm:$0xff]
        %v2480 = vld [vmem:[#allocation19 + $0x18] sm:$0xff]
        %v2481 = vld [vmem:[#allocation19 + $0x20] sm:$0xff]
        %v2482 = vld [vmem:[#allocation19 + $0x28] sm:$0xff]
        %v2483 = vld [vmem:[#allocation19 + $0x30] sm:$0xff]
        %v2484 = vld [vmem:[#allocation19 + $0x38] sm:$0xff]
        %v2485 = vld [vmem:[#allocation19 + $0x40] sm:$0xff]
        %v2486 = vld [vmem:[#allocation19 + $0x48] sm:$0xff]
        %v2487 = vld [vmem:[#allocation19 + $0x50] sm:$0xff]
        %v2488 = vld [vmem:[#allocation19 + $0x58] sm:$0xff]
        %v2489 = vld [vmem:[#allocation19 + $0x60] sm:$0xff]
        %v2490 = vld [vmem:[#allocation19 + $0x68] sm:$0xff]
        %v2491 = vld [vmem:[#allocation19 + $0x70] sm:$0xff]
        %v2492 = vld [vmem:[#allocation19 + $0x78] sm:$0xff]
        %v2493 = vld [vmem:[#allocation19 + $0x80] sm:$0xff]
        %v2494 = vld [vmem:[#allocation19 + $0x88] sm:$0xff]
        %v2495 = vld [vmem:[#allocation19 + $0x90] sm:$0xff]
        %v2496 = vld [vmem:[#allocation19 + $0x98] sm:$0xff]
        %v2497 = vld [vmem:[#allocation19 + $0xa0] sm:$0xff]
        %v2498 = vld [vmem:[#allocation19 + $0xa8] sm:$0xff]
        %v2499 = vld [vmem:[#allocation19 + $0xb0] sm:$0xff]
        %v2500 = vld [vmem:[#allocation19 + $0xb8] sm:$0xff]
        %v2501 = vld [vmem:[#allocation19 + $0xc0] sm:$0xff]
        %v2502 = vld [vmem:[#allocation19 + $0xc8] sm:$0xff]
        %v2503 = vld [vmem:[#allocation19 + $0xd0] sm:$0xff]
        %v2504 = vld [vmem:[#allocation19 + $0xd8] sm:$0xff]
        %v2505 = vld [vmem:[%s14] sm:$0x1]
        %v2507 = vlaneseq
        %v2508 = vshrl.u32 %v2507, 7
        %v2509 = vsub.s32 0, %v2508
        %v2510 = vrot.slane %v2505, %v2509
        %vm2512 = vcmask 785408
        %v2514 = vsel %vm2512, %v2483, 0
        %v2517 = vsel %vm2512, %v2490, 0
        %v2520 = vsel %vm2512, %v2497, 0
        %v2523 = vsel %vm2512, %v2504, 0
        %2525 = vmatprep.subr.mxu0 0.0
        %2526 = vmatpush1.msra.mxu0 %v2265
        %2527 = vmatprep.subr.mxu0 0.0
        %2528 = vmatpush1.msra.mxu0 %v2266
        %2529 = vmatprep.subr.mxu0 0.0
        %2530 = vmatpush1.msra.mxu0 %v2267
        %2531 = vmatprep.subr.mxu0 0.0
        %2532 = vmatpush1.msra.mxu0 %v2268
        %2533 = vmatprep.subr.mxu0 0.0
        %2534 = vmatpush1.msra.mxu0 %v2273
        %2535 = vmatprep.subr.mxu0 0.0
        %2536 = vmatpush1.msra.mxu0 %v2274
        %2537 = vmatprep.subr.mxu0 0.0
        %2538 = vmatpush1.msra.mxu0 %v2275
        %2539 = vmatprep.subr.mxu0 0.0
        %2540 = vmatpush1.msra.mxu0 %v2276
        %2541 = vmatprep.subr.mxu0 0.0
        %2542 = vmatpush1.msra.mxu0 %v2281
        %2543 = vmatprep.subr.mxu0 0.0
        %2544 = vmatpush1.msra.mxu0 %v2282
        %2545 = vmatprep.subr.mxu0 0.0
        %2546 = vmatpush1.msra.mxu0 %v2283
        %2547 = vmatprep.subr.mxu0 0.0
        %2548 = vmatpush1.msra.mxu0 %v2284
        %2549 = vmatprep.subr.mxu0 0.0
        %2550 = vmatpush1.msra.mxu0 %v2289
        %2551 = vmatprep.subr.mxu0 0.0
        %2552 = vmatpush1.msra.mxu0 %v2290
        %2553 = vmatprep.subr.mxu0 0.0
        %2554 = vmatpush1.msra.mxu0 %v2291
        %2555 = vmatprep.subr.mxu0 0.0
        %2556 = vmatpush1.msra.mxu0 %v2292
        %2557 = vmatprep.subr.mxu0 0.0
        %2558 = vmatpush1.msra.mxu0 %v2297
        %2559 = vmatprep.subr.mxu0 0.0
        %2560 = vmatpush1.msra.mxu0 %v2298
        %2561 = vmatprep.subr.mxu0 0.0
        %2562 = vmatpush1.msra.mxu0 %v2299
        %2563 = vmatprep.subr.mxu0 0.0
        %2564 = vmatpush1.msra.mxu0 %v2300
        %2565 = vmatprep.subr.mxu0 0.0
        %2566 = vmatpush1.msra.mxu0 %v2305
        %2567 = vmatprep.subr.mxu0 0.0
        %2568 = vmatpush1.msra.mxu0 %v2306
        %2569 = vmatprep.subr.mxu0 0.0
        %2570 = vmatpush1.msra.mxu0 %v2307
        %2571 = vmatprep.subr.mxu0 0.0
        %2572 = vmatpush1.msra.mxu0 %v2308
        %2573 = vmatprep.subr.mxu0 0.0
        %2574 = vmatpush1.msra.mxu0 %v2313
        %2575 = vmatprep.subr.mxu0 0.0
        %2576 = vmatpush1.msra.mxu0 %v2314
        %2577 = vmatprep.subr.mxu0 0.0
        %2578 = vmatpush1.msra.mxu0 %v2315
        %2579 = vmatprep.subr.mxu0 0.0
        %2580 = vmatpush1.msra.mxu0 %v2316
        %2581 = vmatprep.subr.mxu0 0.0
        %2582 = vmatpush1.msra.mxu0 %v2321
        %2583 = vmatprep.subr.mxu0 0.0
        %2584 = vmatpush1.msra.mxu0 %v2322
        %2585 = vmatprep.subr.mxu0 0.0
        %2586 = vmatpush1.msra.mxu0 %v2323
        %2587 = vmatprep.subr.mxu0 0.0
        %2588 = vmatpush1.msra.mxu0 %v2324
        %2589 = vmatprep.mubr.f32.mxu0 %v2478
        %2590 = vmatmul.mubr.f32.gmra.mrb[0].mxu0 %v2477
        %v2591 = vpop.f32.mrb[0].mxu0
        %v2592 = vadd.f32 %v2510, %v2591
        %v2593 = vpop.f32.mrb[0].mxu0
        %2594 = vmatprep.mubr.f32.mxu0 %v2485
        %2595 = vmatmul.mubr.f32.gmra.mrb[0].mxu0 %v2484
        %v2596 = vpop.f32.mrb[0].mxu0
        %v2597 = vadd.f32 %v2510, %v2596
        %v2598 = vpop.f32.mrb[0].mxu0
        %2599 = vmatprep.mubr.f32.mxu0 %v2492
        %2600 = vmatmul.mubr.f32.gmra.mrb[0].mxu0 %v2491
        %v2601 = vpop.f32.mrb[0].mxu0
        %v2602 = vadd.f32 %v2510, %v2601
        %v2603 = vpop.f32.mrb[0].mxu0
        %2604 = vmatprep.mubr.f32.mxu0 %v2499
        %2605 = vmatmul.mubr.f32.gmra.mrb[0].mxu0 %v2498
        %v2606 = vpop.f32.mrb[0].mxu0
        %v2607 = vadd.f32 %v2510, %v2606
        %v2608 = vpop.f32.mrb[0].mxu0
        %2609 = vdwg.mxu0
        %2610 = vmatprep.subr.mxu0 0.0
        %2611 = vmatpush1.msra.mxu0 %v2329
        %2612 = vmatprep.subr.mxu0 0.0
        %2613 = vmatpush1.msra.mxu0 %v2330
        %2614 = vmatprep.subr.mxu0 0.0
        %2615 = vmatpush1.msra.mxu0 %v2331
        %2616 = vmatprep.subr.mxu0 0.0
        %2617 = vmatpush1.msra.mxu0 %v2332
        %2618 = vmatprep.subr.mxu0 0.0
        %2619 = vmatpush1.msra.mxu0 %v2337
        %2620 = vmatprep.subr.mxu0 0.0
        %2621 = vmatpush1.msra.mxu0 %v2338
        %2622 = vmatprep.subr.mxu0 0.0
        %2623 = vmatpush1.msra.mxu0 %v2339
        %2624 = vmatprep.subr.mxu0 0.0
        %2625 = vmatpush1.msra.mxu0 %v2340
        %2626 = vmatprep.subr.mxu0 0.0
        %2627 = vmatpush1.msra.mxu0 %v2345
        %2628 = vmatprep.subr.mxu0 0.0
        %2629 = vmatpush1.msra.mxu0 %v2346
        %2630 = vmatprep.subr.mxu0 0.0
        %2631 = vmatpush1.msra.mxu0 %v2347
        %2632 = vmatprep.subr.mxu0 0.0
        %2633 = vmatpush1.msra.mxu0 %v2348
        %2634 = vmatprep.subr.mxu0 0.0
        %2635 = vmatpush1.msra.mxu0 %v2353
        %2636 = vmatprep.subr.mxu0 0.0
        %2637 = vmatpush1.msra.mxu0 %v2354
        %2638 = vmatprep.subr.mxu0 0.0
        %2639 = vmatpush1.msra.mxu0 %v2355
        %2640 = vmatprep.subr.mxu0 0.0
        %2641 = vmatpush1.msra.mxu0 %v2356
        %2642 = vmatprep.subr.mxu0 0.0
        %2643 = vmatpush1.msra.mxu0 %v2361
        %2644 = vmatprep.subr.mxu0 0.0
        %2645 = vmatpush1.msra.mxu0 %v2362
        %2646 = vmatprep.subr.mxu0 0.0
        %2647 = vmatpush1.msra.mxu0 %v2363
        %2648 = vmatprep.subr.mxu0 0.0
        %2649 = vmatpush1.msra.mxu0 %v2364
        %2650 = vmatprep.subr.mxu0 0.0
        %2651 = vmatpush1.msra.mxu0 %v2369
        %2652 = vmatprep.subr.mxu0 0.0
        %2653 = vmatpush1.msra.mxu0 %v2370
        %2654 = vmatprep.subr.mxu0 0.0
        %2655 = vmatpush1.msra.mxu0 %v2371
        %2656 = vmatprep.subr.mxu0 0.0
        %2657 = vmatpush1.msra.mxu0 %v2372
        %2658 = vmatprep.subr.mxu0 0.0
        %2659 = vmatpush1.msra.mxu0 %v2377
        %2660 = vmatprep.subr.mxu0 0.0
        %2661 = vmatpush1.msra.mxu0 %v2378
        %2662 = vmatprep.subr.mxu0 0.0
        %2663 = vmatpush1.msra.mxu0 %v2379
        %2664 = vmatprep.subr.mxu0 0.0
        %2665 = vmatpush1.msra.mxu0 %v2380
        %2666 = vmatprep.subr.mxu0 0.0
        %2667 = vmatpush1.msra.mxu0 %v2385
        %2668 = vmatprep.subr.mxu0 0.0
        %2669 = vmatpush1.msra.mxu0 %v2386
        %2670 = vmatprep.subr.mxu0 0.0
        %2671 = vmatpush1.msra.mxu0 %v2387
        %2672 = vmatprep.subr.mxu0 0.0
        %2673 = vmatpush1.msra.mxu0 %v2388
        %2674 = vmatprep.mubr.f32.mxu0 %v2480
        %2675 = vmatmul.mubr.f32.gmra.mrb[0].mxu0 %v2479
        %v2676 = vpop.f32.mrb[0].mxu0
        %v2677 = vadd.f32 %v2592, %v2676
        %v2678 = vpop.f32.mrb[0].mxu0
        %2679 = vmatprep.mubr.f32.mxu0 %v2487
        %2680 = vmatmul.mubr.f32.gmra.mrb[0].mxu0 %v2486
        %v2681 = vpop.f32.mrb[0].mxu0
        %v2682 = vadd.f32 %v2597, %v2681
        %v2683 = vpop.f32.mrb[0].mxu0
        %2684 = vmatprep.mubr.f32.mxu0 %v2494
        %2685 = vmatmul.mubr.f32.gmra.mrb[0].mxu0 %v2493
        %v2686 = vpop.f32.mrb[0].mxu0
        %v2687 = vadd.f32 %v2602, %v2686
        %v2688 = vpop.f32.mrb[0].mxu0
        %2689 = vmatprep.mubr.f32.mxu0 %v2501
        %2690 = vmatmul.mubr.f32.gmra.mrb[0].mxu0 %v2500
        %v2691 = vpop.f32.mrb[0].mxu0
        %v2692 = vadd.f32 %v2607, %v2691
        %v2693 = vpop.f32.mrb[0].mxu0
        %2694 = vdwg.mxu0
        %2695 = vmatprep.subr.mxu0 0.0
        %2696 = vmatpush1.msra.mxu0 %v2393
        %2697 = vmatprep.subr.mxu0 0.0
        %2698 = vmatpush1.msra.mxu0 %v2394
        %2699 = vmatprep.subr.mxu0 0.0
        %2700 = vmatpush1.msra.mxu0 %v2395
        %2701 = vmatprep.subr.mxu0 0.0
        %2702 = vmatpush1.msra.mxu0 %v2396
        %2703 = vmatprep.subr.mxu0 0.0
        %2704 = vmatpush1.msra.mxu0 %v2401
        %2705 = vmatprep.subr.mxu0 0.0
        %2706 = vmatpush1.msra.mxu0 %v2402
        %2707 = vmatprep.subr.mxu0 0.0
        %2708 = vmatpush1.msra.mxu0 %v2403
        %2709 = vmatprep.subr.mxu0 0.0
        %2710 = vmatpush1.msra.mxu0 %v2404
        %2711 = vmatprep.subr.mxu0 0.0
        %2712 = vmatpush1.msra.mxu0 %v2409
        %2713 = vmatprep.subr.mxu0 0.0
        %2714 = vmatpush1.msra.mxu0 %v2410
        %2715 = vmatprep.subr.mxu0 0.0
        %2716 = vmatpush1.msra.mxu0 %v2411
        %2717 = vmatprep.subr.mxu0 0.0
        %2718 = vmatpush1.msra.mxu0 %v2412
        %2719 = vmatprep.subr.mxu0 0.0
        %2720 = vmatpush1.msra.mxu0 %v2417
        %2721 = vmatprep.subr.mxu0 0.0
        %2722 = vmatpush1.msra.mxu0 %v2418
        %2723 = vmatprep.subr.mxu0 0.0
        %2724 = vmatpush1.msra.mxu0 %v2419
        %2725 = vmatprep.subr.mxu0 0.0
        %2726 = vmatpush1.msra.mxu0 %v2420
        %2727 = vmatprep.subr.mxu0 0.0
        %2728 = vmatpush1.msra.mxu0 %v2425
        %2729 = vmatprep.subr.mxu0 0.0
        %2730 = vmatpush1.msra.mxu0 %v2426
        %2731 = vmatprep.subr.mxu0 0.0
        %2732 = vmatpush1.msra.mxu0 %v2427
        %2733 = vmatprep.subr.mxu0 0.0
        %2734 = vmatpush1.msra.mxu0 %v2428
        %2735 = vmatprep.subr.mxu0 0.0
        %2736 = vmatpush1.msra.mxu0 %v2433
        %2737 = vmatprep.subr.mxu0 0.0
        %2738 = vmatpush1.msra.mxu0 %v2434
        %2739 = vmatprep.subr.mxu0 0.0
        %2740 = vmatpush1.msra.mxu0 %v2435
        %2741 = vmatprep.subr.mxu0 0.0
        %2742 = vmatpush1.msra.mxu0 %v2436
        %2743 = vmatprep.subr.mxu0 0.0
        %2744 = vmatpush1.msra.mxu0 %v2441
        %2745 = vmatprep.subr.mxu0 0.0
        %2746 = vmatpush1.msra.mxu0 %v2442
        %2747 = vmatprep.subr.mxu0 0.0
        %2748 = vmatpush1.msra.mxu0 %v2443
        %2749 = vmatprep.subr.mxu0 0.0
        %2750 = vmatpush1.msra.mxu0 %v2444
        %2751 = vmatprep.subr.mxu0 0.0
        %2752 = vmatpush1.msra.mxu0 %v2449
        %2753 = vmatprep.subr.mxu0 0.0
        %2754 = vmatpush1.msra.mxu0 %v2450
        %2755 = vmatprep.subr.mxu0 0.0
        %2756 = vmatpush1.msra.mxu0 %v2451
        %2757 = vmatprep.subr.mxu0 0.0
        %2758 = vmatpush1.msra.mxu0 %v2452
        %2759 = vmatprep.mubr.f32.mxu0 %v2482
        %2760 = vmatmul.mubr.f32.gmra.mrb[0].mxu0 %v2481
        %v2761 = vpop.f32.mrb[0].mxu0
        %v2762 = vadd.f32 %v2677, %v2761
        %v2763 = vpop.f32.mrb[0].mxu0
        %2764 = vmatprep.mubr.f32.mxu0 %v2489
        %2765 = vmatmul.mubr.f32.gmra.mrb[0].mxu0 %v2488
        %v2766 = vpop.f32.mrb[0].mxu0
        %v2767 = vadd.f32 %v2682, %v2766
        %v2768 = vpop.f32.mrb[0].mxu0
        %2769 = vmatprep.mubr.f32.mxu0 %v2496
        %2770 = vmatmul.mubr.f32.gmra.mrb[0].mxu0 %v2495
        %v2771 = vpop.f32.mrb[0].mxu0
        %v2772 = vadd.f32 %v2687, %v2771
        %v2773 = vpop.f32.mrb[0].mxu0
        %2774 = vmatprep.mubr.f32.mxu0 %v2503
        %2775 = vmatmul.mubr.f32.gmra.mrb[0].mxu0 %v2502
        %v2776 = vpop.f32.mrb[0].mxu0
        %v2777 = vadd.f32 %v2692, %v2776
        %v2778 = vpop.f32.mrb[0].mxu0
        %2779 = vdwg.mxu0
        %2780 = vmatprep.subr.mxu0 0.0
        %2781 = vmatpush1.msra.mxu0 %v2457
        %2782 = vmatprep.subr.mxu0 0.0
        %2783 = vmatpush1.msra.mxu0 %v2458
        %2784 = vmatprep.subr.mxu0 0.0
        %2785 = vmatpush1.msra.mxu0 %v2459
        %2786 = vmatprep.subr.mxu0 0.0
        %2787 = vmatpush1.msra.mxu0 %v2460
        %2788 = vmatprep.subr.mxu0 0.0
        %2789 = vmatpush1.msra.mxu0 %v2465
        %2790 = vmatprep.subr.mxu0 0.0
        %2791 = vmatpush1.msra.mxu0 %v2466
        %2792 = vmatprep.subr.mxu0 0.0
        %2793 = vmatpush1.msra.mxu0 %v2467
        %2794 = vmatprep.subr.mxu0 0.0
        %2795 = vmatpush1.msra.mxu0 %v2468
        %2796 = vmatprep.subr.mxu0 0.0
        %2797 = vmatpush1.msra.mxu0 %v2473
        %2798 = vmatprep.subr.mxu0 0.0
        %2799 = vmatpush1.msra.mxu0 %v2474
        %2800 = vmatprep.subr.mxu0 0.0
        %2801 = vmatpush1.msra.mxu0 %v2475
        %2802 = vmatprep.subr.mxu0 0.0
        %2803 = vmatpush1.msra.mxu0 %v2476
        %2804 = vmatprep.subr.mxu0 0.0
        %2805 = vmatpush1.msra.mxu0 0.0
        %2806 = vmatprep.subr.mxu0 0.0
        %2807 = vmatpush1.msra.mxu0 0.0
        %2808 = vmatprep.subr.mxu0 0.0
        %2809 = vmatpush1.msra.mxu0 0.0
        %2810 = vmatprep.subr.mxu0 0.0
        %2811 = vmatpush1.msra.mxu0 0.0
        %2812 = vmatprep.subr.mxu0 0.0
        %2813 = vmatpush1.msra.mxu0 0.0
        %2814 = vmatprep.subr.mxu0 0.0
        %2815 = vmatpush1.msra.mxu0 0.0
        %2816 = vmatprep.subr.mxu0 0.0
        %2817 = vmatpush1.msra.mxu0 0.0
        %2818 = vmatprep.subr.mxu0 0.0
        %2819 = vmatpush1.msra.mxu0 0.0
        %2820 = vmatprep.subr.mxu0 0.0
        %2821 = vmatpush1.msra.mxu0 0.0
        %2822 = vmatprep.subr.mxu0 0.0
        %2823 = vmatpush1.msra.mxu0 0.0
        %2824 = vmatprep.subr.mxu0 0.0
        %2825 = vmatpush1.msra.mxu0 0.0
        %2826 = vmatprep.subr.mxu0 0.0
        %2827 = vmatpush1.msra.mxu0 0.0
        %2828 = vmatprep.subr.mxu0 0.0
        %2829 = vmatpush1.msra.mxu0 0.0
        %2830 = vmatprep.subr.mxu0 0.0
        %2831 = vmatpush1.msra.mxu0 0.0
        %2832 = vmatprep.subr.mxu0 0.0
        %2833 = vmatpush1.msra.mxu0 0.0
        %2834 = vmatprep.subr.mxu0 0.0
        %2835 = vmatpush1.msra.mxu0 0.0
        %2836 = vmatprep.subr.mxu0 0.0
        %2837 = vmatpush1.msra.mxu0 0.0
        %2838 = vmatprep.subr.mxu0 0.0
        %2839 = vmatpush1.msra.mxu0 0.0
        %2840 = vmatprep.subr.mxu0 0.0
        %2841 = vmatpush1.msra.mxu0 0.0
        %2842 = vmatprep.subr.mxu0 0.0
        %2843 = vmatpush1.msra.mxu0 0.0
        %2844 = vmatprep.mubr.f32.mxu0 0.0
        %2845 = vmatmul.mubr.f32.gmra.mrb[0].mxu0 %v2514
        %v2846 = vpop.f32.mrb[0].mxu0
        %v2847 = vadd.f32 %v2762, %v2846
        %v2848 = vpop.f32.mrb[0].mxu0
        %2849 = vmatprep.mubr.f32.mxu0 0.0
        %2850 = vmatmul.mubr.f32.gmra.mrb[0].mxu0 %v2517
        %v2851 = vpop.f32.mrb[0].mxu0
        %v2852 = vadd.f32 %v2767, %v2851
        %v2853 = vpop.f32.mrb[0].mxu0
        %2854 = vmatprep.mubr.f32.mxu0 0.0
        %2855 = vmatmul.mubr.f32.gmra.mrb[0].mxu0 %v2520
        %v2856 = vpop.f32.mrb[0].mxu0
        %v2857 = vadd.f32 %v2772, %v2856
        %v2858 = vpop.f32.mrb[0].mxu0
        %2859 = vmatprep.mubr.f32.mxu0 0.0
        %2860 = vmatmul.mubr.f32.gmra.mrb[0].mxu0 %v2523
        %v2861 = vpop.f32.mrb[0].mxu0
        %v2862 = vadd.f32 %v2777, %v2861
        %v2863 = vpop.f32.mrb[0].mxu0
        %2864 = vdwg.mxu0
        %v2865 = vmul.f32 %v2847, 0.5
        %v2866 = vmul.f32 %v2852, 0.5
        %v2867 = vmul.f32 %v2857, 0.5
        %v2868 = vmul.f32 %v2862, 0.5
        %v2869 = vmul.f32 %v2847, 0.70710677
        %v2870 = vmul.f32 %v2852, 0.70710677
        %v2871 = vmul.f32 %v2857, 0.70710677
        %v2872 = vmul.f32 %v2862, 0.70710677
        %vm2873 = vcmp.ge.f32.partialorder %v2869, 0.0
        %vm2874 = vcmp.ge.f32.partialorder %v2870, 0.0
        %vm2875 = vcmp.ge.f32.partialorder %v2871, 0.0
        %vm2876 = vcmp.ge.f32.partialorder %v2872, 0.0
        %v2877 = vsel %vm2873, 1.0, -1.0
        %v2878 = vsel %vm2874, 1.0, -1.0
        %v2879 = vsel %vm2875, 1.0, -1.0
        %v2880 = vsel %vm2876, 1.0, -1.0
        %v2881 = vand.u32 2147483647, %v2869
        %v2882 = vand.u32 2147483647, %v2870
        %v2883 = vand.u32 2147483647, %v2871
        %v2884 = vand.u32 2147483647, %v2872
        %v2885 = vmul.f32 %v2881, 0.3275911
        %v2886 = vmul.f32 %v2882, 0.3275911
        %v2887 = vmul.f32 %v2883, 0.3275911
        %v2888 = vmul.f32 %v2884, 0.3275911
        %v2889 = vadd.f32 %v2885, 1.0
        %v2890 = vadd.f32 %v2886, 1.0
        %v2891 = vadd.f32 %v2887, 1.0
        %v2892 = vadd.f32 %v2888, 1.0
        %v2893 = vrcp.pop %v2889
        %v2894 = vmul.f32 1.0, %v2893
        %v2895 = vrcp.pop %v2890
        %v2896 = vmul.f32 1.0, %v2895
        %v2897 = vrcp.pop %v2891
        %v2898 = vmul.f32 1.0, %v2897
        %v2899 = vrcp.pop %v2892
        %v2900 = vmul.f32 1.0, %v2899
        %v2901 = vmul.f32 %v2894, 1.0614054
        %v2902 = vmul.f32 %v2896, 1.0614054
        %v2903 = vmul.f32 %v2898, 1.0614054
        %v2904 = vmul.f32 %v2900, 1.0614054
        %v2905 = vadd.f32 %v2901, -1.4531521
        %v2906 = vadd.f32 %v2902, -1.4531521
        %v2907 = vadd.f32 %v2903, -1.4531521
        %v2908 = vadd.f32 %v2904, -1.4531521
        %v2909 = vmul.f32 %v2905, %v2894
        %v2910 = vmul.f32 %v2906, %v2896
        %v2911 = vmul.f32 %v2907, %v2898
        %v2912 = vmul.f32 %v2908, %v2900
        %v2913 = vadd.f32 %v2909, 1.4214138
        %v2914 = vadd.f32 %v2910, 1.4214138
        %v2915 = vadd.f32 %v2911, 1.4214138
        %v2916 = vadd.f32 %v2912, 1.4214138
        %v2917 = vmul.f32 %v2913, %v2894
        %v2918 = vmul.f32 %v2914, %v2896
        %v2919 = vmul.f32 %v2915, %v2898
        %v2920 = vmul.f32 %v2916, %v2900
        %v2921 = vadd.f32 %v2917, -0.28449672
        %v2922 = vadd.f32 %v2918, -0.28449672
        %v2923 = vadd.f32 %v2919, -0.28449672
        %v2924 = vadd.f32 %v2920, -0.28449672
        %v2925 = vmul.f32 %v2921, %v2894
        %v2926 = vmul.f32 %v2922, %v2896
        %v2927 = vmul.f32 %v2923, %v2898
        %v2928 = vmul.f32 %v2924, %v2900
        %v2929 = vadd.f32 %v2925, 0.2548296
        %v2930 = vadd.f32 %v2926, 0.2548296
        %v2931 = vadd.f32 %v2927, 0.2548296
        %v2932 = vadd.f32 %v2928, 0.2548296
        %v2933 = vmul.f32 %v2929, %v2894
        %v2934 = vmul.f32 %v2930, %v2896
        %v2935 = vmul.f32 %v2931, %v2898
        %v2936 = vmul.f32 %v2932, %v2900
        %v2937 = vsub.f32 0.0, %v2881
        %v2938 = vsub.f32 0.0, %v2882
        %v2939 = vsub.f32 0.0, %v2883
        %v2940 = vsub.f32 0.0, %v2884
        %v2941 = vmul.f32 %v2937, %v2881
        %v2942 = vmul.f32 %v2938, %v2882
        %v2943 = vmul.f32 %v2939, %v2883
        %v2944 = vmul.f32 %v2940, %v2884
        %v2945 = vmul.f32 %v2941, 1.442695
        %v2946 = vpow.pop %v2945
        %v2947 = vmul.f32 %v2942, 1.442695
        %v2948 = vpow.pop %v2947
        %v2949 = vmul.f32 %v2943, 1.442695
        %v2950 = vpow.pop %v2949
        %v2951 = vmul.f32 %v2944, 1.442695
        %v2952 = vpow.pop %v2951
        %v2953 = vmul.f32 %v2933, %v2946
        %v2954 = vmul.f32 %v2934, %v2948
        %v2955 = vmul.f32 %v2935, %v2950
        %v2956 = vmul.f32 %v2936, %v2952
        %v2957 = vsub.f32 1.0, %v2953
        %v2958 = vsub.f32 1.0, %v2954
        %v2959 = vsub.f32 1.0, %v2955
        %v2960 = vsub.f32 1.0, %v2956
        %v2961 = vmul.f32 %v2877, %v2957
        %v2962 = vmul.f32 %v2878, %v2958
        %v2963 = vmul.f32 %v2879, %v2959
        %v2964 = vmul.f32 %v2880, %v2960
        %v2965 = vadd.f32 %v2961, 1.0
        %v2966 = vadd.f32 %v2962, 1.0
        %v2967 = vadd.f32 %v2963, 1.0
        %v2968 = vadd.f32 %v2964, 1.0
        %v2969 = vmul.f32 %v2865, %v2965
        %v2970 = vmul.f32 %v2866, %v2966
        %v2971 = vmul.f32 %v2867, %v2967
        %v2972 = vmul.f32 %v2868, %v2968
        %v2973 = vpack.c.bf16 %v2970, %v2969
        %v2974 = vpack.c.bf16 %v2972, %v2971
        %v2975 = vld [vmem:[%s15] sm:$0xf]
        %v2976 = vld [vmem:[%s15 + $0x4] sm:$0xf]
        %v2977 = vld [vmem:[%s15 + $0x8] sm:$0xf]
        %v2978 = vld [vmem:[%s15 + $0xc] sm:$0xf]
        %v2979 = vld [vmem:[%s15 + $0x10] sm:$0xf]
        %v2980 = vld [vmem:[%s15 + $0x14] sm:$0xf]
        %v2981 = vld [vmem:[%s15 + $0x18] sm:$0xf]
        %v2982 = vld [vmem:[%s15 + $0x1c] sm:$0xf]
        %v2983 = vld [vmem:[%s15 + $0x20] sm:$0xf]
        %v2984 = vld [vmem:[%s15 + $0x24] sm:$0xf]
        %v2985 = vld [vmem:[%s15 + $0x28] sm:$0xf]
        %v2986 = vld [vmem:[%s15 + $0x2c] sm:$0xf]
        %v2987 = vld [vmem:[%s15 + $0x30] sm:$0xf]
        %v2988 = vld [vmem:[%s15 + $0x34] sm:$0xf]
        %v2989 = vld [vmem:[%s15 + $0x38] sm:$0xf]
        %v2990 = vld [vmem:[%s15 + $0x3c] sm:$0xf]
        %v2991 = vld [vmem:[%s16] sm:$0x1]
        %v2993 = vlaneseq
        %v2994 = vshrl.u32 %v2993, 7
        %v2995 = vsub.s32 0, %v2994
        %v2996 = vrot.slane %v2991, %v2995
        %v3014 = vunpack.c.l.b16 %v2975
        %v3015 = vunpack.c.l.b16 %v2976
        %v3016 = vunpack.c.l.b16 %v2977
        %v3017 = vunpack.c.l.b16 %v2978
        %v3018 = vunpack.c.l.b16 %v2979
        %v3019 = vunpack.c.l.b16 %v2980
        %v3020 = vunpack.c.l.b16 %v2981
        %v3021 = vunpack.c.l.b16 %v2982
        %v3022 = vunpack.c.l.b16 %v2983
        %v3023 = vunpack.c.l.b16 %v2984
        %v3024 = vunpack.c.l.b16 %v2985
        %v3025 = vunpack.c.l.b16 %v2986
        %v3026 = vunpack.c.l.b16 %v2987
        %v3027 = vunpack.c.l.b16 %v2988
        %v3028 = vunpack.c.l.b16 %v2989
        %v3029 = vunpack.c.l.b16 %v2990
        %v3030 = vpack.c.b16 %v3015, %v3014
        %v3031 = vpack.c.b16 %v3017, %v3016
        %v3032 = vpack.c.b16 %v3019, %v3018
        %v3033 = vpack.c.b16 %v3021, %v3020
        %v3034 = vpack.c.b16 %v3023, %v3022
        %v3035 = vpack.c.b16 %v3025, %v3024
        %v3036 = vpack.c.b16 %v3027, %v3026
        %v3037 = vpack.c.b16 %v3029, %v3028
        %3046 = vmatprep.subr.bf16.mxu0 0
        %3047 = vmatpush1.bf16.msra.mxu0 %v3030
        %3048 = vmatprep.subr.bf16.mxu0 0
        %3049 = vmatpush1.bf16.msra.mxu0 %v3031
        %3050 = vmatprep.subr.bf16.mxu0 0
        %3051 = vmatpush1.bf16.msra.mxu0 %v3032
        %3052 = vmatprep.subr.bf16.mxu0 0
        %3053 = vmatpush1.bf16.msra.mxu0 %v3033
        %3054 = vmatprep.subr.bf16.mxu0 0
        %3055 = vmatpush1.bf16.msra.mxu0 %v3034
        %3056 = vmatprep.subr.bf16.mxu0 0
        %3057 = vmatpush1.bf16.msra.mxu0 %v3035
        %3058 = vmatprep.subr.bf16.mxu0 0
        %3059 = vmatpush1.bf16.msra.mxu0 %v3036
        %3060 = vmatprep.subr.bf16.mxu0 0
        %3061 = vmatpush1.bf16.msra.mxu0 %v3037
        %3062 = vmatprep.subr.bf16.mxu0 0
        %3063 = vmatpush1.bf16.msra.mxu0 0
        %3064 = vmatprep.subr.bf16.mxu0 0
        %3065 = vmatpush1.bf16.msra.mxu0 0
        %3066 = vmatprep.subr.bf16.mxu0 0
        %3067 = vmatpush1.bf16.msra.mxu0 0
        %3068 = vmatprep.subr.bf16.mxu0 0
        %3069 = vmatpush1.bf16.msra.mxu0 0
        %3070 = vmatprep.subr.bf16.mxu0 0
        %3071 = vmatpush1.bf16.msra.mxu0 0
        %3072 = vmatprep.subr.bf16.mxu0 0
        %3073 = vmatpush1.bf16.msra.mxu0 0
        %3074 = vmatprep.subr.bf16.mxu0 0
        %3075 = vmatpush1.bf16.msra.mxu0 0
        %3076 = vmatprep.subr.bf16.mxu0 0
        %3077 = vmatpush1.bf16.msra.mxu0 0
        %3078 = vmatprep.mubr.bf16.mxu0 0
        %3079 = vmatmul.mubr.bf16.gmra.mrb[0].mxu0 %v2973
        %v3080 = vpop.f32.mrb[0].mxu0
        %v3081 = vadd.f32 %v2996, %v3080
        %v3082 = vpop.f32.mrb[0].mxu0
        %v3083 = vpop.f32.mrb[0].mxu0
        %v3084 = vadd.f32 %v2996, %v3083
        %v3085 = vpop.f32.mrb[0].mxu0
        %3086 = vmatprep.mubr.bf16.mxu0 0
        %3087 = vmatmul.mubr.bf16.gmra.mrb[0].mxu0 %v2974
        %v3088 = vpop.f32.mrb[0].mxu0
        %v3089 = vadd.f32 %v2996, %v3088
        %v3090 = vpop.f32.mrb[0].mxu0
        %v3091 = vpop.f32.mrb[0].mxu0
        %v3092 = vadd.f32 %v2996, %v3091
        %v3093 = vpop.f32.mrb[0].mxu0
        %3094 = vdwg.mxu0
        %v3095 = vadd.f32 %v2099, %v3081
        %v3096 = vadd.f32 %v2100, %v3084
        %v3097 = vadd.f32 %v2101, %v3089
        %v3098 = vadd.f32 %v2102, %v3092
        %3099 = vst.msk [vmem:[%s772] sm:$0xff] %vm789, %v3095
        %3100 = vst.msk [vmem:[%s772 + $0x8] sm:$0xff] %vm789, %v3096
        %3101 = vst.msk [vmem:[%s772 + $0x10] sm:$0xff] %vm789, %v3097
        %3102 = vst.msk [vmem:[%s772 + $0x18] sm:$0xff] %vm789, %v3098
        %s3103 = sand.u32 %s458, 1
        %s3104 = scalar_lea.sflag [#allocation4], %s3103
        %s3105 = sand.u32 %s458, 1
        %s3106 = smul.addr %s3105, 32
        %s3107 = scalar_lea.vmem [#allocation20], %s3106
        // Predicated region
        $region141: #{tpu_custom_call.1} parent=95 // pred_check
          %p3108 = pneg %p468
        $region142: #{tpu_custom_call.1} parent=95 // pred_check_branch
          %3110 = sbr.rel (%p3108) target = $region144
        $region143: #{tpu_custom_call.1} parent=95 // pred_region
          %s3112 = ssub.s32 512, 512
          %3113 = vsyncadd %s3104, %s3112
          %s3114 = smul.addr %s41, 4
          %s3115 = smul.addr %s3114, 128
          %s3116 = scalar_lea.hbm %s19, %s3115
          %s3117 = sshll.u32 %s3107, 4
          %s3118 = int_to_ptr.vmem [resolvable:$true] %s3117
          %3123 = dma.vmem_to_hbm [thread:$0]  %s3118, 512, %s3116, %s3104, 128, 128, 8
        $region144: #{tpu_custom_call.1} parent=95 // pred_fallthru
          _
      $region96: #{tpu_custom_call.1} parent=5 // pred_fallthru
        _
      %p3124 = scmp.le.s32.totalorder 2, %s36
      // Predicated region
      $region145: #{tpu_custom_call.1} parent=5 // pred_check
        %p3125 = pneg %p3124
      $region146: #{tpu_custom_call.1} parent=5 // pred_check_branch
        %3127 = sbr.rel (%p3125) target = $region148
      $region147: #{tpu_custom_call.1} parent=5 // pred_region
        %s3128 = ssub.s32 %s36, 2
        // Predicated region
        $region149: #{tpu_custom_call.1} parent=147 // pred_check
          %p3129 = pneg %p474
        $region150: #{tpu_custom_call.1} parent=147 // pred_check_branch
          %3131 = sbr.rel (%p3129) target = $region152
        $region151: #{tpu_custom_call.1} parent=147 // pred_region
          %s3132 = sand.u32 %s459, 1
          %s3133 = scalar_lea.sflag [#allocation4], %s3132
          %s3134 = sand.u32 %s459, 1
          %s3135 = smul.addr %s3134, 32
          %s3136 = scalar_lea.vmem [#allocation20], %s3135
          %3137 = dma.done %s3133, 512
        $region152: #{tpu_custom_call.1} parent=147 // pred_fallthru
          _
      $region148: #{tpu_custom_call.1} parent=5 // pred_fallthru
        _
    $region6: #{tpu_custom_call.1} parent=1 // loop_footer
      %s40 = sadd.s32 1, %s36
    $region7: #{tpu_custom_call.1} parent=1 // loop_footer_branch
      %35 = sbr.rel target = $region3
    $region8: #{tpu_custom_call.1} parent=1 // loop_exit
      _
    %3138 = vsyncpa [#allocation3], 1
    %s3139 = scalar_lea.sflag [#allocation3], 1
    %3140 = vsyncpa %s3139, 1
    %3141 = vsyncpa [#allocation6], 1
    %3142 = vsyncpa [#allocation9], 1
    %3143 = vsyncpa [#allocation12], 1
    %3144 = vsyncpa [#allocation15], 1
    %3145 = vsyncpa [#allocation18], 1
    %3146 = vsyncpa [#allocation4], 1
    %s3147 = scalar_lea.sflag [#allocation4], 1
    %3148 = vsyncpa %s3147, 1

</llo_original>
